<compile_context>
chip_gen: v7x
topology: tpu7x:2x2x1
jax: 0.10.0
libtpu: 0.0.40
codegen_flags: <defaults>
</compile_context>

<pallas_src>
import numpy as np

import jax
import jax.numpy as jnp
from jax.experimental import pallas as pl
from jax.experimental.pallas import tpu as pltpu


KSIZE = 5
STRIDE = 2
EPS = 1e-5


def conv_out_size(size, k=KSIZE, s=STRIDE):
    return (size - (k - 1) - 1) // s + 1


# ----------------------------------------------------------------------------
# Fused whole-network kernel.
#   conv-l : a <- relu( (sum_i R_l[i] @ a @ T_l[i]) * scale_l + shift_l )
#   fc     : h <- (sum_h E[h] @ a @ FCW[h]) + fc_b          (no ReLU, per spec)
#   head   : o <- h @ HW + hb
# ----------------------------------------------------------------------------
def _dqn_kernel(x_ref,
                r1_ref, t1_ref, s1_ref, b1_ref,
                r2_ref, t2_ref, s2_ref, b2_ref,
                r3_ref, t3_ref, s3_ref, b3_ref,
                e_ref, fcw_ref, fcb_ref,
                hw_ref, hb_ref,
                o_ref):
    def sandwich(act, left_ref, right_ref):
        n = left_ref.shape[0]
        acc = jnp.dot(
            jnp.dot(left_ref[0], act, preferred_element_type=jnp.float32),
            right_ref[0], preferred_element_type=jnp.float32)
        for i in range(1, n):
            acc = acc + jnp.dot(
                jnp.dot(left_ref[i], act, preferred_element_type=jnp.float32),
                right_ref[i], preferred_element_type=jnp.float32)
        return acc

    a = x_ref[...]                                             # (tb*H, W*C)
    a = jnp.maximum(sandwich(a, r1_ref, t1_ref) * s1_ref[...] + b1_ref[...], 0.0)
    a = jnp.maximum(sandwich(a, r2_ref, t2_ref) * s2_ref[...] + b2_ref[...], 0.0)
    a = jnp.maximum(sandwich(a, r3_ref, t3_ref) * s3_ref[...] + b3_ref[...], 0.0)
    h = sandwich(a, e_ref, fcw_ref) + fcb_ref[...]
    o_ref[...] = (jnp.dot(h, hw_ref[...], preferred_element_type=jnp.float32)
                  + hb_ref[...])


# ----------------------------------------------------------------------------
# One-time constant / weight preparation (all done outside the hot path).
# ----------------------------------------------------------------------------
def _make_row_select(batch_tile, h_in, h_out):
    """(KSIZE, tb*h_out, tb*h_in): picks input row 2*ho+i, block-diag over b."""
    r = np.zeros((KSIZE, h_out, h_in), np.float32)
    for i in range(KSIZE):
        for o in range(h_out):
            r[i, o, STRIDE * o + i] = 1.0
    eye = np.eye(batch_tile, dtype=np.float32)
    return np.stack([np.kron(eye, r[i]) for i in range(KSIZE)])


def _make_band(w_oihw, w_in, w_out):
    """Torch conv weight (Cout,Cin,k,k) -> banded (k, w_in*Cin, w_out*Cout)."""
    c_out, c_in = w_oihw.shape[0], w_oihw.shape[1]
    sel = (np.arange(w_in)[:, None, None]
           == STRIDE * np.arange(w_out)[None, :, None]
           + np.arange(KSIZE)[None, None, :]).astype(np.float32)   # (w_in, w_out, k)
    k_hwio = jnp.transpose(w_oihw.astype(jnp.float32), (2, 3, 1, 0))  # (k,k,Cin,Cout)
    t = jnp.einsum('wuj,ijcd->iwcud', jnp.asarray(sel), k_hwio)
    return t.reshape(KSIZE, w_in * c_in, w_out * c_out)


def _make_fc_select(batch_tile, h3):
    e = np.zeros((h3, batch_tile, batch_tile * h3), np.float32)
    for hh in range(h3):
        for b in range(batch_tile):
            e[hh, b, b * h3 + hh] = 1.0
    return e


def prepare_params(p, h, w, action_shape, batch_tile):
    """Transform torch-layout params into kernel-ready operands (done once)."""
    chans = [4, 16, 32, 32]
    hs, ws = [h], [w]
    for _ in range(3):
        hs.append(conv_out_size(hs[-1]))
        ws.append(conv_out_size(ws[-1]))

    args = []
    for l in range(3):
        c_out = chans[l + 1]
        h_in, h_out, w_in, w_out = hs[l], hs[l + 1], ws[l], ws[l + 1]
        r = jnp.asarray(_make_row_select(batch_tile, h_in, h_out))
        t = _make_band(p[f"conv{l+1}_w"], w_in, w_out)
        scale = p[f"bn{l+1}_gamma"] / jnp.sqrt(p[f"bn{l+1}_var"] + EPS)
        shift = scale * (p[f"conv{l+1}_b"] - p[f"bn{l+1}_mean"]) + p[f"bn{l+1}_beta"]
        args += [r, t,
                 jnp.tile(scale, w_out).reshape(1, w_out * c_out).astype(jnp.float32),
                 jnp.tile(shift, w_out).reshape(1, w_out * c_out).astype(jnp.float32)]

    h3, w3, c3 = hs[3], ws[3], chans[3]
    # fc weight: torch flattens NCHW -> (c, h, w); permute once to this
    # kernel's (h, w, c) column order and split per conv-output row h.
    fcw = p["fc_w"].astype(jnp.float32).reshape(512, c3, h3, w3)
    fcw = jnp.transpose(fcw, (2, 3, 1, 0)).reshape(h3, w3 * c3, 512)
    args += [jnp.asarray(_make_fc_select(batch_tile, h3)), fcw,
             p["fc_b"].reshape(1, 512).astype(jnp.float32),
             p["head_w"].astype(jnp.float32).T,
             p["head_b"].reshape(1, int(action_shape)).astype(jnp.float32)]
    return {"batch_tile": batch_tile, "h": h, "w": w, "c_in": chans[0],
            "actions": int(action_shape), "args": args}


# ----------------------------------------------------------------------------
# Forward pass (Pallas) and pure-JAX reference for verification
# ----------------------------------------------------------------------------
def dqn_forward_pallas(x_nhwc, prep, state=None):
    tb = prep["batch_tile"]
    h, w, c_in, actions = prep["h"], prep["w"], prep["c_in"], prep["actions"]
    b = x_nhwc.shape[0]
    nb = -(-b // tb)
    bp = nb * tb

    x = x_nhwc.astype(jnp.float32)
    if bp != b:
        x = jnp.pad(x, ((0, bp - b), (0, 0), (0, 0), (0, 0)))
    x2d = x.reshape(bp * h, w * c_in)            # rows = (b, h), cols = (w, c)

    args = prep["args"]
    in_specs = [pl.BlockSpec((tb * h, w * c_in), lambda i: (i, 0))]
    for arr in args:                             # params: one full VMEM block
        in_specs.append(pl.BlockSpec(arr.shape, lambda i, n=arr.ndim: (0,) * n))

    out = pl.pallas_call(
        _dqn_kernel,
        out_shape=jax.ShapeDtypeStruct((bp, actions), jnp.float32),
        grid_spec=pltpu.PrefetchScalarGridSpec(
            num_scalar_prefetch=0,
            grid=(nb,),
            in_specs=in_specs,
            out_specs=pl.BlockSpec((tb, actions), lambda i: (i, 0))),
        compiler_params=pltpu.CompilerParams(
            dimension_semantics=("parallel",),
            vmem_limit_bytes=32 * 1024 * 1024),
    )(x2d, *args)
    return out[:b], state


def dqn_forward_ref(x_nhwc, p, eps=EPS):
    x = jnp.transpose(x_nhwc.astype(jnp.float32), (0, 3, 1, 2))
    for i in (1, 2, 3):
        w, b = p[f"conv{i}_w"], p[f"conv{i}_b"]
        x = jax.lax.conv_general_dilated(
            x, w, window_strides=(2, 2), padding="VALID",
            dimension_numbers=("NCHW", "OIHW", "NCHW"))
        x = x + b[None, :, None, None]
        g, bt = p[f"bn{i}_gamma"], p[f"bn{i}_beta"]
        m, v = p[f"bn{i}_mean"], p[f"bn{i}_var"]
        x = (x - m[None, :, None, None]) / jnp.sqrt(v + eps)[None, :, None, None]
        x = x * g[None, :, None, None] + bt[None, :, None, None]
        x = jnp.maximum(x, 0.0)
    x = x.reshape(x.shape[0], -1)
    x = x @ p["fc_w"].T + p["fc_b"]
    return x @ p["head_w"].T + p["head_b"]


# ----------------------------------------------------------------------------
# Parameter construction (deterministic, synthetic)
# ----------------------------------------------------------------------------
def init_params(h, w, action_shape, key):
    ks = jax.random.split(key, 16)

    def nrm(k, shape, scl=0.05):
        return (scl * jax.random.normal(k, shape)).astype(jnp.float32)

    convw = conv_out_size(conv_out_size(conv_out_size(w)))
    convh = conv_out_size(conv_out_size(conv_out_size(h)))
    lin_in = convw * convh * 32

    p = {}
    for idx, (cin, cout) in enumerate([(4, 16), (16, 32), (32, 32)], start=1):
        kw, kb, kg, kbeta, km = jax.random.split(ks[idx], 5)
        p[f"conv{idx}_w"] = nrm(kw, (cout, cin, 5, 5))
        p[f"conv{idx}_b"] = nrm(kb, (cout,))
        p[f"bn{idx}_gamma"] = 1.0 + nrm(kg, (cout,))
        p[f"bn{idx}_beta"] = nrm(kbeta, (cout,))
        p[f"bn{idx}_mean"] = nrm(km, (cout,))
        p[f"bn{idx}_var"] = 1.0 + jnp.abs(nrm(ks[idx + 8], (cout,)))
    p["fc_w"] = nrm(ks[6], (512, lin_in))
    p["fc_b"] = nrm(ks[7], (512,))
    p["head_w"] = nrm(ks[12], (action_shape, 512))
    p["head_b"] = nrm(ks[13], (action_shape,))
    return p


if __name__ == "__main__":
    key = jax.random.PRNGKey(0)

    # --- test 1: B=2, 30x30 input (smallest size whose conv stack ends 1x1) --
    B, H, W, A = 2, 30, 30, 6
    k1, k2, key = jax.random.split(key, 3)
    x = jax.random.normal(k1, (B, H, W, 4), dtype=jnp.float32)
    params = init_params(H, W, A, k2)
    prep = prepare_params(params, H, W, A, batch_tile=min(B, 8))
    out, state = dqn_forward_pallas(x, prep, state=None)
    out = jax.block_until_ready(out)
    assert out.shape == (B, A), out.shape
    assert state is None
    ref = jax.block_until_ready(dqn_forward_ref(x, params))
    assert jnp.allclose(out, ref, rtol=1e-4, atol=1e-4), (
        float(jnp.max(jnp.abs(out - ref))))

    # --- test 2: larger batch (exercises the parallel batch grid + padding)
    #     and a >1x1 conv output (exercises the fc flatten-order handling) ----
    B2, H2, W2, A2 = 9, 40, 40, 5
    k3, k4 = jax.random.split(key)
    x2 = jax.random.normal(k3, (B2, H2, W2, 4), dtype=jnp.float32)
    params2 = init_params(H2, W2, A2, k4)
    prep2 = prepare_params(params2, H2, W2, A2, batch_tile=8)
    out2, _ = dqn_forward_pallas(x2, prep2, state=None)
    out2 = jax.block_until_ready(out2)
    assert out2.shape == (B2, A2), out2.shape
    ref2 = jax.block_until_ready(dqn_forward_ref(x2, params2))
    assert jnp.allclose(out2, ref2, rtol=1e-4, atol=1e-4), (
        float(jnp.max(jnp.abs(out2 - ref2))))

    print("KERNEL_OK")
</pallas_src>

<mosaic_0001>
module attributes {stable_mosaic.version = 11 : i64} {
  func.func @_dqn_kernel(%arg0: i32, %arg1: memref<60x120xf32, #tpu.memory_space<vmem>>, %arg2: memref<5x26x60xf32, #tpu.memory_space<vmem>>, %arg3: memref<5x120x208xf32, #tpu.memory_space<vmem>>, %arg4: memref<1x208xf32, #tpu.memory_space<vmem>>, %arg5: memref<1x208xf32, #tpu.memory_space<vmem>>, %arg6: memref<5x10x26xf32, #tpu.memory_space<vmem>>, %arg7: memref<5x208x160xf32, #tpu.memory_space<vmem>>, %arg8: memref<1x160xf32, #tpu.memory_space<vmem>>, %arg9: memref<1x160xf32, #tpu.memory_space<vmem>>, %arg10: memref<5x2x10xf32, #tpu.memory_space<vmem>>, %arg11: memref<5x160x32xf32, #tpu.memory_space<vmem>>, %arg12: memref<1x32xf32, #tpu.memory_space<vmem>>, %arg13: memref<1x32xf32, #tpu.memory_space<vmem>>, %arg14: memref<1x2x2xf32, #tpu.memory_space<vmem>>, %arg15: memref<1x32x512xf32, #tpu.memory_space<vmem>>, %arg16: memref<1x512xf32, #tpu.memory_space<vmem>>, %arg17: memref<512x6xf32, #tpu.memory_space<vmem>>, %arg18: memref<1x6xf32, #tpu.memory_space<vmem>>, %arg19: memref<2x6xf32, #tpu.memory_space<vmem>>) attributes {dimension_semantics = [#tpu.dimension_semantics<parallel>], iteration_bounds = array<i64: 1>, scalar_prefetch = 0 : i64, scratch_operands = 0 : i64, tpu.core_type = #tpu.core_type<tc>, window_params = [{transform_indices = @transform_0, window_bounds = array<i64: 60, 120>}, {pipeline_mode = #tpu.pipeline_mode<synchronous>, transform_indices = @transform_1, window_bounds = array<i64: 5, 26, 60>}, {pipeline_mode = #tpu.pipeline_mode<synchronous>, transform_indices = @transform_2, window_bounds = array<i64: 5, 120, 208>}, {pipeline_mode = #tpu.pipeline_mode<synchronous>, transform_indices = @transform_3, window_bounds = array<i64: 1, 208>}, {pipeline_mode = #tpu.pipeline_mode<synchronous>, transform_indices = @transform_4, window_bounds = array<i64: 1, 208>}, {pipeline_mode = #tpu.pipeline_mode<synchronous>, transform_indices = @transform_5, window_bounds = array<i64: 5, 10, 26>}, {pipeline_mode = #tpu.pipeline_mode<synchronous>, transform_indices = @transform_6, window_bounds = array<i64: 5, 208, 160>}, {pipeline_mode = #tpu.pipeline_mode<synchronous>, transform_indices = @transform_7, window_bounds = array<i64: 1, 160>}, {pipeline_mode = #tpu.pipeline_mode<synchronous>, transform_indices = @transform_8, window_bounds = array<i64: 1, 160>}, {pipeline_mode = #tpu.pipeline_mode<synchronous>, transform_indices = @transform_9, window_bounds = array<i64: 5, 2, 10>}, {pipeline_mode = #tpu.pipeline_mode<synchronous>, transform_indices = @transform_10, window_bounds = array<i64: 5, 160, 32>}, {pipeline_mode = #tpu.pipeline_mode<synchronous>, transform_indices = @transform_11, window_bounds = array<i64: 1, 32>}, {pipeline_mode = #tpu.pipeline_mode<synchronous>, transform_indices = @transform_12, window_bounds = array<i64: 1, 32>}, {pipeline_mode = #tpu.pipeline_mode<synchronous>, transform_indices = @transform_13, window_bounds = array<i64: 1, 2, 2>}, {pipeline_mode = #tpu.pipeline_mode<synchronous>, transform_indices = @transform_14, window_bounds = array<i64: 1, 32, 512>}, {pipeline_mode = #tpu.pipeline_mode<synchronous>, transform_indices = @transform_15, window_bounds = array<i64: 1, 512>}, {pipeline_mode = #tpu.pipeline_mode<synchronous>, transform_indices = @transform_16, window_bounds = array<i64: 512, 6>}, {pipeline_mode = #tpu.pipeline_mode<synchronous>, transform_indices = @transform_17, window_bounds = array<i64: 1, 6>}, {transform_indices = @transform_18, window_bounds = array<i64: 2, 6>}]} {
    %c0 = arith.constant 0 : index
    %c0_0 = arith.constant 0 : index
    %0 = vector.load %arg1[%c0, %c0_0] : memref<60x120xf32, #tpu.memory_space<vmem>>, vector<60x120xf32>
    %c0_1 = arith.constant 0 : index
    %c0_2 = arith.constant 0 : index
    %c0_3 = arith.constant 0 : index
    %1 = vector.load %arg2[%c0_1, %c0_2, %c0_3] : memref<5x26x60xf32, #tpu.memory_space<vmem>>, vector<1x26x60xf32>
    %2 = vector.shape_cast %1 : vector<1x26x60xf32> to vector<26x60xf32>
    %cst = arith.constant dense<0.000000e+00> : vector<26x120xf32>
    %3 = tpu.matmul %2, %0, %cst {dimension_numbers = #tpu.dot_dimension_numbers<[1], [0], [0], [1], [0, 0, 1, 1], [], []>} : vector<26x60xf32>, vector<60x120xf32>, vector<26x120xf32> -> vector<26x120xf32>
    %c0_4 = arith.constant 0 : index
    %c0_5 = arith.constant 0 : index
    %c0_6 = arith.constant 0 : index
    %4 = vector.load %arg3[%c0_4, %c0_5, %c0_6] : memref<5x120x208xf32, #tpu.memory_space<vmem>>, vector<1x120x208xf32>
    %5 = vector.shape_cast %4 : vector<1x120x208xf32> to vector<120x208xf32>
    %cst_7 = arith.constant dense<0.000000e+00> : vector<26x208xf32>
    %6 = tpu.matmul %3, %5, %cst_7 {dimension_numbers = #tpu.dot_dimension_numbers<[1], [0], [0], [1], [0, 0, 1, 1], [], []>} : vector<26x120xf32>, vector<120x208xf32>, vector<26x208xf32> -> vector<26x208xf32>
    %c1 = arith.constant 1 : index
    %c0_8 = arith.constant 0 : index
    %c0_9 = arith.constant 0 : index
    %7 = vector.load %arg2[%c1, %c0_8, %c0_9] : memref<5x26x60xf32, #tpu.memory_space<vmem>>, vector<1x26x60xf32>
    %8 = vector.shape_cast %7 : vector<1x26x60xf32> to vector<26x60xf32>
    %cst_10 = arith.constant dense<0.000000e+00> : vector<26x120xf32>
    %9 = tpu.matmul %8, %0, %cst_10 {dimension_numbers = #tpu.dot_dimension_numbers<[1], [0], [0], [1], [0, 0, 1, 1], [], []>} : vector<26x60xf32>, vector<60x120xf32>, vector<26x120xf32> -> vector<26x120xf32>
    %c1_11 = arith.constant 1 : index
    %c0_12 = arith.constant 0 : index
    %c0_13 = arith.constant 0 : index
    %10 = vector.load %arg3[%c1_11, %c0_12, %c0_13] : memref<5x120x208xf32, #tpu.memory_space<vmem>>, vector<1x120x208xf32>
    %11 = vector.shape_cast %10 : vector<1x120x208xf32> to vector<120x208xf32>
    %cst_14 = arith.constant dense<0.000000e+00> : vector<26x208xf32>
    %12 = tpu.matmul %9, %11, %cst_14 {dimension_numbers = #tpu.dot_dimension_numbers<[1], [0], [0], [1], [0, 0, 1, 1], [], []>} : vector<26x120xf32>, vector<120x208xf32>, vector<26x208xf32> -> vector<26x208xf32>
    %13 = arith.addf %6, %12 : vector<26x208xf32>
    %c2 = arith.constant 2 : index
    %c0_15 = arith.constant 0 : index
    %c0_16 = arith.constant 0 : index
    %14 = vector.load %arg2[%c2, %c0_15, %c0_16] : memref<5x26x60xf32, #tpu.memory_space<vmem>>, vector<1x26x60xf32>
    %15 = vector.shape_cast %14 : vector<1x26x60xf32> to vector<26x60xf32>
    %cst_17 = arith.constant dense<0.000000e+00> : vector<26x120xf32>
    %16 = tpu.matmul %15, %0, %cst_17 {dimension_numbers = #tpu.dot_dimension_numbers<[1], [0], [0], [1], [0, 0, 1, 1], [], []>} : vector<26x60xf32>, vector<60x120xf32>, vector<26x120xf32> -> vector<26x120xf32>
    %c2_18 = arith.constant 2 : index
    %c0_19 = arith.constant 0 : index
    %c0_20 = arith.constant 0 : index
    %17 = vector.load %arg3[%c2_18, %c0_19, %c0_20] : memref<5x120x208xf32, #tpu.memory_space<vmem>>, vector<1x120x208xf32>
    %18 = vector.shape_cast %17 : vector<1x120x208xf32> to vector<120x208xf32>
    %cst_21 = arith.constant dense<0.000000e+00> : vector<26x208xf32>
    %19 = tpu.matmul %16, %18, %cst_21 {dimension_numbers = #tpu.dot_dimension_numbers<[1], [0], [0], [1], [0, 0, 1, 1], [], []>} : vector<26x120xf32>, vector<120x208xf32>, vector<26x208xf32> -> vector<26x208xf32>
    %20 = arith.addf %13, %19 : vector<26x208xf32>
    %c3 = arith.constant 3 : index
    %c0_22 = arith.constant 0 : index
    %c0_23 = arith.constant 0 : index
    %21 = vector.load %arg2[%c3, %c0_22, %c0_23] : memref<5x26x60xf32, #tpu.memory_space<vmem>>, vector<1x26x60xf32>
    %22 = vector.shape_cast %21 : vector<1x26x60xf32> to vector<26x60xf32>
    %cst_24 = arith.constant dense<0.000000e+00> : vector<26x120xf32>
    %23 = tpu.matmul %22, %0, %cst_24 {dimension_numbers = #tpu.dot_dimension_numbers<[1], [0], [0], [1], [0, 0, 1, 1], [], []>} : vector<26x60xf32>, vector<60x120xf32>, vector<26x120xf32> -> vector<26x120xf32>
    %c3_25 = arith.constant 3 : index
    %c0_26 = arith.constant 0 : index
    %c0_27 = arith.constant 0 : index
    %24 = vector.load %arg3[%c3_25, %c0_26, %c0_27] : memref<5x120x208xf32, #tpu.memory_space<vmem>>, vector<1x120x208xf32>
    %25 = vector.shape_cast %24 : vector<1x120x208xf32> to vector<120x208xf32>
    %cst_28 = arith.constant dense<0.000000e+00> : vector<26x208xf32>
    %26 = tpu.matmul %23, %25, %cst_28 {dimension_numbers = #tpu.dot_dimension_numbers<[1], [0], [0], [1], [0, 0, 1, 1], [], []>} : vector<26x120xf32>, vector<120x208xf32>, vector<26x208xf32> -> vector<26x208xf32>
    %27 = arith.addf %20, %26 : vector<26x208xf32>
    %c4 = arith.constant 4 : index
    %c0_29 = arith.constant 0 : index
    %c0_30 = arith.constant 0 : index
    %28 = vector.load %arg2[%c4, %c0_29, %c0_30] : memref<5x26x60xf32, #tpu.memory_space<vmem>>, vector<1x26x60xf32>
    %29 = vector.shape_cast %28 : vector<1x26x60xf32> to vector<26x60xf32>
    %cst_31 = arith.constant dense<0.000000e+00> : vector<26x120xf32>
    %30 = tpu.matmul %29, %0, %cst_31 {dimension_numbers = #tpu.dot_dimension_numbers<[1], [0], [0], [1], [0, 0, 1, 1], [], []>} : vector<26x60xf32>, vector<60x120xf32>, vector<26x120xf32> -> vector<26x120xf32>
    %c4_32 = arith.constant 4 : index
    %c0_33 = arith.constant 0 : index
    %c0_34 = arith.constant 0 : index
    %31 = vector.load %arg3[%c4_32, %c0_33, %c0_34] : memref<5x120x208xf32, #tpu.memory_space<vmem>>, vector<1x120x208xf32>
    %32 = vector.shape_cast %31 : vector<1x120x208xf32> to vector<120x208xf32>
    %cst_35 = arith.constant dense<0.000000e+00> : vector<26x208xf32>
    %33 = tpu.matmul %30, %32, %cst_35 {dimension_numbers = #tpu.dot_dimension_numbers<[1], [0], [0], [1], [0, 0, 1, 1], [], []>} : vector<26x120xf32>, vector<120x208xf32>, vector<26x208xf32> -> vector<26x208xf32>
    %34 = arith.addf %27, %33 : vector<26x208xf32>
    %c0_36 = arith.constant 0 : index
    %c0_37 = arith.constant 0 : index
    %35 = vector.load %arg4[%c0_36, %c0_37] : memref<1x208xf32, #tpu.memory_space<vmem>>, vector<1x208xf32>
    %36 = vector.broadcast %35 : vector<1x208xf32> to vector<26x208xf32>
    %37 = arith.mulf %34, %36 : vector<26x208xf32>
    %c0_38 = arith.constant 0 : index
    %c0_39 = arith.constant 0 : index
    %38 = vector.load %arg5[%c0_38, %c0_39] : memref<1x208xf32, #tpu.memory_space<vmem>>, vector<1x208xf32>
    %39 = vector.broadcast %38 : vector<1x208xf32> to vector<26x208xf32>
    %40 = arith.addf %37, %39 : vector<26x208xf32>
    %cst_40 = arith.constant 0.000000e+00 : f32
    %41 = vector.broadcast %cst_40 : f32 to vector<26x208xf32>
    %42 = arith.maximumf %40, %41 : vector<26x208xf32>
    %c0_41 = arith.constant 0 : index
    %c0_42 = arith.constant 0 : index
    %c0_43 = arith.constant 0 : index
    %43 = vector.load %arg6[%c0_41, %c0_42, %c0_43] : memref<5x10x26xf32, #tpu.memory_space<vmem>>, vector<1x10x26xf32>
    %44 = vector.shape_cast %43 : vector<1x10x26xf32> to vector<10x26xf32>
    %cst_44 = arith.constant dense<0.000000e+00> : vector<10x208xf32>
    %45 = tpu.matmul %44, %42, %cst_44 {dimension_numbers = #tpu.dot_dimension_numbers<[1], [0], [0], [1], [0, 0, 1, 1], [], []>} : vector<10x26xf32>, vector<26x208xf32>, vector<10x208xf32> -> vector<10x208xf32>
    %c0_45 = arith.constant 0 : index
    %c0_46 = arith.constant 0 : index
    %c0_47 = arith.constant 0 : index
    %46 = vector.load %arg7[%c0_45, %c0_46, %c0_47] : memref<5x208x160xf32, #tpu.memory_space<vmem>>, vector<1x208x160xf32>
    %47 = vector.shape_cast %46 : vector<1x208x160xf32> to vector<208x160xf32>
    %cst_48 = arith.constant dense<0.000000e+00> : vector<10x160xf32>
    %48 = tpu.matmul %45, %47, %cst_48 {dimension_numbers = #tpu.dot_dimension_numbers<[1], [0], [0], [1], [0, 0, 1, 1], [], []>} : vector<10x208xf32>, vector<208x160xf32>, vector<10x160xf32> -> vector<10x160xf32>
    %c1_49 = arith.constant 1 : index
    %c0_50 = arith.constant 0 : index
    %c0_51 = arith.constant 0 : index
    %49 = vector.load %arg6[%c1_49, %c0_50, %c0_51] : memref<5x10x26xf32, #tpu.memory_space<vmem>>, vector<1x10x26xf32>
    %50 = vector.shape_cast %49 : vector<1x10x26xf32> to vector<10x26xf32>
    %cst_52 = arith.constant dense<0.000000e+00> : vector<10x208xf32>
    %51 = tpu.matmul %50, %42, %cst_52 {dimension_numbers = #tpu.dot_dimension_numbers<[1], [0], [0], [1], [0, 0, 1, 1], [], []>} : vector<10x26xf32>, vector<26x208xf32>, vector<10x208xf32> -> vector<10x208xf32>
    %c1_53 = arith.constant 1 : index
    %c0_54 = arith.constant 0 : index
    %c0_55 = arith.constant 0 : index
    %52 = vector.load %arg7[%c1_53, %c0_54, %c0_55] : memref<5x208x160xf32, #tpu.memory_space<vmem>>, vector<1x208x160xf32>
    %53 = vector.shape_cast %52 : vector<1x208x160xf32> to vector<208x160xf32>
    %cst_56 = arith.constant dense<0.000000e+00> : vector<10x160xf32>
    %54 = tpu.matmul %51, %53, %cst_56 {dimension_numbers = #tpu.dot_dimension_numbers<[1], [0], [0], [1], [0, 0, 1, 1], [], []>} : vector<10x208xf32>, vector<208x160xf32>, vector<10x160xf32> -> vector<10x160xf32>
    %55 = arith.addf %48, %54 : vector<10x160xf32>
    %c2_57 = arith.constant 2 : index
    %c0_58 = arith.constant 0 : index
    %c0_59 = arith.constant 0 : index
    %56 = vector.load %arg6[%c2_57, %c0_58, %c0_59] : memref<5x10x26xf32, #tpu.memory_space<vmem>>, vector<1x10x26xf32>
    %57 = vector.shape_cast %56 : vector<1x10x26xf32> to vector<10x26xf32>
    %cst_60 = arith.constant dense<0.000000e+00> : vector<10x208xf32>
    %58 = tpu.matmul %57, %42, %cst_60 {dimension_numbers = #tpu.dot_dimension_numbers<[1], [0], [0], [1], [0, 0, 1, 1], [], []>} : vector<10x26xf32>, vector<26x208xf32>, vector<10x208xf32> -> vector<10x208xf32>
    %c2_61 = arith.constant 2 : index
    %c0_62 = arith.constant 0 : index
    %c0_63 = arith.constant 0 : index
    %59 = vector.load %arg7[%c2_61, %c0_62, %c0_63] : memref<5x208x160xf32, #tpu.memory_space<vmem>>, vector<1x208x160xf32>
    %60 = vector.shape_cast %59 : vector<1x208x160xf32> to vector<208x160xf32>
    %cst_64 = arith.constant dense<0.000000e+00> : vector<10x160xf32>
    %61 = tpu.matmul %58, %60, %cst_64 {dimension_numbers = #tpu.dot_dimension_numbers<[1], [0], [0], [1], [0, 0, 1, 1], [], []>} : vector<10x208xf32>, vector<208x160xf32>, vector<10x160xf32> -> vector<10x160xf32>
    %62 = arith.addf %55, %61 : vector<10x160xf32>
    %c3_65 = arith.constant 3 : index
    %c0_66 = arith.constant 0 : index
    %c0_67 = arith.constant 0 : index
    %63 = vector.load %arg6[%c3_65, %c0_66, %c0_67] : memref<5x10x26xf32, #tpu.memory_space<vmem>>, vector<1x10x26xf32>
    %64 = vector.shape_cast %63 : vector<1x10x26xf32> to vector<10x26xf32>
    %cst_68 = arith.constant dense<0.000000e+00> : vector<10x208xf32>
    %65 = tpu.matmul %64, %42, %cst_68 {dimension_numbers = #tpu.dot_dimension_numbers<[1], [0], [0], [1], [0, 0, 1, 1], [], []>} : vector<10x26xf32>, vector<26x208xf32>, vector<10x208xf32> -> vector<10x208xf32>
    %c3_69 = arith.constant 3 : index
    %c0_70 = arith.constant 0 : index
    %c0_71 = arith.constant 0 : index
    %66 = vector.load %arg7[%c3_69, %c0_70, %c0_71] : memref<5x208x160xf32, #tpu.memory_space<vmem>>, vector<1x208x160xf32>
    %67 = vector.shape_cast %66 : vector<1x208x160xf32> to vector<208x160xf32>
    %cst_72 = arith.constant dense<0.000000e+00> : vector<10x160xf32>
    %68 = tpu.matmul %65, %67, %cst_72 {dimension_numbers = #tpu.dot_dimension_numbers<[1], [0], [0], [1], [0, 0, 1, 1], [], []>} : vector<10x208xf32>, vector<208x160xf32>, vector<10x160xf32> -> vector<10x160xf32>
    %69 = arith.addf %62, %68 : vector<10x160xf32>
    %c4_73 = arith.constant 4 : index
    %c0_74 = arith.constant 0 : index
    %c0_75 = arith.constant 0 : index
    %70 = vector.load %arg6[%c4_73, %c0_74, %c0_75] : memref<5x10x26xf32, #tpu.memory_space<vmem>>, vector<1x10x26xf32>
    %71 = vector.shape_cast %70 : vector<1x10x26xf32> to vector<10x26xf32>
    %cst_76 = arith.constant dense<0.000000e+00> : vector<10x208xf32>
    %72 = tpu.matmul %71, %42, %cst_76 {dimension_numbers = #tpu.dot_dimension_numbers<[1], [0], [0], [1], [0, 0, 1, 1], [], []>} : vector<10x26xf32>, vector<26x208xf32>, vector<10x208xf32> -> vector<10x208xf32>
    %c4_77 = arith.constant 4 : index
    %c0_78 = arith.constant 0 : index
    %c0_79 = arith.constant 0 : index
    %73 = vector.load %arg7[%c4_77, %c0_78, %c0_79] : memref<5x208x160xf32, #tpu.memory_space<vmem>>, vector<1x208x160xf32>
    %74 = vector.shape_cast %73 : vector<1x208x160xf32> to vector<208x160xf32>
    %cst_80 = arith.constant dense<0.000000e+00> : vector<10x160xf32>
    %75 = tpu.matmul %72, %74, %cst_80 {dimension_numbers = #tpu.dot_dimension_numbers<[1], [0], [0], [1], [0, 0, 1, 1], [], []>} : vector<10x208xf32>, vector<208x160xf32>, vector<10x160xf32> -> vector<10x160xf32>
    %76 = arith.addf %69, %75 : vector<10x160xf32>
    %c0_81 = arith.constant 0 : index
    %c0_82 = arith.constant 0 : index
    %77 = vector.load %arg8[%c0_81, %c0_82] : memref<1x160xf32, #tpu.memory_space<vmem>>, vector<1x160xf32>
    %78 = vector.broadcast %77 : vector<1x160xf32> to vector<10x160xf32>
    %79 = arith.mulf %76, %78 : vector<10x160xf32>
    %c0_83 = arith.constant 0 : index
    %c0_84 = arith.constant 0 : index
    %80 = vector.load %arg9[%c0_83, %c0_84] : memref<1x160xf32, #tpu.memory_space<vmem>>, vector<1x160xf32>
    %81 = vector.broadcast %80 : vector<1x160xf32> to vector<10x160xf32>
    %82 = arith.addf %79, %81 : vector<10x160xf32>
    %cst_85 = arith.constant 0.000000e+00 : f32
    %83 = vector.broadcast %cst_85 : f32 to vector<10x160xf32>
    %84 = arith.maximumf %82, %83 : vector<10x160xf32>
    %c0_86 = arith.constant 0 : index
    %c0_87 = arith.constant 0 : index
    %c0_88 = arith.constant 0 : index
    %85 = vector.load %arg10[%c0_86, %c0_87, %c0_88] : memref<5x2x10xf32, #tpu.memory_space<vmem>>, vector<1x2x10xf32>
    %86 = vector.shape_cast %85 : vector<1x2x10xf32> to vector<2x10xf32>
    %cst_89 = arith.constant dense<0.000000e+00> : vector<2x160xf32>
    %87 = tpu.matmul %86, %84, %cst_89 {dimension_numbers = #tpu.dot_dimension_numbers<[1], [0], [0], [1], [0, 0, 1, 1], [], []>} : vector<2x10xf32>, vector<10x160xf32>, vector<2x160xf32> -> vector<2x160xf32>
    %c0_90 = arith.constant 0 : index
    %c0_91 = arith.constant 0 : index
    %c0_92 = arith.constant 0 : index
    %88 = vector.load %arg11[%c0_90, %c0_91, %c0_92] : memref<5x160x32xf32, #tpu.memory_space<vmem>>, vector<1x160x32xf32>
    %89 = vector.shape_cast %88 : vector<1x160x32xf32> to vector<160x32xf32>
    %cst_93 = arith.constant dense<0.000000e+00> : vector<2x32xf32>
    %90 = tpu.matmul %87, %89, %cst_93 {dimension_numbers = #tpu.dot_dimension_numbers<[1], [0], [0], [1], [0, 0, 1, 1], [], []>} : vector<2x160xf32>, vector<160x32xf32>, vector<2x32xf32> -> vector<2x32xf32>
    %c1_94 = arith.constant 1 : index
    %c0_95 = arith.constant 0 : index
    %c0_96 = arith.constant 0 : index
    %91 = vector.load %arg10[%c1_94, %c0_95, %c0_96] : memref<5x2x10xf32, #tpu.memory_space<vmem>>, vector<1x2x10xf32>
    %92 = vector.shape_cast %91 : vector<1x2x10xf32> to vector<2x10xf32>
    %cst_97 = arith.constant dense<0.000000e+00> : vector<2x160xf32>
    %93 = tpu.matmul %92, %84, %cst_97 {dimension_numbers = #tpu.dot_dimension_numbers<[1], [0], [0], [1], [0, 0, 1, 1], [], []>} : vector<2x10xf32>, vector<10x160xf32>, vector<2x160xf32> -> vector<2x160xf32>
    %c1_98 = arith.constant 1 : index
    %c0_99 = arith.constant 0 : index
    %c0_100 = arith.constant 0 : index
    %94 = vector.load %arg11[%c1_98, %c0_99, %c0_100] : memref<5x160x32xf32, #tpu.memory_space<vmem>>, vector<1x160x32xf32>
    %95 = vector.shape_cast %94 : vector<1x160x32xf32> to vector<160x32xf32>
    %cst_101 = arith.constant dense<0.000000e+00> : vector<2x32xf32>
    %96 = tpu.matmul %93, %95, %cst_101 {dimension_numbers = #tpu.dot_dimension_numbers<[1], [0], [0], [1], [0, 0, 1, 1], [], []>} : vector<2x160xf32>, vector<160x32xf32>, vector<2x32xf32> -> vector<2x32xf32>
    %97 = arith.addf %90, %96 : vector<2x32xf32>
    %c2_102 = arith.constant 2 : index
    %c0_103 = arith.constant 0 : index
    %c0_104 = arith.constant 0 : index
    %98 = vector.load %arg10[%c2_102, %c0_103, %c0_104] : memref<5x2x10xf32, #tpu.memory_space<vmem>>, vector<1x2x10xf32>
    %99 = vector.shape_cast %98 : vector<1x2x10xf32> to vector<2x10xf32>
    %cst_105 = arith.constant dense<0.000000e+00> : vector<2x160xf32>
    %100 = tpu.matmul %99, %84, %cst_105 {dimension_numbers = #tpu.dot_dimension_numbers<[1], [0], [0], [1], [0, 0, 1, 1], [], []>} : vector<2x10xf32>, vector<10x160xf32>, vector<2x160xf32> -> vector<2x160xf32>
    %c2_106 = arith.constant 2 : index
    %c0_107 = arith.constant 0 : index
    %c0_108 = arith.constant 0 : index
    %101 = vector.load %arg11[%c2_106, %c0_107, %c0_108] : memref<5x160x32xf32, #tpu.memory_space<vmem>>, vector<1x160x32xf32>
    %102 = vector.shape_cast %101 : vector<1x160x32xf32> to vector<160x32xf32>
    %cst_109 = arith.constant dense<0.000000e+00> : vector<2x32xf32>
    %103 = tpu.matmul %100, %102, %cst_109 {dimension_numbers = #tpu.dot_dimension_numbers<[1], [0], [0], [1], [0, 0, 1, 1], [], []>} : vector<2x160xf32>, vector<160x32xf32>, vector<2x32xf32> -> vector<2x32xf32>
    %104 = arith.addf %97, %103 : vector<2x32xf32>
    %c3_110 = arith.constant 3 : index
    %c0_111 = arith.constant 0 : index
    %c0_112 = arith.constant 0 : index
    %105 = vector.load %arg10[%c3_110, %c0_111, %c0_112] : memref<5x2x10xf32, #tpu.memory_space<vmem>>, vector<1x2x10xf32>
    %106 = vector.shape_cast %105 : vector<1x2x10xf32> to vector<2x10xf32>
    %cst_113 = arith.constant dense<0.000000e+00> : vector<2x160xf32>
    %107 = tpu.matmul %106, %84, %cst_113 {dimension_numbers = #tpu.dot_dimension_numbers<[1], [0], [0], [1], [0, 0, 1, 1], [], []>} : vector<2x10xf32>, vector<10x160xf32>, vector<2x160xf32> -> vector<2x160xf32>
    %c3_114 = arith.constant 3 : index
    %c0_115 = arith.constant 0 : index
    %c0_116 = arith.constant 0 : index
    %108 = vector.load %arg11[%c3_114, %c0_115, %c0_116] : memref<5x160x32xf32, #tpu.memory_space<vmem>>, vector<1x160x32xf32>
    %109 = vector.shape_cast %108 : vector<1x160x32xf32> to vector<160x32xf32>
    %cst_117 = arith.constant dense<0.000000e+00> : vector<2x32xf32>
    %110 = tpu.matmul %107, %109, %cst_117 {dimension_numbers = #tpu.dot_dimension_numbers<[1], [0], [0], [1], [0, 0, 1, 1], [], []>} : vector<2x160xf32>, vector<160x32xf32>, vector<2x32xf32> -> vector<2x32xf32>
    %111 = arith.addf %104, %110 : vector<2x32xf32>
    %c4_118 = arith.constant 4 : index
    %c0_119 = arith.constant 0 : index
    %c0_120 = arith.constant 0 : index
    %112 = vector.load %arg10[%c4_118, %c0_119, %c0_120] : memref<5x2x10xf32, #tpu.memory_space<vmem>>, vector<1x2x10xf32>
    %113 = vector.shape_cast %112 : vector<1x2x10xf32> to vector<2x10xf32>
    %cst_121 = arith.constant dense<0.000000e+00> : vector<2x160xf32>
    %114 = tpu.matmul %113, %84, %cst_121 {dimension_numbers = #tpu.dot_dimension_numbers<[1], [0], [0], [1], [0, 0, 1, 1], [], []>} : vector<2x10xf32>, vector<10x160xf32>, vector<2x160xf32> -> vector<2x160xf32>
    %c4_122 = arith.constant 4 : index
    %c0_123 = arith.constant 0 : index
    %c0_124 = arith.constant 0 : index
    %115 = vector.load %arg11[%c4_122, %c0_123, %c0_124] : memref<5x160x32xf32, #tpu.memory_space<vmem>>, vector<1x160x32xf32>
    %116 = vector.shape_cast %115 : vector<1x160x32xf32> to vector<160x32xf32>
    %cst_125 = arith.constant dense<0.000000e+00> : vector<2x32xf32>
    %117 = tpu.matmul %114, %116, %cst_125 {dimension_numbers = #tpu.dot_dimension_numbers<[1], [0], [0], [1], [0, 0, 1, 1], [], []>} : vector<2x160xf32>, vector<160x32xf32>, vector<2x32xf32> -> vector<2x32xf32>
    %118 = arith.addf %111, %117 : vector<2x32xf32>
    %c0_126 = arith.constant 0 : index
    %c0_127 = arith.constant 0 : index
    %119 = vector.load %arg12[%c0_126, %c0_127] : memref<1x32xf32, #tpu.memory_space<vmem>>, vector<1x32xf32>
    %120 = vector.broadcast %119 : vector<1x32xf32> to vector<2x32xf32>
    %121 = arith.mulf %118, %120 : vector<2x32xf32>
    %c0_128 = arith.constant 0 : index
    %c0_129 = arith.constant 0 : index
    %122 = vector.load %arg13[%c0_128, %c0_129] : memref<1x32xf32, #tpu.memory_space<vmem>>, vector<1x32xf32>
    %123 = vector.broadcast %122 : vector<1x32xf32> to vector<2x32xf32>
    %124 = arith.addf %121, %123 : vector<2x32xf32>
    %cst_130 = arith.constant 0.000000e+00 : f32
    %125 = vector.broadcast %cst_130 : f32 to vector<2x32xf32>
    %126 = arith.maximumf %124, %125 : vector<2x32xf32>
    %c0_131 = arith.constant 0 : index
    %c0_132 = arith.constant 0 : index
    %c0_133 = arith.constant 0 : index
    %127 = vector.load %arg14[%c0_131, %c0_132, %c0_133] : memref<1x2x2xf32, #tpu.memory_space<vmem>>, vector<1x2x2xf32>
    %128 = vector.shape_cast %127 : vector<1x2x2xf32> to vector<2x2xf32>
    %cst_134 = arith.constant dense<0.000000e+00> : vector<2x32xf32>
    %129 = tpu.matmul %128, %126, %cst_134 {dimension_numbers = #tpu.dot_dimension_numbers<[1], [0], [0], [1], [0, 0, 1, 1], [], []>} : vector<2x2xf32>, vector<2x32xf32>, vector<2x32xf32> -> vector<2x32xf32>
    %c0_135 = arith.constant 0 : index
    %c0_136 = arith.constant 0 : index
    %c0_137 = arith.constant 0 : index
    %130 = vector.load %arg15[%c0_135, %c0_136, %c0_137] : memref<1x32x512xf32, #tpu.memory_space<vmem>>, vector<1x32x512xf32>
    %131 = vector.shape_cast %130 : vector<1x32x512xf32> to vector<32x512xf32>
    %cst_138 = arith.constant dense<0.000000e+00> : vector<2x512xf32>
    %132 = tpu.matmul %129, %131, %cst_138 {dimension_numbers = #tpu.dot_dimension_numbers<[1], [0], [0], [1], [0, 0, 1, 1], [], []>} : vector<2x32xf32>, vector<32x512xf32>, vector<2x512xf32> -> vector<2x512xf32>
    %c0_139 = arith.constant 0 : index
    %c0_140 = arith.constant 0 : index
    %133 = vector.load %arg16[%c0_139, %c0_140] : memref<1x512xf32, #tpu.memory_space<vmem>>, vector<1x512xf32>
    %134 = vector.broadcast %133 : vector<1x512xf32> to vector<2x512xf32>
    %135 = arith.addf %132, %134 : vector<2x512xf32>
    %c0_141 = arith.constant 0 : index
    %c0_142 = arith.constant 0 : index
    %136 = vector.load %arg17[%c0_141, %c0_142] : memref<512x6xf32, #tpu.memory_space<vmem>>, vector<512x6xf32>
    %cst_143 = arith.constant dense<0.000000e+00> : vector<2x6xf32>
    %137 = tpu.matmul %135, %136, %cst_143 {dimension_numbers = #tpu.dot_dimension_numbers<[1], [0], [0], [1], [0, 0, 1, 1], [], []>} : vector<2x512xf32>, vector<512x6xf32>, vector<2x6xf32> -> vector<2x6xf32>
    %c0_144 = arith.constant 0 : index
    %c0_145 = arith.constant 0 : index
    %138 = vector.load %arg18[%c0_144, %c0_145] : memref<1x6xf32, #tpu.memory_space<vmem>>, vector<1x6xf32>
    %139 = vector.broadcast %138 : vector<1x6xf32> to vector<2x6xf32>
    %140 = arith.addf %137, %139 : vector<2x6xf32>
    %c0_146 = arith.constant 0 : index
    %c0_147 = arith.constant 0 : index
    %141 = vector.load %arg19[%c0_146, %c0_147] : memref<2x6xf32, #tpu.memory_space<vmem>>, vector<2x6xf32>
    tpu.vector_store %arg19[%c0_146, %c0_147], %140 {strides = array<i32>} : memref<2x6xf32, #tpu.memory_space<vmem>>, vector<2x6xf32>,
    return
  }
  func.func @transform_0(%arg0: i32) -> (i32, i32) {
    %c0_i32 = arith.constant 0 : i32
    %c0_i32_0 = arith.constant 0 : i32
    return %arg0, %c0_i32 : i32, i32
  }
  func.func @transform_1(%arg0: i32) -> (i32, i32, i32) {
    %c0_i32 = arith.constant 0 : i32
    %c0_i32_0 = arith.constant 0 : i32
    %c0_i32_1 = arith.constant 0 : i32
    %c0_i32_2 = arith.constant 0 : i32
    return %c0_i32, %c0_i32_0, %c0_i32_1 : i32, i32, i32
  }
  func.func @transform_2(%arg0: i32) -> (i32, i32, i32) {
    %c0_i32 = arith.constant 0 : i32
    %c0_i32_0 = arith.constant 0 : i32
    %c0_i32_1 = arith.constant 0 : i32
    %c0_i32_2 = arith.constant 0 : i32
    return %c0_i32, %c0_i32_0, %c0_i32_1 : i32, i32, i32
  }
  func.func @transform_3(%arg0: i32) -> (i32, i32) {
    %c0_i32 = arith.constant 0 : i32
    %c0_i32_0 = arith.constant 0 : i32
    %c0_i32_1 = arith.constant 0 : i32
    return %c0_i32, %c0_i32_0 : i32, i32
  }
  func.func @transform_4(%arg0: i32) -> (i32, i32) {
    %c0_i32 = arith.constant 0 : i32
    %c0_i32_0 = arith.constant 0 : i32
    %c0_i32_1 = arith.constant 0 : i32
    return %c0_i32, %c0_i32_0 : i32, i32
  }
  func.func @transform_5(%arg0: i32) -> (i32, i32, i32) {
    %c0_i32 = arith.constant 0 : i32
    %c0_i32_0 = arith.constant 0 : i32
    %c0_i32_1 = arith.constant 0 : i32
    %c0_i32_2 = arith.constant 0 : i32
    return %c0_i32, %c0_i32_0, %c0_i32_1 : i32, i32, i32
  }
  func.func @transform_6(%arg0: i32) -> (i32, i32, i32) {
    %c0_i32 = arith.constant 0 : i32
    %c0_i32_0 = arith.constant 0 : i32
    %c0_i32_1 = arith.constant 0 : i32
    %c0_i32_2 = arith.constant 0 : i32
    return %c0_i32, %c0_i32_0, %c0_i32_1 : i32, i32, i32
  }
  func.func @transform_7(%arg0: i32) -> (i32, i32) {
    %c0_i32 = arith.constant 0 : i32
    %c0_i32_0 = arith.constant 0 : i32
    %c0_i32_1 = arith.constant 0 : i32
    return %c0_i32, %c0_i32_0 : i32, i32
  }
  func.func @transform_8(%arg0: i32) -> (i32, i32) {
    %c0_i32 = arith.constant 0 : i32
    %c0_i32_0 = arith.constant 0 : i32
    %c0_i32_1 = arith.constant 0 : i32
    return %c0_i32, %c0_i32_0 : i32, i32
  }
  func.func @transform_9(%arg0: i32) -> (i32, i32, i32) {
    %c0_i32 = arith.constant 0 : i32
    %c0_i32_0 = arith.constant 0 : i32
    %c0_i32_1 = arith.constant 0 : i32
    %c0_i32_2 = arith.constant 0 : i32
    return %c0_i32, %c0_i32_0, %c0_i32_1 : i32, i32, i32
  }
  func.func @transform_10(%arg0: i32) -> (i32, i32, i32) {
    %c0_i32 = arith.constant 0 : i32
    %c0_i32_0 = arith.constant 0 : i32
    %c0_i32_1 = arith.constant 0 : i32
    %c0_i32_2 = arith.constant 0 : i32
    return %c0_i32, %c0_i32_0, %c0_i32_1 : i32, i32, i32
  }
  func.func @transform_11(%arg0: i32) -> (i32, i32) {
    %c0_i32 = arith.constant 0 : i32
    %c0_i32_0 = arith.constant 0 : i32
    %c0_i32_1 = arith.constant 0 : i32
    return %c0_i32, %c0_i32_0 : i32, i32
  }
  func.func @transform_12(%arg0: i32) -> (i32, i32) {
    %c0_i32 = arith.constant 0 : i32
    %c0_i32_0 = arith.constant 0 : i32
    %c0_i32_1 = arith.constant 0 : i32
    return %c0_i32, %c0_i32_0 : i32, i32
  }
  func.func @transform_13(%arg0: i32) -> (i32, i32, i32) {
    %c0_i32 = arith.constant 0 : i32
    %c0_i32_0 = arith.constant 0 : i32
    %c0_i32_1 = arith.constant 0 : i32
    %c0_i32_2 = arith.constant 0 : i32
    return %c0_i32, %c0_i32_0, %c0_i32_1 : i32, i32, i32
  }
  func.func @transform_14(%arg0: i32) -> (i32, i32, i32) {
    %c0_i32 = arith.constant 0 : i32
    %c0_i32_0 = arith.constant 0 : i32
    %c0_i32_1 = arith.constant 0 : i32
    %c0_i32_2 = arith.constant 0 : i32
    return %c0_i32, %c0_i32_0, %c0_i32_1 : i32, i32, i32
  }
  func.func @transform_15(%arg0: i32) -> (i32, i32) {
    %c0_i32 = arith.constant 0 : i32
    %c0_i32_0 = arith.constant 0 : i32
    %c0_i32_1 = arith.constant 0 : i32
    return %c0_i32, %c0_i32_0 : i32, i32
  }
  func.func @transform_16(%arg0: i32) -> (i32, i32) {
    %c0_i32 = arith.constant 0 : i32
    %c0_i32_0 = arith.constant 0 : i32
    %c0_i32_1 = arith.constant 0 : i32
    return %c0_i32, %c0_i32_0 : i32, i32
  }
  func.func @transform_17(%arg0: i32) -> (i32, i32) {
    %c0_i32 = arith.constant 0 : i32
    %c0_i32_0 = arith.constant 0 : i32
    %c0_i32_1 = arith.constant 0 : i32
    return %c0_i32, %c0_i32_0 : i32, i32
  }
  func.func @transform_18(%arg0: i32) -> (i32, i32) {
    %c0_i32 = arith.constant 0 : i32
    %c0_i32_0 = arith.constant 0 : i32
    return %arg0, %c0_i32 : i32, i32
  }
}

</mosaic_0001>

<llo_original>
// kernel: tpu_custom_call.1
$region0: #{tpu_custom_call.1}
  #allocation0 [shape = 'u32[]', space=smem, size = 0x4, offset = 0x4, fixed_abs, tag = 'smem constant byte address 0x4 - core index']
  #allocation1 [shape = 'u32[144,128]{1,0:T(1,128)}', space=vmem, size = 0x12000, scoped, tag = 'internal scratch']
  %s0 = inlined_call_operand.vmem [shape: f32[60,120], index: 0, kind: input, shape index: {}]
  %s1 = inlined_call_operand.vmem [shape: f32[5,26,60], index: 1, kind: input, shape index: {}]
  %s2 = inlined_call_operand.vmem [shape: f32[5,120,208], index: 2, kind: input, shape index: {}]
  %s3 = inlined_call_operand.vmem [shape: f32[1,208], index: 3, kind: input, shape index: {}]
  %s4 = inlined_call_operand.vmem [shape: f32[1,208], index: 4, kind: input, shape index: {}]
  %s5 = inlined_call_operand.vmem [shape: f32[5,10,26], index: 5, kind: input, shape index: {}]
  %s6 = inlined_call_operand.vmem [shape: f32[5,208,160], index: 6, kind: input, shape index: {}]
  %s7 = inlined_call_operand.vmem [shape: f32[1,160], index: 7, kind: input, shape index: {}]
  %s8 = inlined_call_operand.vmem [shape: f32[1,160], index: 8, kind: input, shape index: {}]
  %s9 = inlined_call_operand.vmem [shape: f32[5,2,10], index: 9, kind: input, shape index: {}]
  %s10 = inlined_call_operand.vmem [shape: f32[5,160,32], index: 10, kind: input, shape index: {}]
  %s11 = inlined_call_operand.vmem [shape: f32[1,32], index: 11, kind: input, shape index: {}]
  %s12 = inlined_call_operand.vmem [shape: f32[1,32], index: 12, kind: input, shape index: {}]
  %s13 = inlined_call_operand.vmem [shape: f32[1,2,2], index: 13, kind: input, shape index: {}]
  %s14 = inlined_call_operand.vmem [shape: f32[1,32,512], index: 14, kind: input, shape index: {}]
  %s15 = inlined_call_operand.vmem [shape: f32[1,512], index: 15, kind: input, shape index: {}]
  %s16 = inlined_call_operand.vmem [shape: f32[512,6], index: 16, kind: input, shape index: {}]
  %s17 = inlined_call_operand.vmem [shape: f32[1,6], index: 17, kind: input, shape index: {}]
  %s18 = inlined_call_operand.hbm [shape: f32[2,6], index: 18, kind: output, shape index: {}]
  %s19 = sld [smem:[#allocation0]]
  $region82: #{tpu_custom_call.1} parent=0
    _
  %s21 = ssub.s32 1, %s19
  %s22 = scalar_select 0, %s21, %s19
  $region1: #{tpu_custom_call.1} parent=0
    #allocation2 [shape = 'u8[1024]{0}', space=vmem, size = 0x400, scoped, tag = 'output window, operand 0, single buffered']
    #allocation3 [shape = 's32[1]{0}', space=sflag, size = 0x4, scoped, tag = 'scoped memory for tpu_custom_call.1']
    %23 = vsyncpa [#allocation3], 0
    // Predicated region
    $region2: #{tpu_custom_call.1} parent=1 // pred_check
      _
    $region3: #{tpu_custom_call.1} parent=1 // pred_check_branch
      %25 = sbr.rel (0) target = $region5
    $region4: #{tpu_custom_call.1} parent=1 // pred_region
      _
    $region5: #{tpu_custom_call.1} parent=1 // pred_fallthru
      _
    // Predicated region
    $region6: #{tpu_custom_call.1} parent=1 // pred_check
      _
    $region7: #{tpu_custom_call.1} parent=1 // pred_check_branch
      %27 = sbr.rel (0) target = $region9
    $region8: #{tpu_custom_call.1} parent=1 // pred_region
      _
    $region9: #{tpu_custom_call.1} parent=1 // pred_fallthru
      _
    // Predicated region
    $region10: #{tpu_custom_call.1} parent=1 // pred_check
      _
    $region11: #{tpu_custom_call.1} parent=1 // pred_check_branch
      %29 = sbr.rel (0) target = $region13
    $region12: #{tpu_custom_call.1} parent=1 // pred_region
      _
    $region13: #{tpu_custom_call.1} parent=1 // pred_fallthru
      _
    // Predicated region
    $region14: #{tpu_custom_call.1} parent=1 // pred_check
      _
    $region15: #{tpu_custom_call.1} parent=1 // pred_check_branch
      %31 = sbr.rel (0) target = $region17
    $region16: #{tpu_custom_call.1} parent=1 // pred_region
      _
    $region17: #{tpu_custom_call.1} parent=1 // pred_fallthru
      _
    // Predicated region
    $region18: #{tpu_custom_call.1} parent=1 // pred_check
      _
    $region19: #{tpu_custom_call.1} parent=1 // pred_check_branch
      %33 = sbr.rel (0) target = $region21
    $region20: #{tpu_custom_call.1} parent=1 // pred_region
      _
    $region21: #{tpu_custom_call.1} parent=1 // pred_fallthru
      _
    // Predicated region
    $region22: #{tpu_custom_call.1} parent=1 // pred_check
      _
    $region23: #{tpu_custom_call.1} parent=1 // pred_check_branch
      %35 = sbr.rel (0) target = $region25
    $region24: #{tpu_custom_call.1} parent=1 // pred_region
      _
    $region25: #{tpu_custom_call.1} parent=1 // pred_fallthru
      _
    // Predicated region
    $region26: #{tpu_custom_call.1} parent=1 // pred_check
      _
    $region27: #{tpu_custom_call.1} parent=1 // pred_check_branch
      %37 = sbr.rel (0) target = $region29
    $region28: #{tpu_custom_call.1} parent=1 // pred_region
      _
    $region29: #{tpu_custom_call.1} parent=1 // pred_fallthru
      _
    // Predicated region
    $region30: #{tpu_custom_call.1} parent=1 // pred_check
      _
    $region31: #{tpu_custom_call.1} parent=1 // pred_check_branch
      %39 = sbr.rel (0) target = $region33
    $region32: #{tpu_custom_call.1} parent=1 // pred_region
      _
    $region33: #{tpu_custom_call.1} parent=1 // pred_fallthru
      _
    // Predicated region
    $region34: #{tpu_custom_call.1} parent=1 // pred_check
      _
    $region35: #{tpu_custom_call.1} parent=1 // pred_check_branch
      %41 = sbr.rel (0) target = $region37
    $region36: #{tpu_custom_call.1} parent=1 // pred_region
      _
    $region37: #{tpu_custom_call.1} parent=1 // pred_fallthru
      _
    // Predicated region
    $region38: #{tpu_custom_call.1} parent=1 // pred_check
      _
    $region39: #{tpu_custom_call.1} parent=1 // pred_check_branch
      %43 = sbr.rel (0) target = $region41
    $region40: #{tpu_custom_call.1} parent=1 // pred_region
      _
    $region41: #{tpu_custom_call.1} parent=1 // pred_fallthru
      _
    // Predicated region
    $region42: #{tpu_custom_call.1} parent=1 // pred_check
      _
    $region43: #{tpu_custom_call.1} parent=1 // pred_check_branch
      %45 = sbr.rel (0) target = $region45
    $region44: #{tpu_custom_call.1} parent=1 // pred_region
      _
    $region45: #{tpu_custom_call.1} parent=1 // pred_fallthru
      _
    // Predicated region
    $region46: #{tpu_custom_call.1} parent=1 // pred_check
      _
    $region47: #{tpu_custom_call.1} parent=1 // pred_check_branch
      %47 = sbr.rel (0) target = $region49
    $region48: #{tpu_custom_call.1} parent=1 // pred_region
      _
    $region49: #{tpu_custom_call.1} parent=1 // pred_fallthru
      _
    // Predicated region
    $region50: #{tpu_custom_call.1} parent=1 // pred_check
      _
    $region51: #{tpu_custom_call.1} parent=1 // pred_check_branch
      %49 = sbr.rel (0) target = $region53
    $region52: #{tpu_custom_call.1} parent=1 // pred_region
      _
    $region53: #{tpu_custom_call.1} parent=1 // pred_fallthru
      _
    // Predicated region
    $region54: #{tpu_custom_call.1} parent=1 // pred_check
      _
    $region55: #{tpu_custom_call.1} parent=1 // pred_check_branch
      %51 = sbr.rel (0) target = $region57
    $region56: #{tpu_custom_call.1} parent=1 // pred_region
      _
    $region57: #{tpu_custom_call.1} parent=1 // pred_fallthru
      _
    // Predicated region
    $region58: #{tpu_custom_call.1} parent=1 // pred_check
      _
    $region59: #{tpu_custom_call.1} parent=1 // pred_check_branch
      %53 = sbr.rel (0) target = $region61
    $region60: #{tpu_custom_call.1} parent=1 // pred_region
      _
    $region61: #{tpu_custom_call.1} parent=1 // pred_fallthru
      _
    // Predicated region
    $region62: #{tpu_custom_call.1} parent=1 // pred_check
      _
    $region63: #{tpu_custom_call.1} parent=1 // pred_check_branch
      %55 = sbr.rel (0) target = $region65
    $region64: #{tpu_custom_call.1} parent=1 // pred_region
      _
    $region65: #{tpu_custom_call.1} parent=1 // pred_fallthru
      _
    // Predicated region
    $region66: #{tpu_custom_call.1} parent=1 // pred_check
      _
    $region67: #{tpu_custom_call.1} parent=1 // pred_check_branch
      %57 = sbr.rel (0) target = $region69
    $region68: #{tpu_custom_call.1} parent=1 // pred_region
      _
    $region69: #{tpu_custom_call.1} parent=1 // pred_fallthru
      _
    // Predicated region
    $region70: #{tpu_custom_call.1} parent=1 // pred_check
      _
    $region71: #{tpu_custom_call.1} parent=1 // pred_check_branch
      %59 = sbr.rel (0) target = $region73
    $region72: #{tpu_custom_call.1} parent=1 // pred_region
      _
    $region73: #{tpu_custom_call.1} parent=1 // pred_fallthru
      _
    %v60 = vld [vmem:[%s0] sm:$0xff]
    %v61 = vld [vmem:[%s0 + $0x8] sm:$0xff]
    %v62 = vld [vmem:[%s0 + $0x10] sm:$0xff]
    %v63 = vld [vmem:[%s0 + $0x18] sm:$0xff]
    %v64 = vld [vmem:[%s0 + $0x20] sm:$0xff]
    %v65 = vld [vmem:[%s0 + $0x28] sm:$0xff]
    %v66 = vld [vmem:[%s0 + $0x30] sm:$0xff]
    %v67 = vld [vmem:[%s0 + $0x38] sm:$0xf]
    %v68 = vld [vmem:[%s1] sm:$0xff]
    %v69 = vld [vmem:[%s1 + $0x8] sm:$0xff]
    %v70 = vld [vmem:[%s1 + $0x10] sm:$0xff]
    %v71 = vld [vmem:[%s1 + $0x18] sm:$0x3]
    %vm72 = vcmask 490496
    %v74 = vsel %vm72, %v68, 0
    %v77 = vsel %vm72, %v69, 0
    %v80 = vsel %vm72, %v70, 0
    %v83 = vsel %vm72, %v71, 0
    %vm85 = vcmask 1043456
    %v87 = vsel %vm85, %v67, 0
    %89 = vmatprep.subr.mxu0 0.0
    %90 = vmatpush1.msra.mxu0 %v60
    %91 = vmatprep.subr.mxu0 0.0
    %92 = vmatpush1.msra.mxu0 %v61
    %93 = vmatprep.subr.mxu0 0.0
    %94 = vmatpush1.msra.mxu0 %v62
    %95 = vmatprep.subr.mxu0 0.0
    %96 = vmatpush1.msra.mxu0 %v63
    %97 = vmatprep.subr.mxu0 0.0
    %98 = vmatpush1.msra.mxu0 %v64
    %99 = vmatprep.subr.mxu0 0.0
    %100 = vmatpush1.msra.mxu0 %v65
    %101 = vmatprep.subr.mxu0 0.0
    %102 = vmatpush1.msra.mxu0 %v66
    %103 = vmatprep.subr.mxu0 0.0
    %104 = vmatpush1.msra.mxu0 %v87
    %105 = vmatprep.subr.mxu0 0.0
    %106 = vmatpush1.msra.mxu0 0.0
    %107 = vmatprep.subr.mxu0 0.0
    %108 = vmatpush1.msra.mxu0 0.0
    %109 = vmatprep.subr.mxu0 0.0
    %110 = vmatpush1.msra.mxu0 0.0
    %111 = vmatprep.subr.mxu0 0.0
    %112 = vmatpush1.msra.mxu0 0.0
    %113 = vmatprep.subr.mxu0 0.0
    %114 = vmatpush1.msra.mxu0 0.0
    %115 = vmatprep.subr.mxu0 0.0
    %116 = vmatpush1.msra.mxu0 0.0
    %117 = vmatprep.subr.mxu0 0.0
    %118 = vmatpush1.msra.mxu0 0.0
    %119 = vmatprep.subr.mxu0 0.0
    %120 = vmatpush1.msra.mxu0 0.0
    %121 = vmatprep.subr.mxu0 0.0
    %122 = vmatpush1.msra.mxu0 0.0
    %123 = vmatprep.subr.mxu0 0.0
    %124 = vmatpush1.msra.mxu0 0.0
    %125 = vmatprep.subr.mxu0 0.0
    %126 = vmatpush1.msra.mxu0 0.0
    %127 = vmatprep.subr.mxu0 0.0
    %128 = vmatpush1.msra.mxu0 0.0
    %129 = vmatprep.subr.mxu0 0.0
    %130 = vmatpush1.msra.mxu0 0.0
    %131 = vmatprep.subr.mxu0 0.0
    %132 = vmatpush1.msra.mxu0 0.0
    %133 = vmatprep.subr.mxu0 0.0
    %134 = vmatpush1.msra.mxu0 0.0
    %135 = vmatprep.subr.mxu0 0.0
    %136 = vmatpush1.msra.mxu0 0.0
    %137 = vmatprep.subr.mxu0 0.0
    %138 = vmatpush1.msra.mxu0 0.0
    %139 = vmatprep.subr.mxu0 0.0
    %140 = vmatpush1.msra.mxu0 0.0
    %141 = vmatprep.subr.mxu0 0.0
    %142 = vmatpush1.msra.mxu0 0.0
    %143 = vmatprep.subr.mxu0 0.0
    %144 = vmatpush1.msra.mxu0 0.0
    %145 = vmatprep.subr.mxu0 0.0
    %146 = vmatpush1.msra.mxu0 0.0
    %147 = vmatprep.subr.mxu0 0.0
    %148 = vmatpush1.msra.mxu0 0.0
    %149 = vmatprep.subr.mxu0 0.0
    %150 = vmatpush1.msra.mxu0 0.0
    %151 = vmatprep.subr.mxu0 0.0
    %152 = vmatpush1.msra.mxu0 0.0
    %153 = vmatprep.mubr.f32.mxu0 0.0
    %154 = vmatmul.mubr.f32.gmra.mrb[0].mxu0 %v74
    %v155 = vpop.f32.mrb[0].mxu0
    %v156 = vadd.f32 0.0, %v155
    %v157 = vpop.f32.mrb[0].mxu0
    %158 = vmatprep.mubr.f32.mxu0 0.0
    %159 = vmatmul.mubr.f32.gmra.mrb[0].mxu0 %v77
    %v160 = vpop.f32.mrb[0].mxu0
    %v161 = vadd.f32 0.0, %v160
    %v162 = vpop.f32.mrb[0].mxu0
    %163 = vmatprep.mubr.f32.mxu0 0.0
    %164 = vmatmul.mubr.f32.gmra.mrb[0].mxu0 %v80
    %v165 = vpop.f32.mrb[0].mxu0
    %v166 = vadd.f32 0.0, %v165
    %v167 = vpop.f32.mrb[0].mxu0
    %168 = vmatprep.mubr.f32.mxu0 0.0
    %169 = vmatmul.mubr.f32.gmra.mrb[0].mxu0 %v83
    %v170 = vpop.f32.mrb[0].mxu0
    %v171 = vadd.f32 0.0, %v170
    %v172 = vpop.f32.mrb[0].mxu0
    %173 = vdwg.mxu0
    %v174 = vld [vmem:[%s2] sm:$0xff]
    %v175 = vld [vmem:[%s2 + $0x8] sm:$0xff]
    %v176 = vld [vmem:[%s2 + $0x10] sm:$0xff]
    %v177 = vld [vmem:[%s2 + $0x18] sm:$0xff]
    %v178 = vld [vmem:[%s2 + $0x20] sm:$0xff]
    %v179 = vld [vmem:[%s2 + $0x28] sm:$0xff]
    %v180 = vld [vmem:[%s2 + $0x30] sm:$0xff]
    %v181 = vld [vmem:[%s2 + $0x38] sm:$0xff]
    %v182 = vld [vmem:[%s2 + $0x40] sm:$0xff]
    %v183 = vld [vmem:[%s2 + $0x48] sm:$0xff]
    %v184 = vld [vmem:[%s2 + $0x50] sm:$0xff]
    %v185 = vld [vmem:[%s2 + $0x58] sm:$0xff]
    %v186 = vld [vmem:[%s2 + $0x60] sm:$0xff]
    %v187 = vld [vmem:[%s2 + $0x68] sm:$0xff]
    %v188 = vld [vmem:[%s2 + $0x70] sm:$0xff]
    %v189 = vld [vmem:[%s2 + $0x78] sm:$0xff]
    %v190 = vld [vmem:[%s2 + $0x80] sm:$0xff]
    %v191 = vld [vmem:[%s2 + $0x88] sm:$0xff]
    %v192 = vld [vmem:[%s2 + $0x90] sm:$0xff]
    %v193 = vld [vmem:[%s2 + $0x98] sm:$0xff]
    %v194 = vld [vmem:[%s2 + $0xa0] sm:$0xff]
    %v195 = vld [vmem:[%s2 + $0xa8] sm:$0xff]
    %v196 = vld [vmem:[%s2 + $0xb0] sm:$0xff]
    %v197 = vld [vmem:[%s2 + $0xb8] sm:$0xff]
    %v198 = vld [vmem:[%s2 + $0xc0] sm:$0xff]
    %v199 = vld [vmem:[%s2 + $0xc8] sm:$0xff]
    %v200 = vld [vmem:[%s2 + $0xd0] sm:$0xff]
    %v201 = vld [vmem:[%s2 + $0xd8] sm:$0xff]
    %v202 = vld [vmem:[%s2 + $0xe0] sm:$0xff]
    %v203 = vld [vmem:[%s2 + $0xe8] sm:$0xff]
    %s204 = scalar_lea.vmem %s1, 32
    %v205 = vld [vmem:[%s204] sm:$0xff]
    %v206 = vld [vmem:[%s204 + $0x8] sm:$0xff]
    %v207 = vld [vmem:[%s204 + $0x10] sm:$0xff]
    %v208 = vld [vmem:[%s204 + $0x18] sm:$0x3]
    %v210 = vsel %vm72, %v205, 0
    %v213 = vsel %vm72, %v206, 0
    %v216 = vsel %vm72, %v207, 0
    %v219 = vsel %vm72, %v208, 0
    %221 = vmatprep.subr.mxu0 0.0
    %222 = vmatpush1.msra.mxu0 %v60
    %223 = vmatprep.subr.mxu0 0.0
    %224 = vmatpush1.msra.mxu0 %v61
    %225 = vmatprep.subr.mxu0 0.0
    %226 = vmatpush1.msra.mxu0 %v62
    %227 = vmatprep.subr.mxu0 0.0
    %228 = vmatpush1.msra.mxu0 %v63
    %229 = vmatprep.subr.mxu0 0.0
    %230 = vmatpush1.msra.mxu0 %v64
    %231 = vmatprep.subr.mxu0 0.0
    %232 = vmatpush1.msra.mxu0 %v65
    %233 = vmatprep.subr.mxu0 0.0
    %234 = vmatpush1.msra.mxu0 %v66
    %235 = vmatprep.subr.mxu0 0.0
    %236 = vmatpush1.msra.mxu0 %v87
    %237 = vmatprep.subr.mxu0 0.0
    %238 = vmatpush1.msra.mxu0 0.0
    %239 = vmatprep.subr.mxu0 0.0
    %240 = vmatpush1.msra.mxu0 0.0
    %241 = vmatprep.subr.mxu0 0.0
    %242 = vmatpush1.msra.mxu0 0.0
    %243 = vmatprep.subr.mxu0 0.0
    %244 = vmatpush1.msra.mxu0 0.0
    %245 = vmatprep.subr.mxu0 0.0
    %246 = vmatpush1.msra.mxu0 0.0
    %247 = vmatprep.subr.mxu0 0.0
    %248 = vmatpush1.msra.mxu0 0.0
    %249 = vmatprep.subr.mxu0 0.0
    %250 = vmatpush1.msra.mxu0 0.0
    %251 = vmatprep.subr.mxu0 0.0
    %252 = vmatpush1.msra.mxu0 0.0
    %253 = vmatprep.subr.mxu0 0.0
    %254 = vmatpush1.msra.mxu0 0.0
    %255 = vmatprep.subr.mxu0 0.0
    %256 = vmatpush1.msra.mxu0 0.0
    %257 = vmatprep.subr.mxu0 0.0
    %258 = vmatpush1.msra.mxu0 0.0
    %259 = vmatprep.subr.mxu0 0.0
    %260 = vmatpush1.msra.mxu0 0.0
    %261 = vmatprep.subr.mxu0 0.0
    %262 = vmatpush1.msra.mxu0 0.0
    %263 = vmatprep.subr.mxu0 0.0
    %264 = vmatpush1.msra.mxu0 0.0
    %265 = vmatprep.subr.mxu0 0.0
    %266 = vmatpush1.msra.mxu0 0.0
    %267 = vmatprep.subr.mxu0 0.0
    %268 = vmatpush1.msra.mxu0 0.0
    %269 = vmatprep.subr.mxu0 0.0
    %270 = vmatpush1.msra.mxu0 0.0
    %271 = vmatprep.subr.mxu0 0.0
    %272 = vmatpush1.msra.mxu0 0.0
    %273 = vmatprep.subr.mxu0 0.0
    %274 = vmatpush1.msra.mxu0 0.0
    %275 = vmatprep.subr.mxu0 0.0
    %276 = vmatpush1.msra.mxu0 0.0
    %277 = vmatprep.subr.mxu0 0.0
    %278 = vmatpush1.msra.mxu0 0.0
    %279 = vmatprep.subr.mxu0 0.0
    %280 = vmatpush1.msra.mxu0 0.0
    %281 = vmatprep.subr.mxu0 0.0
    %282 = vmatpush1.msra.mxu0 0.0
    %283 = vmatprep.subr.mxu0 0.0
    %284 = vmatpush1.msra.mxu0 0.0
    %285 = vmatprep.mubr.f32.mxu0 0.0
    %286 = vmatmul.mubr.f32.gmra.mrb[0].mxu0 %v210
    %v287 = vpop.f32.mrb[0].mxu0
    %v288 = vadd.f32 0.0, %v287
    %v289 = vpop.f32.mrb[0].mxu0
    %290 = vmatprep.mubr.f32.mxu0 0.0
    %291 = vmatmul.mubr.f32.gmra.mrb[0].mxu0 %v213
    %v292 = vpop.f32.mrb[0].mxu0
    %v293 = vadd.f32 0.0, %v292
    %v294 = vpop.f32.mrb[0].mxu0
    %295 = vmatprep.mubr.f32.mxu0 0.0
    %296 = vmatmul.mubr.f32.gmra.mrb[0].mxu0 %v216
    %v297 = vpop.f32.mrb[0].mxu0
    %v298 = vadd.f32 0.0, %v297
    %v299 = vpop.f32.mrb[0].mxu0
    %300 = vmatprep.mubr.f32.mxu0 0.0
    %301 = vmatmul.mubr.f32.gmra.mrb[0].mxu0 %v219
    %v302 = vpop.f32.mrb[0].mxu0
    %v303 = vadd.f32 0.0, %v302
    %v304 = vpop.f32.mrb[0].mxu0
    %305 = vdwg.mxu0
    %s306 = scalar_lea.vmem %s2, 240
    %v307 = vld [vmem:[%s306] sm:$0xff]
    %v308 = vld [vmem:[%s306 + $0x8] sm:$0xff]
    %v309 = vld [vmem:[%s306 + $0x10] sm:$0xff]
    %v310 = vld [vmem:[%s306 + $0x18] sm:$0xff]
    %v311 = vld [vmem:[%s306 + $0x20] sm:$0xff]
    %v312 = vld [vmem:[%s306 + $0x28] sm:$0xff]
    %v313 = vld [vmem:[%s306 + $0x30] sm:$0xff]
    %v314 = vld [vmem:[%s306 + $0x38] sm:$0xff]
    %v315 = vld [vmem:[%s306 + $0x40] sm:$0xff]
    %v316 = vld [vmem:[%s306 + $0x48] sm:$0xff]
    %v317 = vld [vmem:[%s306 + $0x50] sm:$0xff]
    %v318 = vld [vmem:[%s306 + $0x58] sm:$0xff]
    %v319 = vld [vmem:[%s306 + $0x60] sm:$0xff]
    %v320 = vld [vmem:[%s306 + $0x68] sm:$0xff]
    %v321 = vld [vmem:[%s306 + $0x70] sm:$0xff]
    %v322 = vld [vmem:[%s306 + $0x78] sm:$0xff]
    %v323 = vld [vmem:[%s306 + $0x80] sm:$0xff]
    %v324 = vld [vmem:[%s306 + $0x88] sm:$0xff]
    %v325 = vld [vmem:[%s306 + $0x90] sm:$0xff]
    %v326 = vld [vmem:[%s306 + $0x98] sm:$0xff]
    %v327 = vld [vmem:[%s306 + $0xa0] sm:$0xff]
    %v328 = vld [vmem:[%s306 + $0xa8] sm:$0xff]
    %v329 = vld [vmem:[%s306 + $0xb0] sm:$0xff]
    %v330 = vld [vmem:[%s306 + $0xb8] sm:$0xff]
    %v331 = vld [vmem:[%s306 + $0xc0] sm:$0xff]
    %v332 = vld [vmem:[%s306 + $0xc8] sm:$0xff]
    %v333 = vld [vmem:[%s306 + $0xd0] sm:$0xff]
    %v334 = vld [vmem:[%s306 + $0xd8] sm:$0xff]
    %v335 = vld [vmem:[%s306 + $0xe0] sm:$0xff]
    %v336 = vld [vmem:[%s306 + $0xe8] sm:$0xff]
    %vm337 = vcmask 982016
    %v339 = vsel %vm337, %v288, 0
    %v342 = vsel %vm337, %v293, 0
    %v345 = vsel %vm337, %v298, 0
    %v348 = vsel %vm337, %v303, 0
    %350 = vmatprep.subr.mxu0 %v308
    %351 = vmatpush1.msra.mxu0 %v307
    %352 = vmatprep.subr.mxu0 %v310
    %353 = vmatpush1.msra.mxu0 %v309
    %354 = vmatprep.subr.mxu0 %v312
    %355 = vmatpush1.msra.mxu0 %v311
    %356 = vmatprep.subr.mxu0 %v314
    %357 = vmatpush1.msra.mxu0 %v313
    %358 = vmatprep.subr.mxu0 %v316
    %359 = vmatpush1.msra.mxu0 %v315
    %360 = vmatprep.subr.mxu0 %v318
    %361 = vmatpush1.msra.mxu0 %v317
    %362 = vmatprep.subr.mxu0 %v320
    %363 = vmatpush1.msra.mxu0 %v319
    %364 = vmatprep.subr.mxu0 %v322
    %365 = vmatpush1.msra.mxu0 %v321
    %366 = vmatprep.subr.mxu0 %v324
    %367 = vmatpush1.msra.mxu0 %v323
    %368 = vmatprep.subr.mxu0 %v326
    %369 = vmatpush1.msra.mxu0 %v325
    %370 = vmatprep.subr.mxu0 %v328
    %371 = vmatpush1.msra.mxu0 %v327
    %372 = vmatprep.subr.mxu0 %v330
    %373 = vmatpush1.msra.mxu0 %v329
    %374 = vmatprep.subr.mxu0 %v332
    %375 = vmatpush1.msra.mxu0 %v331
    %376 = vmatprep.subr.mxu0 %v334
    %377 = vmatpush1.msra.mxu0 %v333
    %378 = vmatprep.subr.mxu0 %v336
    %379 = vmatpush1.msra.mxu0 %v335
    %380 = vmatprep.subr.mxu0 0.0
    %381 = vmatpush1.msra.mxu0 0.0
    %382 = vmatprep.subr.mxu0 0.0
    %383 = vmatpush1.msra.mxu0 0.0
    %384 = vmatprep.subr.mxu0 0.0
    %385 = vmatpush1.msra.mxu0 0.0
    %386 = vmatprep.subr.mxu0 0.0
    %387 = vmatpush1.msra.mxu0 0.0
    %388 = vmatprep.subr.mxu0 0.0
    %389 = vmatpush1.msra.mxu0 0.0
    %390 = vmatprep.subr.mxu0 0.0
    %391 = vmatpush1.msra.mxu0 0.0
    %392 = vmatprep.subr.mxu0 0.0
    %393 = vmatpush1.msra.mxu0 0.0
    %394 = vmatprep.subr.mxu0 0.0
    %395 = vmatpush1.msra.mxu0 0.0
    %396 = vmatprep.subr.mxu0 0.0
    %397 = vmatpush1.msra.mxu0 0.0
    %398 = vmatprep.subr.mxu0 0.0
    %399 = vmatpush1.msra.mxu0 0.0
    %400 = vmatprep.subr.mxu0 0.0
    %401 = vmatpush1.msra.mxu0 0.0
    %402 = vmatprep.subr.mxu0 0.0
    %403 = vmatpush1.msra.mxu0 0.0
    %404 = vmatprep.subr.mxu0 0.0
    %405 = vmatpush1.msra.mxu0 0.0
    %406 = vmatprep.subr.mxu0 0.0
    %407 = vmatpush1.msra.mxu0 0.0
    %408 = vmatprep.subr.mxu0 0.0
    %409 = vmatpush1.msra.mxu0 0.0
    %410 = vmatprep.subr.mxu0 0.0
    %411 = vmatpush1.msra.mxu0 0.0
    %412 = vmatprep.subr.mxu0 0.0
    %413 = vmatpush1.msra.mxu0 0.0
    %414 = vmatprep.mubr.f32.mxu0 0.0
    %415 = vmatmul.mubr.f32.gmra.mrb[0].mxu0 %v339
    %v416 = vpop.f32.mrb[0].mxu0
    %v417 = vadd.f32 0.0, %v416
    %v418 = vpop.f32.mrb[0].mxu0
    %v419 = vadd.f32 0.0, %v418
    %420 = vmatprep.mubr.f32.mxu0 0.0
    %421 = vmatmul.mubr.f32.gmra.mrb[0].mxu0 %v342
    %v422 = vpop.f32.mrb[0].mxu0
    %v423 = vadd.f32 0.0, %v422
    %v424 = vpop.f32.mrb[0].mxu0
    %v425 = vadd.f32 0.0, %v424
    %426 = vmatprep.mubr.f32.mxu0 0.0
    %427 = vmatmul.mubr.f32.gmra.mrb[0].mxu0 %v345
    %v428 = vpop.f32.mrb[0].mxu0
    %v429 = vadd.f32 0.0, %v428
    %v430 = vpop.f32.mrb[0].mxu0
    %v431 = vadd.f32 0.0, %v430
    %432 = vmatprep.mubr.f32.mxu0 0.0
    %433 = vmatmul.mubr.f32.gmra.mrb[0].mxu0 %v348
    %v434 = vpop.f32.mrb[0].mxu0
    %v435 = vadd.f32 0.0, %v434
    %v436 = vpop.f32.mrb[0].mxu0
    %v437 = vadd.f32 0.0, %v436
    %438 = vdwg.mxu0
    %v440 = vsel %vm337, %v156, 0
    %v443 = vsel %vm337, %v161, 0
    %v446 = vsel %vm337, %v166, 0
    %v449 = vsel %vm337, %v171, 0
    %451 = vmatprep.subr.mxu0 %v175
    %452 = vmatpush1.msra.mxu0 %v174
    %453 = vmatprep.subr.mxu0 %v177
    %454 = vmatpush1.msra.mxu0 %v176
    %455 = vmatprep.subr.mxu0 %v179
    %456 = vmatpush1.msra.mxu0 %v178
    %457 = vmatprep.subr.mxu0 %v181
    %458 = vmatpush1.msra.mxu0 %v180
    %459 = vmatprep.subr.mxu0 %v183
    %460 = vmatpush1.msra.mxu0 %v182
    %461 = vmatprep.subr.mxu0 %v185
    %462 = vmatpush1.msra.mxu0 %v184
    %463 = vmatprep.subr.mxu0 %v187
    %464 = vmatpush1.msra.mxu0 %v186
    %465 = vmatprep.subr.mxu0 %v189
    %466 = vmatpush1.msra.mxu0 %v188
    %467 = vmatprep.subr.mxu0 %v191
    %468 = vmatpush1.msra.mxu0 %v190
    %469 = vmatprep.subr.mxu0 %v193
    %470 = vmatpush1.msra.mxu0 %v192
    %471 = vmatprep.subr.mxu0 %v195
    %472 = vmatpush1.msra.mxu0 %v194
    %473 = vmatprep.subr.mxu0 %v197
    %474 = vmatpush1.msra.mxu0 %v196
    %475 = vmatprep.subr.mxu0 %v199
    %476 = vmatpush1.msra.mxu0 %v198
    %477 = vmatprep.subr.mxu0 %v201
    %478 = vmatpush1.msra.mxu0 %v200
    %479 = vmatprep.subr.mxu0 %v203
    %480 = vmatpush1.msra.mxu0 %v202
    %481 = vmatprep.subr.mxu0 0.0
    %482 = vmatpush1.msra.mxu0 0.0
    %483 = vmatprep.subr.mxu0 0.0
    %484 = vmatpush1.msra.mxu0 0.0
    %485 = vmatprep.subr.mxu0 0.0
    %486 = vmatpush1.msra.mxu0 0.0
    %487 = vmatprep.subr.mxu0 0.0
    %488 = vmatpush1.msra.mxu0 0.0
    %489 = vmatprep.subr.mxu0 0.0
    %490 = vmatpush1.msra.mxu0 0.0
    %491 = vmatprep.subr.mxu0 0.0
    %492 = vmatpush1.msra.mxu0 0.0
    %493 = vmatprep.subr.mxu0 0.0
    %494 = vmatpush1.msra.mxu0 0.0
    %495 = vmatprep.subr.mxu0 0.0
    %496 = vmatpush1.msra.mxu0 0.0
    %497 = vmatprep.subr.mxu0 0.0
    %498 = vmatpush1.msra.mxu0 0.0
    %499 = vmatprep.subr.mxu0 0.0
    %500 = vmatpush1.msra.mxu0 0.0
    %501 = vmatprep.subr.mxu0 0.0
    %502 = vmatpush1.msra.mxu0 0.0
    %503 = vmatprep.subr.mxu0 0.0
    %504 = vmatpush1.msra.mxu0 0.0
    %505 = vmatprep.subr.mxu0 0.0
    %506 = vmatpush1.msra.mxu0 0.0
    %507 = vmatprep.subr.mxu0 0.0
    %508 = vmatpush1.msra.mxu0 0.0
    %509 = vmatprep.subr.mxu0 0.0
    %510 = vmatpush1.msra.mxu0 0.0
    %511 = vmatprep.subr.mxu0 0.0
    %512 = vmatpush1.msra.mxu0 0.0
    %513 = vmatprep.subr.mxu0 0.0
    %514 = vmatpush1.msra.mxu0 0.0
    %515 = vmatprep.mubr.f32.mxu0 0.0
    %516 = vmatmul.mubr.f32.gmra.mrb[0].mxu0 %v440
    %v517 = vpop.f32.mrb[0].mxu0
    %v518 = vadd.f32 %v417, %v517
    %v519 = vpop.f32.mrb[0].mxu0
    %v520 = vadd.f32 %v419, %v519
    %521 = vmatprep.mubr.f32.mxu0 0.0
    %522 = vmatmul.mubr.f32.gmra.mrb[0].mxu0 %v443
    %v523 = vpop.f32.mrb[0].mxu0
    %v524 = vadd.f32 %v423, %v523
    %v525 = vpop.f32.mrb[0].mxu0
    %v526 = vadd.f32 %v425, %v525
    %527 = vmatprep.mubr.f32.mxu0 0.0
    %528 = vmatmul.mubr.f32.gmra.mrb[0].mxu0 %v446
    %v529 = vpop.f32.mrb[0].mxu0
    %v530 = vadd.f32 %v429, %v529
    %v531 = vpop.f32.mrb[0].mxu0
    %v532 = vadd.f32 %v431, %v531
    %533 = vmatprep.mubr.f32.mxu0 0.0
    %534 = vmatmul.mubr.f32.gmra.mrb[0].mxu0 %v449
    %v535 = vpop.f32.mrb[0].mxu0
    %v536 = vadd.f32 %v435, %v535
    %v537 = vpop.f32.mrb[0].mxu0
    %v538 = vadd.f32 %v437, %v537
    %539 = vdwg.mxu0
    %s540 = scalar_lea.vmem %s1, 64
    %v541 = vld [vmem:[%s540] sm:$0xff]
    %v542 = vld [vmem:[%s540 + $0x8] sm:$0xff]
    %v543 = vld [vmem:[%s540 + $0x10] sm:$0xff]
    %v544 = vld [vmem:[%s540 + $0x18] sm:$0x3]
    %v546 = vsel %vm72, %v541, 0
    %v549 = vsel %vm72, %v542, 0
    %v552 = vsel %vm72, %v543, 0
    %v555 = vsel %vm72, %v544, 0
    %557 = vmatprep.subr.mxu0 0.0
    %558 = vmatpush1.msra.mxu0 %v60
    %559 = vmatprep.subr.mxu0 0.0
    %560 = vmatpush1.msra.mxu0 %v61
    %561 = vmatprep.subr.mxu0 0.0
    %562 = vmatpush1.msra.mxu0 %v62
    %563 = vmatprep.subr.mxu0 0.0
    %564 = vmatpush1.msra.mxu0 %v63
    %565 = vmatprep.subr.mxu0 0.0
    %566 = vmatpush1.msra.mxu0 %v64
    %567 = vmatprep.subr.mxu0 0.0
    %568 = vmatpush1.msra.mxu0 %v65
    %569 = vmatprep.subr.mxu0 0.0
    %570 = vmatpush1.msra.mxu0 %v66
    %571 = vmatprep.subr.mxu0 0.0
    %572 = vmatpush1.msra.mxu0 %v87
    %573 = vmatprep.subr.mxu0 0.0
    %574 = vmatpush1.msra.mxu0 0.0
    %575 = vmatprep.subr.mxu0 0.0
    %576 = vmatpush1.msra.mxu0 0.0
    %577 = vmatprep.subr.mxu0 0.0
    %578 = vmatpush1.msra.mxu0 0.0
    %579 = vmatprep.subr.mxu0 0.0
    %580 = vmatpush1.msra.mxu0 0.0
    %581 = vmatprep.subr.mxu0 0.0
    %582 = vmatpush1.msra.mxu0 0.0
    %583 = vmatprep.subr.mxu0 0.0
    %584 = vmatpush1.msra.mxu0 0.0
    %585 = vmatprep.subr.mxu0 0.0
    %586 = vmatpush1.msra.mxu0 0.0
    %587 = vmatprep.subr.mxu0 0.0
    %588 = vmatpush1.msra.mxu0 0.0
    %589 = vmatprep.subr.mxu0 0.0
    %590 = vmatpush1.msra.mxu0 0.0
    %591 = vmatprep.subr.mxu0 0.0
    %592 = vmatpush1.msra.mxu0 0.0
    %593 = vmatprep.subr.mxu0 0.0
    %594 = vmatpush1.msra.mxu0 0.0
    %595 = vmatprep.subr.mxu0 0.0
    %596 = vmatpush1.msra.mxu0 0.0
    %597 = vmatprep.subr.mxu0 0.0
    %598 = vmatpush1.msra.mxu0 0.0
    %599 = vmatprep.subr.mxu0 0.0
    %600 = vmatpush1.msra.mxu0 0.0
    %601 = vmatprep.subr.mxu0 0.0
    %602 = vmatpush1.msra.mxu0 0.0
    %603 = vmatprep.subr.mxu0 0.0
    %604 = vmatpush1.msra.mxu0 0.0
    %605 = vmatprep.subr.mxu0 0.0
    %606 = vmatpush1.msra.mxu0 0.0
    %607 = vmatprep.subr.mxu0 0.0
    %608 = vmatpush1.msra.mxu0 0.0
    %609 = vmatprep.subr.mxu0 0.0
    %610 = vmatpush1.msra.mxu0 0.0
    %611 = vmatprep.subr.mxu0 0.0
    %612 = vmatpush1.msra.mxu0 0.0
    %613 = vmatprep.subr.mxu0 0.0
    %614 = vmatpush1.msra.mxu0 0.0
    %615 = vmatprep.subr.mxu0 0.0
    %616 = vmatpush1.msra.mxu0 0.0
    %617 = vmatprep.subr.mxu0 0.0
    %618 = vmatpush1.msra.mxu0 0.0
    %619 = vmatprep.subr.mxu0 0.0
    %620 = vmatpush1.msra.mxu0 0.0
    %621 = vmatprep.mubr.f32.mxu0 0.0
    %622 = vmatmul.mubr.f32.gmra.mrb[0].mxu0 %v546
    %v623 = vpop.f32.mrb[0].mxu0
    %v624 = vadd.f32 0.0, %v623
    %v625 = vpop.f32.mrb[0].mxu0
    %626 = vmatprep.mubr.f32.mxu0 0.0
    %627 = vmatmul.mubr.f32.gmra.mrb[0].mxu0 %v549
    %v628 = vpop.f32.mrb[0].mxu0
    %v629 = vadd.f32 0.0, %v628
    %v630 = vpop.f32.mrb[0].mxu0
    %631 = vmatprep.mubr.f32.mxu0 0.0
    %632 = vmatmul.mubr.f32.gmra.mrb[0].mxu0 %v552
    %v633 = vpop.f32.mrb[0].mxu0
    %v634 = vadd.f32 0.0, %v633
    %v635 = vpop.f32.mrb[0].mxu0
    %636 = vmatprep.mubr.f32.mxu0 0.0
    %637 = vmatmul.mubr.f32.gmra.mrb[0].mxu0 %v555
    %v638 = vpop.f32.mrb[0].mxu0
    %v639 = vadd.f32 0.0, %v638
    %v640 = vpop.f32.mrb[0].mxu0
    %641 = vdwg.mxu0
    %s642 = scalar_lea.vmem %s2, 480
    %v643 = vld [vmem:[%s642] sm:$0xff]
    %v644 = vld [vmem:[%s642 + $0x8] sm:$0xff]
    %v645 = vld [vmem:[%s642 + $0x10] sm:$0xff]
    %v646 = vld [vmem:[%s642 + $0x18] sm:$0xff]
    %v647 = vld [vmem:[%s642 + $0x20] sm:$0xff]
    %v648 = vld [vmem:[%s642 + $0x28] sm:$0xff]
    %v649 = vld [vmem:[%s642 + $0x30] sm:$0xff]
    %v650 = vld [vmem:[%s642 + $0x38] sm:$0xff]
    %v651 = vld [vmem:[%s642 + $0x40] sm:$0xff]
    %v652 = vld [vmem:[%s642 + $0x48] sm:$0xff]
    %v653 = vld [vmem:[%s642 + $0x50] sm:$0xff]
    %v654 = vld [vmem:[%s642 + $0x58] sm:$0xff]
    %v655 = vld [vmem:[%s642 + $0x60] sm:$0xff]
    %v656 = vld [vmem:[%s642 + $0x68] sm:$0xff]
    %v657 = vld [vmem:[%s642 + $0x70] sm:$0xff]
    %v658 = vld [vmem:[%s642 + $0x78] sm:$0xff]
    %v659 = vld [vmem:[%s642 + $0x80] sm:$0xff]
    %v660 = vld [vmem:[%s642 + $0x88] sm:$0xff]
    %v661 = vld [vmem:[%s642 + $0x90] sm:$0xff]
    %v662 = vld [vmem:[%s642 + $0x98] sm:$0xff]
    %v663 = vld [vmem:[%s642 + $0xa0] sm:$0xff]
    %v664 = vld [vmem:[%s642 + $0xa8] sm:$0xff]
    %v665 = vld [vmem:[%s642 + $0xb0] sm:$0xff]
    %v666 = vld [vmem:[%s642 + $0xb8] sm:$0xff]
    %v667 = vld [vmem:[%s642 + $0xc0] sm:$0xff]
    %v668 = vld [vmem:[%s642 + $0xc8] sm:$0xff]
    %v669 = vld [vmem:[%s642 + $0xd0] sm:$0xff]
    %v670 = vld [vmem:[%s642 + $0xd8] sm:$0xff]
    %v671 = vld [vmem:[%s642 + $0xe0] sm:$0xff]
    %v672 = vld [vmem:[%s642 + $0xe8] sm:$0xff]
    %v674 = vsel %vm337, %v624, 0
    %v677 = vsel %vm337, %v629, 0
    %v680 = vsel %vm337, %v634, 0
    %v683 = vsel %vm337, %v639, 0
    %685 = vmatprep.subr.mxu0 %v644
    %686 = vmatpush1.msra.mxu0 %v643
    %687 = vmatprep.subr.mxu0 %v646
    %688 = vmatpush1.msra.mxu0 %v645
    %689 = vmatprep.subr.mxu0 %v648
    %690 = vmatpush1.msra.mxu0 %v647
    %691 = vmatprep.subr.mxu0 %v650
    %692 = vmatpush1.msra.mxu0 %v649
    %693 = vmatprep.subr.mxu0 %v652
    %694 = vmatpush1.msra.mxu0 %v651
    %695 = vmatprep.subr.mxu0 %v654
    %696 = vmatpush1.msra.mxu0 %v653
    %697 = vmatprep.subr.mxu0 %v656
    %698 = vmatpush1.msra.mxu0 %v655
    %699 = vmatprep.subr.mxu0 %v658
    %700 = vmatpush1.msra.mxu0 %v657
    %701 = vmatprep.subr.mxu0 %v660
    %702 = vmatpush1.msra.mxu0 %v659
    %703 = vmatprep.subr.mxu0 %v662
    %704 = vmatpush1.msra.mxu0 %v661
    %705 = vmatprep.subr.mxu0 %v664
    %706 = vmatpush1.msra.mxu0 %v663
    %707 = vmatprep.subr.mxu0 %v666
    %708 = vmatpush1.msra.mxu0 %v665
    %709 = vmatprep.subr.mxu0 %v668
    %710 = vmatpush1.msra.mxu0 %v667
    %711 = vmatprep.subr.mxu0 %v670
    %712 = vmatpush1.msra.mxu0 %v669
    %713 = vmatprep.subr.mxu0 %v672
    %714 = vmatpush1.msra.mxu0 %v671
    %715 = vmatprep.subr.mxu0 0.0
    %716 = vmatpush1.msra.mxu0 0.0
    %717 = vmatprep.subr.mxu0 0.0
    %718 = vmatpush1.msra.mxu0 0.0
    %719 = vmatprep.subr.mxu0 0.0
    %720 = vmatpush1.msra.mxu0 0.0
    %721 = vmatprep.subr.mxu0 0.0
    %722 = vmatpush1.msra.mxu0 0.0
    %723 = vmatprep.subr.mxu0 0.0
    %724 = vmatpush1.msra.mxu0 0.0
    %725 = vmatprep.subr.mxu0 0.0
    %726 = vmatpush1.msra.mxu0 0.0
    %727 = vmatprep.subr.mxu0 0.0
    %728 = vmatpush1.msra.mxu0 0.0
    %729 = vmatprep.subr.mxu0 0.0
    %730 = vmatpush1.msra.mxu0 0.0
    %731 = vmatprep.subr.mxu0 0.0
    %732 = vmatpush1.msra.mxu0 0.0
    %733 = vmatprep.subr.mxu0 0.0
    %734 = vmatpush1.msra.mxu0 0.0
    %735 = vmatprep.subr.mxu0 0.0
    %736 = vmatpush1.msra.mxu0 0.0
    %737 = vmatprep.subr.mxu0 0.0
    %738 = vmatpush1.msra.mxu0 0.0
    %739 = vmatprep.subr.mxu0 0.0
    %740 = vmatpush1.msra.mxu0 0.0
    %741 = vmatprep.subr.mxu0 0.0
    %742 = vmatpush1.msra.mxu0 0.0
    %743 = vmatprep.subr.mxu0 0.0
    %744 = vmatpush1.msra.mxu0 0.0
    %745 = vmatprep.subr.mxu0 0.0
    %746 = vmatpush1.msra.mxu0 0.0
    %747 = vmatprep.subr.mxu0 0.0
    %748 = vmatpush1.msra.mxu0 0.0
    %749 = vmatprep.mubr.f32.mxu0 0.0
    %750 = vmatmul.mubr.f32.gmra.mrb[0].mxu0 %v674
    %v751 = vpop.f32.mrb[0].mxu0
    %v752 = vadd.f32 0.0, %v751
    %v753 = vpop.f32.mrb[0].mxu0
    %v754 = vadd.f32 0.0, %v753
    %755 = vmatprep.mubr.f32.mxu0 0.0
    %756 = vmatmul.mubr.f32.gmra.mrb[0].mxu0 %v677
    %v757 = vpop.f32.mrb[0].mxu0
    %v758 = vadd.f32 0.0, %v757
    %v759 = vpop.f32.mrb[0].mxu0
    %v760 = vadd.f32 0.0, %v759
    %761 = vmatprep.mubr.f32.mxu0 0.0
    %762 = vmatmul.mubr.f32.gmra.mrb[0].mxu0 %v680
    %v763 = vpop.f32.mrb[0].mxu0
    %v764 = vadd.f32 0.0, %v763
    %v765 = vpop.f32.mrb[0].mxu0
    %v766 = vadd.f32 0.0, %v765
    %767 = vmatprep.mubr.f32.mxu0 0.0
    %768 = vmatmul.mubr.f32.gmra.mrb[0].mxu0 %v683
    %v769 = vpop.f32.mrb[0].mxu0
    %v770 = vadd.f32 0.0, %v769
    %v771 = vpop.f32.mrb[0].mxu0
    %v772 = vadd.f32 0.0, %v771
    %773 = vdwg.mxu0
    %v774 = vadd.f32 %v518, %v752
    %v775 = vadd.f32 %v520, %v754
    %v776 = vadd.f32 %v524, %v758
    %v777 = vadd.f32 %v526, %v760
    %v778 = vadd.f32 %v530, %v764
    %v779 = vadd.f32 %v532, %v766
    %v780 = vadd.f32 %v536, %v770
    %v781 = vadd.f32 %v538, %v772
    %s782 = scalar_lea.vmem %s1, 96
    %v783 = vld [vmem:[%s782] sm:$0xff]
    %v784 = vld [vmem:[%s782 + $0x8] sm:$0xff]
    %v785 = vld [vmem:[%s782 + $0x10] sm:$0xff]
    %v786 = vld [vmem:[%s782 + $0x18] sm:$0x3]
    %v788 = vsel %vm72, %v783, 0
    %v791 = vsel %vm72, %v784, 0
    %v794 = vsel %vm72, %v785, 0
    %v797 = vsel %vm72, %v786, 0
    %799 = vmatprep.subr.mxu0 0.0
    %800 = vmatpush1.msra.mxu0 %v60
    %801 = vmatprep.subr.mxu0 0.0
    %802 = vmatpush1.msra.mxu0 %v61
    %803 = vmatprep.subr.mxu0 0.0
    %804 = vmatpush1.msra.mxu0 %v62
    %805 = vmatprep.subr.mxu0 0.0
    %806 = vmatpush1.msra.mxu0 %v63
    %807 = vmatprep.subr.mxu0 0.0
    %808 = vmatpush1.msra.mxu0 %v64
    %809 = vmatprep.subr.mxu0 0.0
    %810 = vmatpush1.msra.mxu0 %v65
    %811 = vmatprep.subr.mxu0 0.0
    %812 = vmatpush1.msra.mxu0 %v66
    %813 = vmatprep.subr.mxu0 0.0
    %814 = vmatpush1.msra.mxu0 %v87
    %815 = vmatprep.subr.mxu0 0.0
    %816 = vmatpush1.msra.mxu0 0.0
    %817 = vmatprep.subr.mxu0 0.0
    %818 = vmatpush1.msra.mxu0 0.0
    %819 = vmatprep.subr.mxu0 0.0
    %820 = vmatpush1.msra.mxu0 0.0
    %821 = vmatprep.subr.mxu0 0.0
    %822 = vmatpush1.msra.mxu0 0.0
    %823 = vmatprep.subr.mxu0 0.0
    %824 = vmatpush1.msra.mxu0 0.0
    %825 = vmatprep.subr.mxu0 0.0
    %826 = vmatpush1.msra.mxu0 0.0
    %827 = vmatprep.subr.mxu0 0.0
    %828 = vmatpush1.msra.mxu0 0.0
    %829 = vmatprep.subr.mxu0 0.0
    %830 = vmatpush1.msra.mxu0 0.0
    %831 = vmatprep.subr.mxu0 0.0
    %832 = vmatpush1.msra.mxu0 0.0
    %833 = vmatprep.subr.mxu0 0.0
    %834 = vmatpush1.msra.mxu0 0.0
    %835 = vmatprep.subr.mxu0 0.0
    %836 = vmatpush1.msra.mxu0 0.0
    %837 = vmatprep.subr.mxu0 0.0
    %838 = vmatpush1.msra.mxu0 0.0
    %839 = vmatprep.subr.mxu0 0.0
    %840 = vmatpush1.msra.mxu0 0.0
    %841 = vmatprep.subr.mxu0 0.0
    %842 = vmatpush1.msra.mxu0 0.0
    %843 = vmatprep.subr.mxu0 0.0
    %844 = vmatpush1.msra.mxu0 0.0
    %845 = vmatprep.subr.mxu0 0.0
    %846 = vmatpush1.msra.mxu0 0.0
    %847 = vmatprep.subr.mxu0 0.0
    %848 = vmatpush1.msra.mxu0 0.0
    %849 = vmatprep.subr.mxu0 0.0
    %850 = vmatpush1.msra.mxu0 0.0
    %851 = vmatprep.subr.mxu0 0.0
    %852 = vmatpush1.msra.mxu0 0.0
    %853 = vmatprep.subr.mxu0 0.0
    %854 = vmatpush1.msra.mxu0 0.0
    %855 = vmatprep.subr.mxu0 0.0
    %856 = vmatpush1.msra.mxu0 0.0
    %857 = vmatprep.subr.mxu0 0.0
    %858 = vmatpush1.msra.mxu0 0.0
    %859 = vmatprep.subr.mxu0 0.0
    %860 = vmatpush1.msra.mxu0 0.0
    %861 = vmatprep.subr.mxu0 0.0
    %862 = vmatpush1.msra.mxu0 0.0
    %863 = vmatprep.mubr.f32.mxu0 0.0
    %864 = vmatmul.mubr.f32.gmra.mrb[0].mxu0 %v788
    %v865 = vpop.f32.mrb[0].mxu0
    %v866 = vadd.f32 0.0, %v865
    %v867 = vpop.f32.mrb[0].mxu0
    %868 = vmatprep.mubr.f32.mxu0 0.0
    %869 = vmatmul.mubr.f32.gmra.mrb[0].mxu0 %v791
    %v870 = vpop.f32.mrb[0].mxu0
    %v871 = vadd.f32 0.0, %v870
    %v872 = vpop.f32.mrb[0].mxu0
    %873 = vmatprep.mubr.f32.mxu0 0.0
    %874 = vmatmul.mubr.f32.gmra.mrb[0].mxu0 %v794
    %v875 = vpop.f32.mrb[0].mxu0
    %v876 = vadd.f32 0.0, %v875
    %v877 = vpop.f32.mrb[0].mxu0
    %878 = vmatprep.mubr.f32.mxu0 0.0
    %879 = vmatmul.mubr.f32.gmra.mrb[0].mxu0 %v797
    %v880 = vpop.f32.mrb[0].mxu0
    %v881 = vadd.f32 0.0, %v880
    %v882 = vpop.f32.mrb[0].mxu0
    %883 = vdwg.mxu0
    %s884 = scalar_lea.vmem %s2, 720
    %v885 = vld [vmem:[%s884] sm:$0xff]
    %v886 = vld [vmem:[%s884 + $0x8] sm:$0xff]
    %v887 = vld [vmem:[%s884 + $0x10] sm:$0xff]
    %v888 = vld [vmem:[%s884 + $0x18] sm:$0xff]
    %v889 = vld [vmem:[%s884 + $0x20] sm:$0xff]
    %v890 = vld [vmem:[%s884 + $0x28] sm:$0xff]
    %v891 = vld [vmem:[%s884 + $0x30] sm:$0xff]
    %v892 = vld [vmem:[%s884 + $0x38] sm:$0xff]
    %v893 = vld [vmem:[%s884 + $0x40] sm:$0xff]
    %v894 = vld [vmem:[%s884 + $0x48] sm:$0xff]
    %v895 = vld [vmem:[%s884 + $0x50] sm:$0xff]
    %v896 = vld [vmem:[%s884 + $0x58] sm:$0xff]
    %v897 = vld [vmem:[%s884 + $0x60] sm:$0xff]
    %v898 = vld [vmem:[%s884 + $0x68] sm:$0xff]
    %v899 = vld [vmem:[%s884 + $0x70] sm:$0xff]
    %v900 = vld [vmem:[%s884 + $0x78] sm:$0xff]
    %v901 = vld [vmem:[%s884 + $0x80] sm:$0xff]
    %v902 = vld [vmem:[%s884 + $0x88] sm:$0xff]
    %v903 = vld [vmem:[%s884 + $0x90] sm:$0xff]
    %v904 = vld [vmem:[%s884 + $0x98] sm:$0xff]
    %v905 = vld [vmem:[%s884 + $0xa0] sm:$0xff]
    %v906 = vld [vmem:[%s884 + $0xa8] sm:$0xff]
    %v907 = vld [vmem:[%s884 + $0xb0] sm:$0xff]
    %v908 = vld [vmem:[%s884 + $0xb8] sm:$0xff]
    %v909 = vld [vmem:[%s884 + $0xc0] sm:$0xff]
    %v910 = vld [vmem:[%s884 + $0xc8] sm:$0xff]
    %v911 = vld [vmem:[%s884 + $0xd0] sm:$0xff]
    %v912 = vld [vmem:[%s884 + $0xd8] sm:$0xff]
    %v913 = vld [vmem:[%s884 + $0xe0] sm:$0xff]
    %v914 = vld [vmem:[%s884 + $0xe8] sm:$0xff]
    %v916 = vsel %vm337, %v866, 0
    %v919 = vsel %vm337, %v871, 0
    %v922 = vsel %vm337, %v876, 0
    %v925 = vsel %vm337, %v881, 0
    %927 = vmatprep.subr.mxu0 %v886
    %928 = vmatpush1.msra.mxu0 %v885
    %929 = vmatprep.subr.mxu0 %v888
    %930 = vmatpush1.msra.mxu0 %v887
    %931 = vmatprep.subr.mxu0 %v890
    %932 = vmatpush1.msra.mxu0 %v889
    %933 = vmatprep.subr.mxu0 %v892
    %934 = vmatpush1.msra.mxu0 %v891
    %935 = vmatprep.subr.mxu0 %v894
    %936 = vmatpush1.msra.mxu0 %v893
    %937 = vmatprep.subr.mxu0 %v896
    %938 = vmatpush1.msra.mxu0 %v895
    %939 = vmatprep.subr.mxu0 %v898
    %940 = vmatpush1.msra.mxu0 %v897
    %941 = vmatprep.subr.mxu0 %v900
    %942 = vmatpush1.msra.mxu0 %v899
    %943 = vmatprep.subr.mxu0 %v902
    %944 = vmatpush1.msra.mxu0 %v901
    %945 = vmatprep.subr.mxu0 %v904
    %946 = vmatpush1.msra.mxu0 %v903
    %947 = vmatprep.subr.mxu0 %v906
    %948 = vmatpush1.msra.mxu0 %v905
    %949 = vmatprep.subr.mxu0 %v908
    %950 = vmatpush1.msra.mxu0 %v907
    %951 = vmatprep.subr.mxu0 %v910
    %952 = vmatpush1.msra.mxu0 %v909
    %953 = vmatprep.subr.mxu0 %v912
    %954 = vmatpush1.msra.mxu0 %v911
    %955 = vmatprep.subr.mxu0 %v914
    %956 = vmatpush1.msra.mxu0 %v913
    %957 = vmatprep.subr.mxu0 0.0
    %958 = vmatpush1.msra.mxu0 0.0
    %959 = vmatprep.subr.mxu0 0.0
    %960 = vmatpush1.msra.mxu0 0.0
    %961 = vmatprep.subr.mxu0 0.0
    %962 = vmatpush1.msra.mxu0 0.0
    %963 = vmatprep.subr.mxu0 0.0
    %964 = vmatpush1.msra.mxu0 0.0
    %965 = vmatprep.subr.mxu0 0.0
    %966 = vmatpush1.msra.mxu0 0.0
    %967 = vmatprep.subr.mxu0 0.0
    %968 = vmatpush1.msra.mxu0 0.0
    %969 = vmatprep.subr.mxu0 0.0
    %970 = vmatpush1.msra.mxu0 0.0
    %971 = vmatprep.subr.mxu0 0.0
    %972 = vmatpush1.msra.mxu0 0.0
    %973 = vmatprep.subr.mxu0 0.0
    %974 = vmatpush1.msra.mxu0 0.0
    %975 = vmatprep.subr.mxu0 0.0
    %976 = vmatpush1.msra.mxu0 0.0
    %977 = vmatprep.subr.mxu0 0.0
    %978 = vmatpush1.msra.mxu0 0.0
    %979 = vmatprep.subr.mxu0 0.0
    %980 = vmatpush1.msra.mxu0 0.0
    %981 = vmatprep.subr.mxu0 0.0
    %982 = vmatpush1.msra.mxu0 0.0
    %983 = vmatprep.subr.mxu0 0.0
    %984 = vmatpush1.msra.mxu0 0.0
    %985 = vmatprep.subr.mxu0 0.0
    %986 = vmatpush1.msra.mxu0 0.0
    %987 = vmatprep.subr.mxu0 0.0
    %988 = vmatpush1.msra.mxu0 0.0
    %989 = vmatprep.subr.mxu0 0.0
    %990 = vmatpush1.msra.mxu0 0.0
    %991 = vmatprep.mubr.f32.mxu0 0.0
    %992 = vmatmul.mubr.f32.gmra.mrb[0].mxu0 %v916
    %v993 = vpop.f32.mrb[0].mxu0
    %v994 = vadd.f32 0.0, %v993
    %v995 = vpop.f32.mrb[0].mxu0
    %v996 = vadd.f32 0.0, %v995
    %997 = vmatprep.mubr.f32.mxu0 0.0
    %998 = vmatmul.mubr.f32.gmra.mrb[0].mxu0 %v919
    %v999 = vpop.f32.mrb[0].mxu0
    %v1000 = vadd.f32 0.0, %v999
    %v1001 = vpop.f32.mrb[0].mxu0
    %v1002 = vadd.f32 0.0, %v1001
    %1003 = vmatprep.mubr.f32.mxu0 0.0
    %1004 = vmatmul.mubr.f32.gmra.mrb[0].mxu0 %v922
    %v1005 = vpop.f32.mrb[0].mxu0
    %v1006 = vadd.f32 0.0, %v1005
    %v1007 = vpop.f32.mrb[0].mxu0
    %v1008 = vadd.f32 0.0, %v1007
    %1009 = vmatprep.mubr.f32.mxu0 0.0
    %1010 = vmatmul.mubr.f32.gmra.mrb[0].mxu0 %v925
    %v1011 = vpop.f32.mrb[0].mxu0
    %v1012 = vadd.f32 0.0, %v1011
    %v1013 = vpop.f32.mrb[0].mxu0
    %v1014 = vadd.f32 0.0, %v1013
    %1015 = vdwg.mxu0
    %v1016 = vadd.f32 %v774, %v994
    %v1017 = vadd.f32 %v775, %v996
    %v1018 = vadd.f32 %v776, %v1000
    %v1019 = vadd.f32 %v777, %v1002
    %v1020 = vadd.f32 %v778, %v1006
    %v1021 = vadd.f32 %v779, %v1008
    %v1022 = vadd.f32 %v780, %v1012
    %v1023 = vadd.f32 %v781, %v1014
    %s1024 = scalar_lea.vmem %s1, 128
    %v1025 = vld [vmem:[%s1024] sm:$0xff]
    %v1026 = vld [vmem:[%s1024 + $0x8] sm:$0xff]
    %v1027 = vld [vmem:[%s1024 + $0x10] sm:$0xff]
    %v1028 = vld [vmem:[%s1024 + $0x18] sm:$0x3]
    %v1030 = vsel %vm72, %v1025, 0
    %v1033 = vsel %vm72, %v1026, 0
    %v1036 = vsel %vm72, %v1027, 0
    %v1039 = vsel %vm72, %v1028, 0
    %1041 = vmatprep.subr.mxu0 0.0
    %1042 = vmatpush1.msra.mxu0 %v60
    %1043 = vmatprep.subr.mxu0 0.0
    %1044 = vmatpush1.msra.mxu0 %v61
    %1045 = vmatprep.subr.mxu0 0.0
    %1046 = vmatpush1.msra.mxu0 %v62
    %1047 = vmatprep.subr.mxu0 0.0
    %1048 = vmatpush1.msra.mxu0 %v63
    %1049 = vmatprep.subr.mxu0 0.0
    %1050 = vmatpush1.msra.mxu0 %v64
    %1051 = vmatprep.subr.mxu0 0.0
    %1052 = vmatpush1.msra.mxu0 %v65
    %1053 = vmatprep.subr.mxu0 0.0
    %1054 = vmatpush1.msra.mxu0 %v66
    %1055 = vmatprep.subr.mxu0 0.0
    %1056 = vmatpush1.msra.mxu0 %v87
    %1057 = vmatprep.subr.mxu0 0.0
    %1058 = vmatpush1.msra.mxu0 0.0
    %1059 = vmatprep.subr.mxu0 0.0
    %1060 = vmatpush1.msra.mxu0 0.0
    %1061 = vmatprep.subr.mxu0 0.0
    %1062 = vmatpush1.msra.mxu0 0.0
    %1063 = vmatprep.subr.mxu0 0.0
    %1064 = vmatpush1.msra.mxu0 0.0
    %1065 = vmatprep.subr.mxu0 0.0
    %1066 = vmatpush1.msra.mxu0 0.0
    %1067 = vmatprep.subr.mxu0 0.0
    %1068 = vmatpush1.msra.mxu0 0.0
    %1069 = vmatprep.subr.mxu0 0.0
    %1070 = vmatpush1.msra.mxu0 0.0
    %1071 = vmatprep.subr.mxu0 0.0
    %1072 = vmatpush1.msra.mxu0 0.0
    %1073 = vmatprep.subr.mxu0 0.0
    %1074 = vmatpush1.msra.mxu0 0.0
    %1075 = vmatprep.subr.mxu0 0.0
    %1076 = vmatpush1.msra.mxu0 0.0
    %1077 = vmatprep.subr.mxu0 0.0
    %1078 = vmatpush1.msra.mxu0 0.0
    %1079 = vmatprep.subr.mxu0 0.0
    %1080 = vmatpush1.msra.mxu0 0.0
    %1081 = vmatprep.subr.mxu0 0.0
    %1082 = vmatpush1.msra.mxu0 0.0
    %1083 = vmatprep.subr.mxu0 0.0
    %1084 = vmatpush1.msra.mxu0 0.0
    %1085 = vmatprep.subr.mxu0 0.0
    %1086 = vmatpush1.msra.mxu0 0.0
    %1087 = vmatprep.subr.mxu0 0.0
    %1088 = vmatpush1.msra.mxu0 0.0
    %1089 = vmatprep.subr.mxu0 0.0
    %1090 = vmatpush1.msra.mxu0 0.0
    %1091 = vmatprep.subr.mxu0 0.0
    %1092 = vmatpush1.msra.mxu0 0.0
    %1093 = vmatprep.subr.mxu0 0.0
    %1094 = vmatpush1.msra.mxu0 0.0
    %1095 = vmatprep.subr.mxu0 0.0
    %1096 = vmatpush1.msra.mxu0 0.0
    %1097 = vmatprep.subr.mxu0 0.0
    %1098 = vmatpush1.msra.mxu0 0.0
    %1099 = vmatprep.subr.mxu0 0.0
    %1100 = vmatpush1.msra.mxu0 0.0
    %1101 = vmatprep.subr.mxu0 0.0
    %1102 = vmatpush1.msra.mxu0 0.0
    %1103 = vmatprep.subr.mxu0 0.0
    %1104 = vmatpush1.msra.mxu0 0.0
    %1105 = vmatprep.mubr.f32.mxu0 0.0
    %1106 = vmatmul.mubr.f32.gmra.mrb[0].mxu0 %v1030
    %v1107 = vpop.f32.mrb[0].mxu0
    %v1108 = vadd.f32 0.0, %v1107
    %v1109 = vpop.f32.mrb[0].mxu0
    %1110 = vmatprep.mubr.f32.mxu0 0.0
    %1111 = vmatmul.mubr.f32.gmra.mrb[0].mxu0 %v1033
    %v1112 = vpop.f32.mrb[0].mxu0
    %v1113 = vadd.f32 0.0, %v1112
    %v1114 = vpop.f32.mrb[0].mxu0
    %1115 = vmatprep.mubr.f32.mxu0 0.0
    %1116 = vmatmul.mubr.f32.gmra.mrb[0].mxu0 %v1036
    %v1117 = vpop.f32.mrb[0].mxu0
    %v1118 = vadd.f32 0.0, %v1117
    %v1119 = vpop.f32.mrb[0].mxu0
    %1120 = vmatprep.mubr.f32.mxu0 0.0
    %1121 = vmatmul.mubr.f32.gmra.mrb[0].mxu0 %v1039
    %v1122 = vpop.f32.mrb[0].mxu0
    %v1123 = vadd.f32 0.0, %v1122
    %v1124 = vpop.f32.mrb[0].mxu0
    %1125 = vdwg.mxu0
    %s1126 = scalar_lea.vmem %s2, 960
    %v1127 = vld [vmem:[%s1126] sm:$0xff]
    %v1128 = vld [vmem:[%s1126 + $0x8] sm:$0xff]
    %v1129 = vld [vmem:[%s1126 + $0x10] sm:$0xff]
    %v1130 = vld [vmem:[%s1126 + $0x18] sm:$0xff]
    %v1131 = vld [vmem:[%s1126 + $0x20] sm:$0xff]
    %v1132 = vld [vmem:[%s1126 + $0x28] sm:$0xff]
    %v1133 = vld [vmem:[%s1126 + $0x30] sm:$0xff]
    %v1134 = vld [vmem:[%s1126 + $0x38] sm:$0xff]
    %v1135 = vld [vmem:[%s1126 + $0x40] sm:$0xff]
    %v1136 = vld [vmem:[%s1126 + $0x48] sm:$0xff]
    %v1137 = vld [vmem:[%s1126 + $0x50] sm:$0xff]
    %v1138 = vld [vmem:[%s1126 + $0x58] sm:$0xff]
    %v1139 = vld [vmem:[%s1126 + $0x60] sm:$0xff]
    %v1140 = vld [vmem:[%s1126 + $0x68] sm:$0xff]
    %v1141 = vld [vmem:[%s1126 + $0x70] sm:$0xff]
    %v1142 = vld [vmem:[%s1126 + $0x78] sm:$0xff]
    %v1143 = vld [vmem:[%s1126 + $0x80] sm:$0xff]
    %v1144 = vld [vmem:[%s1126 + $0x88] sm:$0xff]
    %v1145 = vld [vmem:[%s1126 + $0x90] sm:$0xff]
    %v1146 = vld [vmem:[%s1126 + $0x98] sm:$0xff]
    %v1147 = vld [vmem:[%s1126 + $0xa0] sm:$0xff]
    %v1148 = vld [vmem:[%s1126 + $0xa8] sm:$0xff]
    %v1149 = vld [vmem:[%s1126 + $0xb0] sm:$0xff]
    %v1150 = vld [vmem:[%s1126 + $0xb8] sm:$0xff]
    %v1151 = vld [vmem:[%s1126 + $0xc0] sm:$0xff]
    %v1152 = vld [vmem:[%s1126 + $0xc8] sm:$0xff]
    %v1153 = vld [vmem:[%s1126 + $0xd0] sm:$0xff]
    %v1154 = vld [vmem:[%s1126 + $0xd8] sm:$0xff]
    %v1155 = vld [vmem:[%s1126 + $0xe0] sm:$0xff]
    %v1156 = vld [vmem:[%s1126 + $0xe8] sm:$0xff]
    %v1158 = vsel %vm337, %v1108, 0
    %v1161 = vsel %vm337, %v1113, 0
    %v1164 = vsel %vm337, %v1118, 0
    %v1167 = vsel %vm337, %v1123, 0
    %1169 = vmatprep.subr.mxu0 %v1128
    %1170 = vmatpush1.msra.mxu0 %v1127
    %1171 = vmatprep.subr.mxu0 %v1130
    %1172 = vmatpush1.msra.mxu0 %v1129
    %1173 = vmatprep.subr.mxu0 %v1132
    %1174 = vmatpush1.msra.mxu0 %v1131
    %1175 = vmatprep.subr.mxu0 %v1134
    %1176 = vmatpush1.msra.mxu0 %v1133
    %1177 = vmatprep.subr.mxu0 %v1136
    %1178 = vmatpush1.msra.mxu0 %v1135
    %1179 = vmatprep.subr.mxu0 %v1138
    %1180 = vmatpush1.msra.mxu0 %v1137
    %1181 = vmatprep.subr.mxu0 %v1140
    %1182 = vmatpush1.msra.mxu0 %v1139
    %1183 = vmatprep.subr.mxu0 %v1142
    %1184 = vmatpush1.msra.mxu0 %v1141
    %1185 = vmatprep.subr.mxu0 %v1144
    %1186 = vmatpush1.msra.mxu0 %v1143
    %1187 = vmatprep.subr.mxu0 %v1146
    %1188 = vmatpush1.msra.mxu0 %v1145
    %1189 = vmatprep.subr.mxu0 %v1148
    %1190 = vmatpush1.msra.mxu0 %v1147
    %1191 = vmatprep.subr.mxu0 %v1150
    %1192 = vmatpush1.msra.mxu0 %v1149
    %1193 = vmatprep.subr.mxu0 %v1152
    %1194 = vmatpush1.msra.mxu0 %v1151
    %1195 = vmatprep.subr.mxu0 %v1154
    %1196 = vmatpush1.msra.mxu0 %v1153
    %1197 = vmatprep.subr.mxu0 %v1156
    %1198 = vmatpush1.msra.mxu0 %v1155
    %1199 = vmatprep.subr.mxu0 0.0
    %1200 = vmatpush1.msra.mxu0 0.0
    %1201 = vmatprep.subr.mxu0 0.0
    %1202 = vmatpush1.msra.mxu0 0.0
    %1203 = vmatprep.subr.mxu0 0.0
    %1204 = vmatpush1.msra.mxu0 0.0
    %1205 = vmatprep.subr.mxu0 0.0
    %1206 = vmatpush1.msra.mxu0 0.0
    %1207 = vmatprep.subr.mxu0 0.0
    %1208 = vmatpush1.msra.mxu0 0.0
    %1209 = vmatprep.subr.mxu0 0.0
    %1210 = vmatpush1.msra.mxu0 0.0
    %1211 = vmatprep.subr.mxu0 0.0
    %1212 = vmatpush1.msra.mxu0 0.0
    %1213 = vmatprep.subr.mxu0 0.0
    %1214 = vmatpush1.msra.mxu0 0.0
    %1215 = vmatprep.subr.mxu0 0.0
    %1216 = vmatpush1.msra.mxu0 0.0
    %1217 = vmatprep.subr.mxu0 0.0
    %1218 = vmatpush1.msra.mxu0 0.0
    %1219 = vmatprep.subr.mxu0 0.0
    %1220 = vmatpush1.msra.mxu0 0.0
    %1221 = vmatprep.subr.mxu0 0.0
    %1222 = vmatpush1.msra.mxu0 0.0
    %1223 = vmatprep.subr.mxu0 0.0
    %1224 = vmatpush1.msra.mxu0 0.0
    %1225 = vmatprep.subr.mxu0 0.0
    %1226 = vmatpush1.msra.mxu0 0.0
    %1227 = vmatprep.subr.mxu0 0.0
    %1228 = vmatpush1.msra.mxu0 0.0
    %1229 = vmatprep.subr.mxu0 0.0
    %1230 = vmatpush1.msra.mxu0 0.0
    %1231 = vmatprep.subr.mxu0 0.0
    %1232 = vmatpush1.msra.mxu0 0.0
    %1233 = vmatprep.mubr.f32.mxu0 0.0
    %1234 = vmatmul.mubr.f32.gmra.mrb[0].mxu0 %v1158
    %v1235 = vpop.f32.mrb[0].mxu0
    %v1236 = vadd.f32 0.0, %v1235
    %v1237 = vpop.f32.mrb[0].mxu0
    %v1238 = vadd.f32 0.0, %v1237
    %1239 = vmatprep.mubr.f32.mxu0 0.0
    %1240 = vmatmul.mubr.f32.gmra.mrb[0].mxu0 %v1161
    %v1241 = vpop.f32.mrb[0].mxu0
    %v1242 = vadd.f32 0.0, %v1241
    %v1243 = vpop.f32.mrb[0].mxu0
    %v1244 = vadd.f32 0.0, %v1243
    %1245 = vmatprep.mubr.f32.mxu0 0.0
    %1246 = vmatmul.mubr.f32.gmra.mrb[0].mxu0 %v1164
    %v1247 = vpop.f32.mrb[0].mxu0
    %v1248 = vadd.f32 0.0, %v1247
    %v1249 = vpop.f32.mrb[0].mxu0
    %v1250 = vadd.f32 0.0, %v1249
    %1251 = vmatprep.mubr.f32.mxu0 0.0
    %1252 = vmatmul.mubr.f32.gmra.mrb[0].mxu0 %v1167
    %v1253 = vpop.f32.mrb[0].mxu0
    %v1254 = vadd.f32 0.0, %v1253
    %v1255 = vpop.f32.mrb[0].mxu0
    %v1256 = vadd.f32 0.0, %v1255
    %1257 = vdwg.mxu0
    %v1258 = vadd.f32 %v1016, %v1236
    %v1259 = vadd.f32 %v1017, %v1238
    %v1260 = vadd.f32 %v1018, %v1242
    %v1261 = vadd.f32 %v1019, %v1244
    %v1262 = vadd.f32 %v1020, %v1248
    %v1263 = vadd.f32 %v1021, %v1250
    %v1264 = vadd.f32 %v1022, %v1254
    %v1265 = vadd.f32 %v1023, %v1256
    %v1266 = vld [vmem:[%s3] sm:$0x3]
    %v1268 = vlaneseq
    %v1269 = vshrl.u32 %v1268, 7
    %v1270 = vsub.s32 0, %v1269
    %v1271 = vrot.slane %v1266, %v1270
    %v1272 = vlaneseq
    %v1273 = vshrl.u32 %v1272, 7
    %v1274 = vsub.s32 1, %v1273
    %v1275 = vrot.slane %v1266, %v1274
    %v1278 = vmul.f32 %v1258, %v1271
    %v1279 = vmul.f32 %v1259, %v1275
    %v1280 = vmul.f32 %v1260, %v1271
    %v1281 = vmul.f32 %v1261, %v1275
    %v1282 = vmul.f32 %v1262, %v1271
    %v1283 = vmul.f32 %v1263, %v1275
    %v1284 = vmul.f32 %v1264, %v1271
    %v1285 = vmul.f32 %v1265, %v1275
    %v1286 = vld [vmem:[%s4] sm:$0x3]
    %v1288 = vlaneseq
    %v1289 = vshrl.u32 %v1288, 7
    %v1290 = vsub.s32 0, %v1289
    %v1291 = vrot.slane %v1286, %v1290
    %v1292 = vlaneseq
    %v1293 = vshrl.u32 %v1292, 7
    %v1294 = vsub.s32 1, %v1293
    %v1295 = vrot.slane %v1286, %v1294
    %v1298 = vadd.f32 %v1278, %v1291
    %v1299 = vadd.f32 %v1279, %v1295
    %v1300 = vadd.f32 %v1280, %v1291
    %v1301 = vadd.f32 %v1281, %v1295
    %v1302 = vadd.f32 %v1282, %v1291
    %v1303 = vadd.f32 %v1283, %v1295
    %v1304 = vadd.f32 %v1284, %v1291
    %v1305 = vadd.f32 %v1285, %v1295
    %v1306 = vmax.f32 %v1298, 0.0
    %v1307 = vmax.f32 %v1299, 0.0
    %v1308 = vmax.f32 %v1300, 0.0
    %v1309 = vmax.f32 %v1301, 0.0
    %v1310 = vmax.f32 %v1302, 0.0
    %v1311 = vmax.f32 %v1303, 0.0
    %v1312 = vmax.f32 %v1304, 0.0
    %v1313 = vmax.f32 %v1305, 0.0
    %v1314 = vld [vmem:[%s5] sm:$0xff]
    %v1315 = vld [vmem:[%s5 + $0x8] sm:$0x3]
    %vm1316 = vcmask 211968
    %v1318 = vsel %vm1316, %v1314, 0
    %v1321 = vsel %vm1316, %v1315, 0
    %vm1323 = vcmask 1041408
    %v1325 = vsel %vm1323, %v1312, 0
    %v1328 = vsel %vm1323, %v1313, 0
    %1330 = vmatprep.subr.mxu0 %v1307
    %1331 = vmatpush1.msra.mxu0 %v1306
    %1332 = vmatprep.subr.mxu0 %v1309
    %1333 = vmatpush1.msra.mxu0 %v1308
    %1334 = vmatprep.subr.mxu0 %v1311
    %1335 = vmatpush1.msra.mxu0 %v1310
    %1336 = vmatprep.subr.mxu0 %v1328
    %1337 = vmatpush1.msra.mxu0 %v1325
    %1338 = vmatprep.subr.mxu0 0.0
    %1339 = vmatpush1.msra.mxu0 0.0
    %1340 = vmatprep.subr.mxu0 0.0
    %1341 = vmatpush1.msra.mxu0 0.0
    %1342 = vmatprep.subr.mxu0 0.0
    %1343 = vmatpush1.msra.mxu0 0.0
    %1344 = vmatprep.subr.mxu0 0.0
    %1345 = vmatpush1.msra.mxu0 0.0
    %1346 = vmatprep.subr.mxu0 0.0
    %1347 = vmatpush1.msra.mxu0 0.0
    %1348 = vmatprep.subr.mxu0 0.0
    %1349 = vmatpush1.msra.mxu0 0.0
    %1350 = vmatprep.subr.mxu0 0.0
    %1351 = vmatpush1.msra.mxu0 0.0
    %1352 = vmatprep.subr.mxu0 0.0
    %1353 = vmatpush1.msra.mxu0 0.0
    %1354 = vmatprep.subr.mxu0 0.0
    %1355 = vmatpush1.msra.mxu0 0.0
    %1356 = vmatprep.subr.mxu0 0.0
    %1357 = vmatpush1.msra.mxu0 0.0
    %1358 = vmatprep.subr.mxu0 0.0
    %1359 = vmatpush1.msra.mxu0 0.0
    %1360 = vmatprep.subr.mxu0 0.0
    %1361 = vmatpush1.msra.mxu0 0.0
    %1362 = vmatprep.subr.mxu0 0.0
    %1363 = vmatpush1.msra.mxu0 0.0
    %1364 = vmatprep.subr.mxu0 0.0
    %1365 = vmatpush1.msra.mxu0 0.0
    %1366 = vmatprep.subr.mxu0 0.0
    %1367 = vmatpush1.msra.mxu0 0.0
    %1368 = vmatprep.subr.mxu0 0.0
    %1369 = vmatpush1.msra.mxu0 0.0
    %1370 = vmatprep.subr.mxu0 0.0
    %1371 = vmatpush1.msra.mxu0 0.0
    %1372 = vmatprep.subr.mxu0 0.0
    %1373 = vmatpush1.msra.mxu0 0.0
    %1374 = vmatprep.subr.mxu0 0.0
    %1375 = vmatpush1.msra.mxu0 0.0
    %1376 = vmatprep.subr.mxu0 0.0
    %1377 = vmatpush1.msra.mxu0 0.0
    %1378 = vmatprep.subr.mxu0 0.0
    %1379 = vmatpush1.msra.mxu0 0.0
    %1380 = vmatprep.subr.mxu0 0.0
    %1381 = vmatpush1.msra.mxu0 0.0
    %1382 = vmatprep.subr.mxu0 0.0
    %1383 = vmatpush1.msra.mxu0 0.0
    %1384 = vmatprep.subr.mxu0 0.0
    %1385 = vmatpush1.msra.mxu0 0.0
    %1386 = vmatprep.subr.mxu0 0.0
    %1387 = vmatpush1.msra.mxu0 0.0
    %1388 = vmatprep.subr.mxu0 0.0
    %1389 = vmatpush1.msra.mxu0 0.0
    %1390 = vmatprep.subr.mxu0 0.0
    %1391 = vmatpush1.msra.mxu0 0.0
    %1392 = vmatprep.subr.mxu0 0.0
    %1393 = vmatpush1.msra.mxu0 0.0
    %1394 = vmatprep.mubr.f32.mxu0 0.0
    %1395 = vmatmul.mubr.f32.gmra.mrb[0].mxu0 %v1318
    %v1396 = vpop.f32.mrb[0].mxu0
    %v1397 = vadd.f32 0.0, %v1396
    %v1398 = vpop.f32.mrb[0].mxu0
    %v1399 = vadd.f32 0.0, %v1398
    %1400 = vmatprep.mubr.f32.mxu0 0.0
    %1401 = vmatmul.mubr.f32.gmra.mrb[0].mxu0 %v1321
    %v1402 = vpop.f32.mrb[0].mxu0
    %v1403 = vadd.f32 0.0, %v1402
    %v1404 = vpop.f32.mrb[0].mxu0
    %v1405 = vadd.f32 0.0, %v1404
    %1406 = vdwg.mxu0
    %v1407 = vld [vmem:[%s6] sm:$0xff]
    %v1408 = vld [vmem:[%s6 + $0x8] sm:$0xff]
    %v1409 = vld [vmem:[%s6 + $0x10] sm:$0xff]
    %v1410 = vld [vmem:[%s6 + $0x18] sm:$0xff]
    %v1411 = vld [vmem:[%s6 + $0x20] sm:$0xff]
    %v1412 = vld [vmem:[%s6 + $0x28] sm:$0xff]
    %v1413 = vld [vmem:[%s6 + $0x30] sm:$0xff]
    %v1414 = vld [vmem:[%s6 + $0x38] sm:$0xff]
    %v1415 = vld [vmem:[%s6 + $0x40] sm:$0xff]
    %v1416 = vld [vmem:[%s6 + $0x48] sm:$0xff]
    %v1417 = vld [vmem:[%s6 + $0x50] sm:$0xff]
    %v1418 = vld [vmem:[%s6 + $0x58] sm:$0xff]
    %v1419 = vld [vmem:[%s6 + $0x60] sm:$0xff]
    %v1420 = vld [vmem:[%s6 + $0x68] sm:$0xff]
    %v1421 = vld [vmem:[%s6 + $0x70] sm:$0xff]
    %v1422 = vld [vmem:[%s6 + $0x78] sm:$0xff]
    %v1423 = vld [vmem:[%s6 + $0x80] sm:$0xff]
    %v1424 = vld [vmem:[%s6 + $0x88] sm:$0xff]
    %v1425 = vld [vmem:[%s6 + $0x90] sm:$0xff]
    %v1426 = vld [vmem:[%s6 + $0x98] sm:$0xff]
    %v1427 = vld [vmem:[%s6 + $0xa0] sm:$0xff]
    %v1428 = vld [vmem:[%s6 + $0xa8] sm:$0xff]
    %v1429 = vld [vmem:[%s6 + $0xb0] sm:$0xff]
    %v1430 = vld [vmem:[%s6 + $0xb8] sm:$0xff]
    %v1431 = vld [vmem:[%s6 + $0xc0] sm:$0xff]
    %v1432 = vld [vmem:[%s6 + $0xc8] sm:$0xff]
    %v1433 = vld [vmem:[%s6 + $0xd0] sm:$0xff]
    %v1434 = vld [vmem:[%s6 + $0xd8] sm:$0xff]
    %v1435 = vld [vmem:[%s6 + $0xe0] sm:$0xff]
    %v1436 = vld [vmem:[%s6 + $0xe8] sm:$0xff]
    %v1437 = vld [vmem:[%s6 + $0xf0] sm:$0xff]
    %v1438 = vld [vmem:[%s6 + $0xf8] sm:$0xff]
    %v1439 = vld [vmem:[%s6 + $0x100] sm:$0xff]
    %v1440 = vld [vmem:[%s6 + $0x108] sm:$0xff]
    %v1441 = vld [vmem:[%s6 + $0x110] sm:$0xff]
    %v1442 = vld [vmem:[%s6 + $0x118] sm:$0xff]
    %v1443 = vld [vmem:[%s6 + $0x120] sm:$0xff]
    %v1444 = vld [vmem:[%s6 + $0x128] sm:$0xff]
    %v1445 = vld [vmem:[%s6 + $0x130] sm:$0xff]
    %v1446 = vld [vmem:[%s6 + $0x138] sm:$0xff]
    %v1447 = vld [vmem:[%s6 + $0x140] sm:$0xff]
    %v1448 = vld [vmem:[%s6 + $0x148] sm:$0xff]
    %v1449 = vld [vmem:[%s6 + $0x150] sm:$0xff]
    %v1450 = vld [vmem:[%s6 + $0x158] sm:$0xff]
    %v1451 = vld [vmem:[%s6 + $0x160] sm:$0xff]
    %v1452 = vld [vmem:[%s6 + $0x168] sm:$0xff]
    %v1453 = vld [vmem:[%s6 + $0x170] sm:$0xff]
    %v1454 = vld [vmem:[%s6 + $0x178] sm:$0xff]
    %v1455 = vld [vmem:[%s6 + $0x180] sm:$0xff]
    %v1456 = vld [vmem:[%s6 + $0x188] sm:$0xff]
    %v1457 = vld [vmem:[%s6 + $0x190] sm:$0xff]
    %v1458 = vld [vmem:[%s6 + $0x198] sm:$0xff]
    %s1459 = scalar_lea.vmem %s5, 16
    %v1460 = vld [vmem:[%s1459] sm:$0xff]
    %v1461 = vld [vmem:[%s1459 + $0x8] sm:$0x3]
    %v1463 = vsel %vm1316, %v1460, 0
    %v1466 = vsel %vm1316, %v1461, 0
    %1468 = vmatprep.subr.mxu0 %v1307
    %1469 = vmatpush1.msra.mxu0 %v1306
    %1470 = vmatprep.subr.mxu0 %v1309
    %1471 = vmatpush1.msra.mxu0 %v1308
    %1472 = vmatprep.subr.mxu0 %v1311
    %1473 = vmatpush1.msra.mxu0 %v1310
    %1474 = vmatprep.subr.mxu0 %v1328
    %1475 = vmatpush1.msra.mxu0 %v1325
    %1476 = vmatprep.subr.mxu0 0.0
    %1477 = vmatpush1.msra.mxu0 0.0
    %1478 = vmatprep.subr.mxu0 0.0
    %1479 = vmatpush1.msra.mxu0 0.0
    %1480 = vmatprep.subr.mxu0 0.0
    %1481 = vmatpush1.msra.mxu0 0.0
    %1482 = vmatprep.subr.mxu0 0.0
    %1483 = vmatpush1.msra.mxu0 0.0
    %1484 = vmatprep.subr.mxu0 0.0
    %1485 = vmatpush1.msra.mxu0 0.0
    %1486 = vmatprep.subr.mxu0 0.0
    %1487 = vmatpush1.msra.mxu0 0.0
    %1488 = vmatprep.subr.mxu0 0.0
    %1489 = vmatpush1.msra.mxu0 0.0
    %1490 = vmatprep.subr.mxu0 0.0
    %1491 = vmatpush1.msra.mxu0 0.0
    %1492 = vmatprep.subr.mxu0 0.0
    %1493 = vmatpush1.msra.mxu0 0.0
    %1494 = vmatprep.subr.mxu0 0.0
    %1495 = vmatpush1.msra.mxu0 0.0
    %1496 = vmatprep.subr.mxu0 0.0
    %1497 = vmatpush1.msra.mxu0 0.0
    %1498 = vmatprep.subr.mxu0 0.0
    %1499 = vmatpush1.msra.mxu0 0.0
    %1500 = vmatprep.subr.mxu0 0.0
    %1501 = vmatpush1.msra.mxu0 0.0
    %1502 = vmatprep.subr.mxu0 0.0
    %1503 = vmatpush1.msra.mxu0 0.0
    %1504 = vmatprep.subr.mxu0 0.0
    %1505 = vmatpush1.msra.mxu0 0.0
    %1506 = vmatprep.subr.mxu0 0.0
    %1507 = vmatpush1.msra.mxu0 0.0
    %1508 = vmatprep.subr.mxu0 0.0
    %1509 = vmatpush1.msra.mxu0 0.0
    %1510 = vmatprep.subr.mxu0 0.0
    %1511 = vmatpush1.msra.mxu0 0.0
    %1512 = vmatprep.subr.mxu0 0.0
    %1513 = vmatpush1.msra.mxu0 0.0
    %1514 = vmatprep.subr.mxu0 0.0
    %1515 = vmatpush1.msra.mxu0 0.0
    %1516 = vmatprep.subr.mxu0 0.0
    %1517 = vmatpush1.msra.mxu0 0.0
    %1518 = vmatprep.subr.mxu0 0.0
    %1519 = vmatpush1.msra.mxu0 0.0
    %1520 = vmatprep.subr.mxu0 0.0
    %1521 = vmatpush1.msra.mxu0 0.0
    %1522 = vmatprep.subr.mxu0 0.0
    %1523 = vmatpush1.msra.mxu0 0.0
    %1524 = vmatprep.subr.mxu0 0.0
    %1525 = vmatpush1.msra.mxu0 0.0
    %1526 = vmatprep.subr.mxu0 0.0
    %1527 = vmatpush1.msra.mxu0 0.0
    %1528 = vmatprep.subr.mxu0 0.0
    %1529 = vmatpush1.msra.mxu0 0.0
    %1530 = vmatprep.subr.mxu0 0.0
    %1531 = vmatpush1.msra.mxu0 0.0
    %1532 = vmatprep.mubr.f32.mxu0 0.0
    %1533 = vmatmul.mubr.f32.gmra.mrb[0].mxu0 %v1463
    %v1534 = vpop.f32.mrb[0].mxu0
    %v1535 = vadd.f32 0.0, %v1534
    %v1536 = vpop.f32.mrb[0].mxu0
    %v1537 = vadd.f32 0.0, %v1536
    %1538 = vmatprep.mubr.f32.mxu0 0.0
    %1539 = vmatmul.mubr.f32.gmra.mrb[0].mxu0 %v1466
    %v1540 = vpop.f32.mrb[0].mxu0
    %v1541 = vadd.f32 0.0, %v1540
    %v1542 = vpop.f32.mrb[0].mxu0
    %v1543 = vadd.f32 0.0, %v1542
    %1544 = vdwg.mxu0
    %s1545 = scalar_lea.vmem %s6, 416
    %v1546 = vld [vmem:[%s1545] sm:$0xff]
    %v1547 = vld [vmem:[%s1545 + $0x8] sm:$0xff]
    %v1548 = vld [vmem:[%s1545 + $0x10] sm:$0xff]
    %v1549 = vld [vmem:[%s1545 + $0x18] sm:$0xff]
    %v1550 = vld [vmem:[%s1545 + $0x20] sm:$0xff]
    %v1551 = vld [vmem:[%s1545 + $0x28] sm:$0xff]
    %v1552 = vld [vmem:[%s1545 + $0x30] sm:$0xff]
    %v1553 = vld [vmem:[%s1545 + $0x38] sm:$0xff]
    %v1554 = vld [vmem:[%s1545 + $0x40] sm:$0xff]
    %v1555 = vld [vmem:[%s1545 + $0x48] sm:$0xff]
    %v1556 = vld [vmem:[%s1545 + $0x50] sm:$0xff]
    %v1557 = vld [vmem:[%s1545 + $0x58] sm:$0xff]
    %v1558 = vld [vmem:[%s1545 + $0x60] sm:$0xff]
    %v1559 = vld [vmem:[%s1545 + $0x68] sm:$0xff]
    %v1560 = vld [vmem:[%s1545 + $0x70] sm:$0xff]
    %v1561 = vld [vmem:[%s1545 + $0x78] sm:$0xff]
    %v1562 = vld [vmem:[%s1545 + $0x80] sm:$0xff]
    %v1563 = vld [vmem:[%s1545 + $0x88] sm:$0xff]
    %v1564 = vld [vmem:[%s1545 + $0x90] sm:$0xff]
    %v1565 = vld [vmem:[%s1545 + $0x98] sm:$0xff]
    %v1566 = vld [vmem:[%s1545 + $0xa0] sm:$0xff]
    %v1567 = vld [vmem:[%s1545 + $0xa8] sm:$0xff]
    %v1568 = vld [vmem:[%s1545 + $0xb0] sm:$0xff]
    %v1569 = vld [vmem:[%s1545 + $0xb8] sm:$0xff]
    %v1570 = vld [vmem:[%s1545 + $0xc0] sm:$0xff]
    %v1571 = vld [vmem:[%s1545 + $0xc8] sm:$0xff]
    %v1572 = vld [vmem:[%s1545 + $0xd0] sm:$0xff]
    %v1573 = vld [vmem:[%s1545 + $0xd8] sm:$0xff]
    %v1574 = vld [vmem:[%s1545 + $0xe0] sm:$0xff]
    %v1575 = vld [vmem:[%s1545 + $0xe8] sm:$0xff]
    %v1576 = vld [vmem:[%s1545 + $0xf0] sm:$0xff]
    %v1577 = vld [vmem:[%s1545 + $0xf8] sm:$0xff]
    %v1578 = vld [vmem:[%s1545 + $0x100] sm:$0xff]
    %v1579 = vld [vmem:[%s1545 + $0x108] sm:$0xff]
    %v1580 = vld [vmem:[%s1545 + $0x110] sm:$0xff]
    %v1581 = vld [vmem:[%s1545 + $0x118] sm:$0xff]
    %v1582 = vld [vmem:[%s1545 + $0x120] sm:$0xff]
    %v1583 = vld [vmem:[%s1545 + $0x128] sm:$0xff]
    %v1584 = vld [vmem:[%s1545 + $0x130] sm:$0xff]
    %v1585 = vld [vmem:[%s1545 + $0x138] sm:$0xff]
    %v1586 = vld [vmem:[%s1545 + $0x140] sm:$0xff]
    %v1587 = vld [vmem:[%s1545 + $0x148] sm:$0xff]
    %v1588 = vld [vmem:[%s1545 + $0x150] sm:$0xff]
    %v1589 = vld [vmem:[%s1545 + $0x158] sm:$0xff]
    %v1590 = vld [vmem:[%s1545 + $0x160] sm:$0xff]
    %v1591 = vld [vmem:[%s1545 + $0x168] sm:$0xff]
    %v1592 = vld [vmem:[%s1545 + $0x170] sm:$0xff]
    %v1593 = vld [vmem:[%s1545 + $0x178] sm:$0xff]
    %v1594 = vld [vmem:[%s1545 + $0x180] sm:$0xff]
    %v1595 = vld [vmem:[%s1545 + $0x188] sm:$0xff]
    %v1596 = vld [vmem:[%s1545 + $0x190] sm:$0xff]
    %v1597 = vld [vmem:[%s1545 + $0x198] sm:$0xff]
    %vm1598 = vcmask 654336
    %v1600 = vsel %vm1598, %v1537, 0
    %v1603 = vsel %vm1598, %v1543, 0
    %1605 = vmatprep.subr.mxu0 %v1547
    %1606 = vmatpush1.msra.mxu0 %v1546
    %1607 = vmatprep.subr.mxu0 %v1549
    %1608 = vmatpush1.msra.mxu0 %v1548
    %1609 = vmatprep.subr.mxu0 %v1551
    %1610 = vmatpush1.msra.mxu0 %v1550
    %1611 = vmatprep.subr.mxu0 %v1553
    %1612 = vmatpush1.msra.mxu0 %v1552
    %1613 = vmatprep.subr.mxu0 %v1555
    %1614 = vmatpush1.msra.mxu0 %v1554
    %1615 = vmatprep.subr.mxu0 %v1557
    %1616 = vmatpush1.msra.mxu0 %v1556
    %1617 = vmatprep.subr.mxu0 %v1559
    %1618 = vmatpush1.msra.mxu0 %v1558
    %1619 = vmatprep.subr.mxu0 %v1561
    %1620 = vmatpush1.msra.mxu0 %v1560
    %1621 = vmatprep.subr.mxu0 %v1563
    %1622 = vmatpush1.msra.mxu0 %v1562
    %1623 = vmatprep.subr.mxu0 %v1565
    %1624 = vmatpush1.msra.mxu0 %v1564
    %1625 = vmatprep.subr.mxu0 %v1567
    %1626 = vmatpush1.msra.mxu0 %v1566
    %1627 = vmatprep.subr.mxu0 %v1569
    %1628 = vmatpush1.msra.mxu0 %v1568
    %1629 = vmatprep.subr.mxu0 %v1571
    %1630 = vmatpush1.msra.mxu0 %v1570
    %1631 = vmatprep.subr.mxu0 %v1573
    %1632 = vmatpush1.msra.mxu0 %v1572
    %1633 = vmatprep.subr.mxu0 %v1575
    %1634 = vmatpush1.msra.mxu0 %v1574
    %1635 = vmatprep.subr.mxu0 %v1577
    %1636 = vmatpush1.msra.mxu0 %v1576
    %1637 = vmatprep.subr.mxu0 %v1579
    %1638 = vmatpush1.msra.mxu0 %v1578
    %1639 = vmatprep.subr.mxu0 %v1581
    %1640 = vmatpush1.msra.mxu0 %v1580
    %1641 = vmatprep.subr.mxu0 %v1583
    %1642 = vmatpush1.msra.mxu0 %v1582
    %1643 = vmatprep.subr.mxu0 %v1585
    %1644 = vmatpush1.msra.mxu0 %v1584
    %1645 = vmatprep.subr.mxu0 %v1587
    %1646 = vmatpush1.msra.mxu0 %v1586
    %1647 = vmatprep.subr.mxu0 %v1589
    %1648 = vmatpush1.msra.mxu0 %v1588
    %1649 = vmatprep.subr.mxu0 %v1591
    %1650 = vmatpush1.msra.mxu0 %v1590
    %1651 = vmatprep.subr.mxu0 %v1593
    %1652 = vmatpush1.msra.mxu0 %v1592
    %1653 = vmatprep.subr.mxu0 %v1595
    %1654 = vmatpush1.msra.mxu0 %v1594
    %1655 = vmatprep.subr.mxu0 %v1597
    %1656 = vmatpush1.msra.mxu0 %v1596
    %1657 = vmatprep.subr.mxu0 0.0
    %1658 = vmatpush1.msra.mxu0 0.0
    %1659 = vmatprep.subr.mxu0 0.0
    %1660 = vmatpush1.msra.mxu0 0.0
    %1661 = vmatprep.subr.mxu0 0.0
    %1662 = vmatpush1.msra.mxu0 0.0
    %1663 = vmatprep.subr.mxu0 0.0
    %1664 = vmatpush1.msra.mxu0 0.0
    %1665 = vmatprep.subr.mxu0 0.0
    %1666 = vmatpush1.msra.mxu0 0.0
    %1667 = vmatprep.subr.mxu0 0.0
    %1668 = vmatpush1.msra.mxu0 0.0
    %1669 = vmatprep.mubr.f32.mxu0 %v1600
    %1670 = vmatmul.mubr.f32.gmra.mrb[0].mxu0 %v1535
    %v1671 = vpop.f32.mrb[0].mxu0
    %v1672 = vadd.f32 0.0, %v1671
    %v1673 = vpop.f32.mrb[0].mxu0
    %v1674 = vadd.f32 0.0, %v1673
    %1675 = vmatprep.mubr.f32.mxu0 %v1603
    %1676 = vmatmul.mubr.f32.gmra.mrb[0].mxu0 %v1541
    %v1677 = vpop.f32.mrb[0].mxu0
    %v1678 = vadd.f32 0.0, %v1677
    %v1679 = vpop.f32.mrb[0].mxu0
    %v1680 = vadd.f32 0.0, %v1679
    %1681 = vdwg.mxu0
    %v1683 = vsel %vm1598, %v1399, 0
    %v1686 = vsel %vm1598, %v1405, 0
    %1688 = vmatprep.subr.mxu0 %v1408
    %1689 = vmatpush1.msra.mxu0 %v1407
    %1690 = vmatprep.subr.mxu0 %v1410
    %1691 = vmatpush1.msra.mxu0 %v1409
    %1692 = vmatprep.subr.mxu0 %v1412
    %1693 = vmatpush1.msra.mxu0 %v1411
    %1694 = vmatprep.subr.mxu0 %v1414
    %1695 = vmatpush1.msra.mxu0 %v1413
    %1696 = vmatprep.subr.mxu0 %v1416
    %1697 = vmatpush1.msra.mxu0 %v1415
    %1698 = vmatprep.subr.mxu0 %v1418
    %1699 = vmatpush1.msra.mxu0 %v1417
    %1700 = vmatprep.subr.mxu0 %v1420
    %1701 = vmatpush1.msra.mxu0 %v1419
    %1702 = vmatprep.subr.mxu0 %v1422
    %1703 = vmatpush1.msra.mxu0 %v1421
    %1704 = vmatprep.subr.mxu0 %v1424
    %1705 = vmatpush1.msra.mxu0 %v1423
    %1706 = vmatprep.subr.mxu0 %v1426
    %1707 = vmatpush1.msra.mxu0 %v1425
    %1708 = vmatprep.subr.mxu0 %v1428
    %1709 = vmatpush1.msra.mxu0 %v1427
    %1710 = vmatprep.subr.mxu0 %v1430
    %1711 = vmatpush1.msra.mxu0 %v1429
    %1712 = vmatprep.subr.mxu0 %v1432
    %1713 = vmatpush1.msra.mxu0 %v1431
    %1714 = vmatprep.subr.mxu0 %v1434
    %1715 = vmatpush1.msra.mxu0 %v1433
    %1716 = vmatprep.subr.mxu0 %v1436
    %1717 = vmatpush1.msra.mxu0 %v1435
    %1718 = vmatprep.subr.mxu0 %v1438
    %1719 = vmatpush1.msra.mxu0 %v1437
    %1720 = vmatprep.subr.mxu0 %v1440
    %1721 = vmatpush1.msra.mxu0 %v1439
    %1722 = vmatprep.subr.mxu0 %v1442
    %1723 = vmatpush1.msra.mxu0 %v1441
    %1724 = vmatprep.subr.mxu0 %v1444
    %1725 = vmatpush1.msra.mxu0 %v1443
    %1726 = vmatprep.subr.mxu0 %v1446
    %1727 = vmatpush1.msra.mxu0 %v1445
    %1728 = vmatprep.subr.mxu0 %v1448
    %1729 = vmatpush1.msra.mxu0 %v1447
    %1730 = vmatprep.subr.mxu0 %v1450
    %1731 = vmatpush1.msra.mxu0 %v1449
    %1732 = vmatprep.subr.mxu0 %v1452
    %1733 = vmatpush1.msra.mxu0 %v1451
    %1734 = vmatprep.subr.mxu0 %v1454
    %1735 = vmatpush1.msra.mxu0 %v1453
    %1736 = vmatprep.subr.mxu0 %v1456
    %1737 = vmatpush1.msra.mxu0 %v1455
    %1738 = vmatprep.subr.mxu0 %v1458
    %1739 = vmatpush1.msra.mxu0 %v1457
    %1740 = vmatprep.subr.mxu0 0.0
    %1741 = vmatpush1.msra.mxu0 0.0
    %1742 = vmatprep.subr.mxu0 0.0
    %1743 = vmatpush1.msra.mxu0 0.0
    %1744 = vmatprep.subr.mxu0 0.0
    %1745 = vmatpush1.msra.mxu0 0.0
    %1746 = vmatprep.subr.mxu0 0.0
    %1747 = vmatpush1.msra.mxu0 0.0
    %1748 = vmatprep.subr.mxu0 0.0
    %1749 = vmatpush1.msra.mxu0 0.0
    %1750 = vmatprep.subr.mxu0 0.0
    %1751 = vmatpush1.msra.mxu0 0.0
    %1752 = vmatprep.mubr.f32.mxu0 %v1683
    %1753 = vmatmul.mubr.f32.gmra.mrb[0].mxu0 %v1397
    %v1754 = vpop.f32.mrb[0].mxu0
    %v1755 = vadd.f32 %v1672, %v1754
    %v1756 = vpop.f32.mrb[0].mxu0
    %v1757 = vadd.f32 %v1674, %v1756
    %1758 = vmatprep.mubr.f32.mxu0 %v1686
    %1759 = vmatmul.mubr.f32.gmra.mrb[0].mxu0 %v1403
    %v1760 = vpop.f32.mrb[0].mxu0
    %v1761 = vadd.f32 %v1678, %v1760
    %v1762 = vpop.f32.mrb[0].mxu0
    %v1763 = vadd.f32 %v1680, %v1762
    %1764 = vdwg.mxu0
    %s1765 = scalar_lea.vmem %s5, 32
    %v1766 = vld [vmem:[%s1765] sm:$0xff]
    %v1767 = vld [vmem:[%s1765 + $0x8] sm:$0x3]
    %v1769 = vsel %vm1316, %v1766, 0
    %v1772 = vsel %vm1316, %v1767, 0
    %1774 = vmatprep.subr.mxu0 %v1307
    %1775 = vmatpush1.msra.mxu0 %v1306
    %1776 = vmatprep.subr.mxu0 %v1309
    %1777 = vmatpush1.msra.mxu0 %v1308
    %1778 = vmatprep.subr.mxu0 %v1311
    %1779 = vmatpush1.msra.mxu0 %v1310
    %1780 = vmatprep.subr.mxu0 %v1328
    %1781 = vmatpush1.msra.mxu0 %v1325
    %1782 = vmatprep.subr.mxu0 0.0
    %1783 = vmatpush1.msra.mxu0 0.0
    %1784 = vmatprep.subr.mxu0 0.0
    %1785 = vmatpush1.msra.mxu0 0.0
    %1786 = vmatprep.subr.mxu0 0.0
    %1787 = vmatpush1.msra.mxu0 0.0
    %1788 = vmatprep.subr.mxu0 0.0
    %1789 = vmatpush1.msra.mxu0 0.0
    %1790 = vmatprep.subr.mxu0 0.0
    %1791 = vmatpush1.msra.mxu0 0.0
    %1792 = vmatprep.subr.mxu0 0.0
    %1793 = vmatpush1.msra.mxu0 0.0
    %1794 = vmatprep.subr.mxu0 0.0
    %1795 = vmatpush1.msra.mxu0 0.0
    %1796 = vmatprep.subr.mxu0 0.0
    %1797 = vmatpush1.msra.mxu0 0.0
    %1798 = vmatprep.subr.mxu0 0.0
    %1799 = vmatpush1.msra.mxu0 0.0
    %1800 = vmatprep.subr.mxu0 0.0
    %1801 = vmatpush1.msra.mxu0 0.0
    %1802 = vmatprep.subr.mxu0 0.0
    %1803 = vmatpush1.msra.mxu0 0.0
    %1804 = vmatprep.subr.mxu0 0.0
    %1805 = vmatpush1.msra.mxu0 0.0
    %1806 = vmatprep.subr.mxu0 0.0
    %1807 = vmatpush1.msra.mxu0 0.0
    %1808 = vmatprep.subr.mxu0 0.0
    %1809 = vmatpush1.msra.mxu0 0.0
    %1810 = vmatprep.subr.mxu0 0.0
    %1811 = vmatpush1.msra.mxu0 0.0
    %1812 = vmatprep.subr.mxu0 0.0
    %1813 = vmatpush1.msra.mxu0 0.0
    %1814 = vmatprep.subr.mxu0 0.0
    %1815 = vmatpush1.msra.mxu0 0.0
    %1816 = vmatprep.subr.mxu0 0.0
    %1817 = vmatpush1.msra.mxu0 0.0
    %1818 = vmatprep.subr.mxu0 0.0
    %1819 = vmatpush1.msra.mxu0 0.0
    %1820 = vmatprep.subr.mxu0 0.0
    %1821 = vmatpush1.msra.mxu0 0.0
    %1822 = vmatprep.subr.mxu0 0.0
    %1823 = vmatpush1.msra.mxu0 0.0
    %1824 = vmatprep.subr.mxu0 0.0
    %1825 = vmatpush1.msra.mxu0 0.0
    %1826 = vmatprep.subr.mxu0 0.0
    %1827 = vmatpush1.msra.mxu0 0.0
    %1828 = vmatprep.subr.mxu0 0.0
    %1829 = vmatpush1.msra.mxu0 0.0
    %1830 = vmatprep.subr.mxu0 0.0
    %1831 = vmatpush1.msra.mxu0 0.0
    %1832 = vmatprep.subr.mxu0 0.0
    %1833 = vmatpush1.msra.mxu0 0.0
    %1834 = vmatprep.subr.mxu0 0.0
    %1835 = vmatpush1.msra.mxu0 0.0
    %1836 = vmatprep.subr.mxu0 0.0
    %1837 = vmatpush1.msra.mxu0 0.0
    %1838 = vmatprep.mubr.f32.mxu0 0.0
    %1839 = vmatmul.mubr.f32.gmra.mrb[0].mxu0 %v1769
    %v1840 = vpop.f32.mrb[0].mxu0
    %v1841 = vadd.f32 0.0, %v1840
    %v1842 = vpop.f32.mrb[0].mxu0
    %v1843 = vadd.f32 0.0, %v1842
    %1844 = vmatprep.mubr.f32.mxu0 0.0
    %1845 = vmatmul.mubr.f32.gmra.mrb[0].mxu0 %v1772
    %v1846 = vpop.f32.mrb[0].mxu0
    %v1847 = vadd.f32 0.0, %v1846
    %v1848 = vpop.f32.mrb[0].mxu0
    %v1849 = vadd.f32 0.0, %v1848
    %1850 = vdwg.mxu0
    %s1851 = scalar_lea.vmem %s6, 832
    %v1852 = vld [vmem:[%s1851] sm:$0xff]
    %v1853 = vld [vmem:[%s1851 + $0x8] sm:$0xff]
    %v1854 = vld [vmem:[%s1851 + $0x10] sm:$0xff]
    %v1855 = vld [vmem:[%s1851 + $0x18] sm:$0xff]
    %v1856 = vld [vmem:[%s1851 + $0x20] sm:$0xff]
    %v1857 = vld [vmem:[%s1851 + $0x28] sm:$0xff]
    %v1858 = vld [vmem:[%s1851 + $0x30] sm:$0xff]
    %v1859 = vld [vmem:[%s1851 + $0x38] sm:$0xff]
    %v1860 = vld [vmem:[%s1851 + $0x40] sm:$0xff]
    %v1861 = vld [vmem:[%s1851 + $0x48] sm:$0xff]
    %v1862 = vld [vmem:[%s1851 + $0x50] sm:$0xff]
    %v1863 = vld [vmem:[%s1851 + $0x58] sm:$0xff]
    %v1864 = vld [vmem:[%s1851 + $0x60] sm:$0xff]
    %v1865 = vld [vmem:[%s1851 + $0x68] sm:$0xff]
    %v1866 = vld [vmem:[%s1851 + $0x70] sm:$0xff]
    %v1867 = vld [vmem:[%s1851 + $0x78] sm:$0xff]
    %v1868 = vld [vmem:[%s1851 + $0x80] sm:$0xff]
    %v1869 = vld [vmem:[%s1851 + $0x88] sm:$0xff]
    %v1870 = vld [vmem:[%s1851 + $0x90] sm:$0xff]
    %v1871 = vld [vmem:[%s1851 + $0x98] sm:$0xff]
    %v1872 = vld [vmem:[%s1851 + $0xa0] sm:$0xff]
    %v1873 = vld [vmem:[%s1851 + $0xa8] sm:$0xff]
    %v1874 = vld [vmem:[%s1851 + $0xb0] sm:$0xff]
    %v1875 = vld [vmem:[%s1851 + $0xb8] sm:$0xff]
    %v1876 = vld [vmem:[%s1851 + $0xc0] sm:$0xff]
    %v1877 = vld [vmem:[%s1851 + $0xc8] sm:$0xff]
    %v1878 = vld [vmem:[%s1851 + $0xd0] sm:$0xff]
    %v1879 = vld [vmem:[%s1851 + $0xd8] sm:$0xff]
    %v1880 = vld [vmem:[%s1851 + $0xe0] sm:$0xff]
    %v1881 = vld [vmem:[%s1851 + $0xe8] sm:$0xff]
    %v1882 = vld [vmem:[%s1851 + $0xf0] sm:$0xff]
    %v1883 = vld [vmem:[%s1851 + $0xf8] sm:$0xff]
    %v1884 = vld [vmem:[%s1851 + $0x100] sm:$0xff]
    %v1885 = vld [vmem:[%s1851 + $0x108] sm:$0xff]
    %v1886 = vld [vmem:[%s1851 + $0x110] sm:$0xff]
    %v1887 = vld [vmem:[%s1851 + $0x118] sm:$0xff]
    %v1888 = vld [vmem:[%s1851 + $0x120] sm:$0xff]
    %v1889 = vld [vmem:[%s1851 + $0x128] sm:$0xff]
    %v1890 = vld [vmem:[%s1851 + $0x130] sm:$0xff]
    %v1891 = vld [vmem:[%s1851 + $0x138] sm:$0xff]
    %v1892 = vld [vmem:[%s1851 + $0x140] sm:$0xff]
    %v1893 = vld [vmem:[%s1851 + $0x148] sm:$0xff]
    %v1894 = vld [vmem:[%s1851 + $0x150] sm:$0xff]
    %v1895 = vld [vmem:[%s1851 + $0x158] sm:$0xff]
    %v1896 = vld [vmem:[%s1851 + $0x160] sm:$0xff]
    %v1897 = vld [vmem:[%s1851 + $0x168] sm:$0xff]
    %v1898 = vld [vmem:[%s1851 + $0x170] sm:$0xff]
    %v1899 = vld [vmem:[%s1851 + $0x178] sm:$0xff]
    %v1900 = vld [vmem:[%s1851 + $0x180] sm:$0xff]
    %v1901 = vld [vmem:[%s1851 + $0x188] sm:$0xff]
    %v1902 = vld [vmem:[%s1851 + $0x190] sm:$0xff]
    %v1903 = vld [vmem:[%s1851 + $0x198] sm:$0xff]
    %v1905 = vsel %vm1598, %v1843, 0
    %v1908 = vsel %vm1598, %v1849, 0
    %1910 = vmatprep.subr.mxu0 %v1853
    %1911 = vmatpush1.msra.mxu0 %v1852
    %1912 = vmatprep.subr.mxu0 %v1855
    %1913 = vmatpush1.msra.mxu0 %v1854
    %1914 = vmatprep.subr.mxu0 %v1857
    %1915 = vmatpush1.msra.mxu0 %v1856
    %1916 = vmatprep.subr.mxu0 %v1859
    %1917 = vmatpush1.msra.mxu0 %v1858
    %1918 = vmatprep.subr.mxu0 %v1861
    %1919 = vmatpush1.msra.mxu0 %v1860
    %1920 = vmatprep.subr.mxu0 %v1863
    %1921 = vmatpush1.msra.mxu0 %v1862
    %1922 = vmatprep.subr.mxu0 %v1865
    %1923 = vmatpush1.msra.mxu0 %v1864
    %1924 = vmatprep.subr.mxu0 %v1867
    %1925 = vmatpush1.msra.mxu0 %v1866
    %1926 = vmatprep.subr.mxu0 %v1869
    %1927 = vmatpush1.msra.mxu0 %v1868
    %1928 = vmatprep.subr.mxu0 %v1871
    %1929 = vmatpush1.msra.mxu0 %v1870
    %1930 = vmatprep.subr.mxu0 %v1873
    %1931 = vmatpush1.msra.mxu0 %v1872
    %1932 = vmatprep.subr.mxu0 %v1875
    %1933 = vmatpush1.msra.mxu0 %v1874
    %1934 = vmatprep.subr.mxu0 %v1877
    %1935 = vmatpush1.msra.mxu0 %v1876
    %1936 = vmatprep.subr.mxu0 %v1879
    %1937 = vmatpush1.msra.mxu0 %v1878
    %1938 = vmatprep.subr.mxu0 %v1881
    %1939 = vmatpush1.msra.mxu0 %v1880
    %1940 = vmatprep.subr.mxu0 %v1883
    %1941 = vmatpush1.msra.mxu0 %v1882
    %1942 = vmatprep.subr.mxu0 %v1885
    %1943 = vmatpush1.msra.mxu0 %v1884
    %1944 = vmatprep.subr.mxu0 %v1887
    %1945 = vmatpush1.msra.mxu0 %v1886
    %1946 = vmatprep.subr.mxu0 %v1889
    %1947 = vmatpush1.msra.mxu0 %v1888
    %1948 = vmatprep.subr.mxu0 %v1891
    %1949 = vmatpush1.msra.mxu0 %v1890
    %1950 = vmatprep.subr.mxu0 %v1893
    %1951 = vmatpush1.msra.mxu0 %v1892
    %1952 = vmatprep.subr.mxu0 %v1895
    %1953 = vmatpush1.msra.mxu0 %v1894
    %1954 = vmatprep.subr.mxu0 %v1897
    %1955 = vmatpush1.msra.mxu0 %v1896
    %1956 = vmatprep.subr.mxu0 %v1899
    %1957 = vmatpush1.msra.mxu0 %v1898
    %1958 = vmatprep.subr.mxu0 %v1901
    %1959 = vmatpush1.msra.mxu0 %v1900
    %1960 = vmatprep.subr.mxu0 %v1903
    %1961 = vmatpush1.msra.mxu0 %v1902
    %1962 = vmatprep.subr.mxu0 0.0
    %1963 = vmatpush1.msra.mxu0 0.0
    %1964 = vmatprep.subr.mxu0 0.0
    %1965 = vmatpush1.msra.mxu0 0.0
    %1966 = vmatprep.subr.mxu0 0.0
    %1967 = vmatpush1.msra.mxu0 0.0
    %1968 = vmatprep.subr.mxu0 0.0
    %1969 = vmatpush1.msra.mxu0 0.0
    %1970 = vmatprep.subr.mxu0 0.0
    %1971 = vmatpush1.msra.mxu0 0.0
    %1972 = vmatprep.subr.mxu0 0.0
    %1973 = vmatpush1.msra.mxu0 0.0
    %1974 = vmatprep.mubr.f32.mxu0 %v1905
    %1975 = vmatmul.mubr.f32.gmra.mrb[0].mxu0 %v1841
    %v1976 = vpop.f32.mrb[0].mxu0
    %v1977 = vadd.f32 0.0, %v1976
    %v1978 = vpop.f32.mrb[0].mxu0
    %v1979 = vadd.f32 0.0, %v1978
    %1980 = vmatprep.mubr.f32.mxu0 %v1908
    %1981 = vmatmul.mubr.f32.gmra.mrb[0].mxu0 %v1847
    %v1982 = vpop.f32.mrb[0].mxu0
    %v1983 = vadd.f32 0.0, %v1982
    %v1984 = vpop.f32.mrb[0].mxu0
    %v1985 = vadd.f32 0.0, %v1984
    %1986 = vdwg.mxu0
    %v1987 = vadd.f32 %v1755, %v1977
    %v1988 = vadd.f32 %v1757, %v1979
    %v1989 = vadd.f32 %v1761, %v1983
    %v1990 = vadd.f32 %v1763, %v1985
    %s1991 = scalar_lea.vmem %s5, 48
    %v1992 = vld [vmem:[%s1991] sm:$0xff]
    %v1993 = vld [vmem:[%s1991 + $0x8] sm:$0x3]
    %v1995 = vsel %vm1316, %v1992, 0
    %v1998 = vsel %vm1316, %v1993, 0
    %2000 = vmatprep.subr.mxu0 %v1307
    %2001 = vmatpush1.msra.mxu0 %v1306
    %2002 = vmatprep.subr.mxu0 %v1309
    %2003 = vmatpush1.msra.mxu0 %v1308
    %2004 = vmatprep.subr.mxu0 %v1311
    %2005 = vmatpush1.msra.mxu0 %v1310
    %2006 = vmatprep.subr.mxu0 %v1328
    %2007 = vmatpush1.msra.mxu0 %v1325
    %2008 = vmatprep.subr.mxu0 0.0
    %2009 = vmatpush1.msra.mxu0 0.0
    %2010 = vmatprep.subr.mxu0 0.0
    %2011 = vmatpush1.msra.mxu0 0.0
    %2012 = vmatprep.subr.mxu0 0.0
    %2013 = vmatpush1.msra.mxu0 0.0
    %2014 = vmatprep.subr.mxu0 0.0
    %2015 = vmatpush1.msra.mxu0 0.0
    %2016 = vmatprep.subr.mxu0 0.0
    %2017 = vmatpush1.msra.mxu0 0.0
    %2018 = vmatprep.subr.mxu0 0.0
    %2019 = vmatpush1.msra.mxu0 0.0
    %2020 = vmatprep.subr.mxu0 0.0
    %2021 = vmatpush1.msra.mxu0 0.0
    %2022 = vmatprep.subr.mxu0 0.0
    %2023 = vmatpush1.msra.mxu0 0.0
    %2024 = vmatprep.subr.mxu0 0.0
    %2025 = vmatpush1.msra.mxu0 0.0
    %2026 = vmatprep.subr.mxu0 0.0
    %2027 = vmatpush1.msra.mxu0 0.0
    %2028 = vmatprep.subr.mxu0 0.0
    %2029 = vmatpush1.msra.mxu0 0.0
    %2030 = vmatprep.subr.mxu0 0.0
    %2031 = vmatpush1.msra.mxu0 0.0
    %2032 = vmatprep.subr.mxu0 0.0
    %2033 = vmatpush1.msra.mxu0 0.0
    %2034 = vmatprep.subr.mxu0 0.0
    %2035 = vmatpush1.msra.mxu0 0.0
    %2036 = vmatprep.subr.mxu0 0.0
    %2037 = vmatpush1.msra.mxu0 0.0
    %2038 = vmatprep.subr.mxu0 0.0
    %2039 = vmatpush1.msra.mxu0 0.0
    %2040 = vmatprep.subr.mxu0 0.0
    %2041 = vmatpush1.msra.mxu0 0.0
    %2042 = vmatprep.subr.mxu0 0.0
    %2043 = vmatpush1.msra.mxu0 0.0
    %2044 = vmatprep.subr.mxu0 0.0
    %2045 = vmatpush1.msra.mxu0 0.0
    %2046 = vmatprep.subr.mxu0 0.0
    %2047 = vmatpush1.msra.mxu0 0.0
    %2048 = vmatprep.subr.mxu0 0.0
    %2049 = vmatpush1.msra.mxu0 0.0
    %2050 = vmatprep.subr.mxu0 0.0
    %2051 = vmatpush1.msra.mxu0 0.0
    %2052 = vmatprep.subr.mxu0 0.0
    %2053 = vmatpush1.msra.mxu0 0.0
    %2054 = vmatprep.subr.mxu0 0.0
    %2055 = vmatpush1.msra.mxu0 0.0
    %2056 = vmatprep.subr.mxu0 0.0
    %2057 = vmatpush1.msra.mxu0 0.0
    %2058 = vmatprep.subr.mxu0 0.0
    %2059 = vmatpush1.msra.mxu0 0.0
    %2060 = vmatprep.subr.mxu0 0.0
    %2061 = vmatpush1.msra.mxu0 0.0
    %2062 = vmatprep.subr.mxu0 0.0
    %2063 = vmatpush1.msra.mxu0 0.0
    %2064 = vmatprep.mubr.f32.mxu0 0.0
    %2065 = vmatmul.mubr.f32.gmra.mrb[0].mxu0 %v1995
    %v2066 = vpop.f32.mrb[0].mxu0
    %v2067 = vadd.f32 0.0, %v2066
    %v2068 = vpop.f32.mrb[0].mxu0
    %v2069 = vadd.f32 0.0, %v2068
    %2070 = vmatprep.mubr.f32.mxu0 0.0
    %2071 = vmatmul.mubr.f32.gmra.mrb[0].mxu0 %v1998
    %v2072 = vpop.f32.mrb[0].mxu0
    %v2073 = vadd.f32 0.0, %v2072
    %v2074 = vpop.f32.mrb[0].mxu0
    %v2075 = vadd.f32 0.0, %v2074
    %2076 = vdwg.mxu0
    %s2077 = scalar_lea.vmem %s6, 1248
    %v2078 = vld [vmem:[%s2077] sm:$0xff]
    %v2079 = vld [vmem:[%s2077 + $0x8] sm:$0xff]
    %v2080 = vld [vmem:[%s2077 + $0x10] sm:$0xff]
    %v2081 = vld [vmem:[%s2077 + $0x18] sm:$0xff]
    %v2082 = vld [vmem:[%s2077 + $0x20] sm:$0xff]
    %v2083 = vld [vmem:[%s2077 + $0x28] sm:$0xff]
    %v2084 = vld [vmem:[%s2077 + $0x30] sm:$0xff]
    %v2085 = vld [vmem:[%s2077 + $0x38] sm:$0xff]
    %v2086 = vld [vmem:[%s2077 + $0x40] sm:$0xff]
    %v2087 = vld [vmem:[%s2077 + $0x48] sm:$0xff]
    %v2088 = vld [vmem:[%s2077 + $0x50] sm:$0xff]
    %v2089 = vld [vmem:[%s2077 + $0x58] sm:$0xff]
    %v2090 = vld [vmem:[%s2077 + $0x60] sm:$0xff]
    %v2091 = vld [vmem:[%s2077 + $0x68] sm:$0xff]
    %v2092 = vld [vmem:[%s2077 + $0x70] sm:$0xff]
    %v2093 = vld [vmem:[%s2077 + $0x78] sm:$0xff]
    %v2094 = vld [vmem:[%s2077 + $0x80] sm:$0xff]
    %v2095 = vld [vmem:[%s2077 + $0x88] sm:$0xff]
    %v2096 = vld [vmem:[%s2077 + $0x90] sm:$0xff]
    %v2097 = vld [vmem:[%s2077 + $0x98] sm:$0xff]
    %v2098 = vld [vmem:[%s2077 + $0xa0] sm:$0xff]
    %v2099 = vld [vmem:[%s2077 + $0xa8] sm:$0xff]
    %v2100 = vld [vmem:[%s2077 + $0xb0] sm:$0xff]
    %v2101 = vld [vmem:[%s2077 + $0xb8] sm:$0xff]
    %v2102 = vld [vmem:[%s2077 + $0xc0] sm:$0xff]
    %v2103 = vld [vmem:[%s2077 + $0xc8] sm:$0xff]
    %v2104 = vld [vmem:[%s2077 + $0xd0] sm:$0xff]
    %v2105 = vld [vmem:[%s2077 + $0xd8] sm:$0xff]
    %v2106 = vld [vmem:[%s2077 + $0xe0] sm:$0xff]
    %v2107 = vld [vmem:[%s2077 + $0xe8] sm:$0xff]
    %v2108 = vld [vmem:[%s2077 + $0xf0] sm:$0xff]
    %v2109 = vld [vmem:[%s2077 + $0xf8] sm:$0xff]
    %v2110 = vld [vmem:[%s2077 + $0x100] sm:$0xff]
    %v2111 = vld [vmem:[%s2077 + $0x108] sm:$0xff]
    %v2112 = vld [vmem:[%s2077 + $0x110] sm:$0xff]
    %v2113 = vld [vmem:[%s2077 + $0x118] sm:$0xff]
    %v2114 = vld [vmem:[%s2077 + $0x120] sm:$0xff]
    %v2115 = vld [vmem:[%s2077 + $0x128] sm:$0xff]
    %v2116 = vld [vmem:[%s2077 + $0x130] sm:$0xff]
    %v2117 = vld [vmem:[%s2077 + $0x138] sm:$0xff]
    %v2118 = vld [vmem:[%s2077 + $0x140] sm:$0xff]
    %v2119 = vld [vmem:[%s2077 + $0x148] sm:$0xff]
    %v2120 = vld [vmem:[%s2077 + $0x150] sm:$0xff]
    %v2121 = vld [vmem:[%s2077 + $0x158] sm:$0xff]
    %v2122 = vld [vmem:[%s2077 + $0x160] sm:$0xff]
    %v2123 = vld [vmem:[%s2077 + $0x168] sm:$0xff]
    %v2124 = vld [vmem:[%s2077 + $0x170] sm:$0xff]
    %v2125 = vld [vmem:[%s2077 + $0x178] sm:$0xff]
    %v2126 = vld [vmem:[%s2077 + $0x180] sm:$0xff]
    %v2127 = vld [vmem:[%s2077 + $0x188] sm:$0xff]
    %v2128 = vld [vmem:[%s2077 + $0x190] sm:$0xff]
    %v2129 = vld [vmem:[%s2077 + $0x198] sm:$0xff]
    %v2131 = vsel %vm1598, %v2069, 0
    %v2134 = vsel %vm1598, %v2075, 0
    %2136 = vmatprep.subr.mxu0 %v2079
    %2137 = vmatpush1.msra.mxu0 %v2078
    %2138 = vmatprep.subr.mxu0 %v2081
    %2139 = vmatpush1.msra.mxu0 %v2080
    %2140 = vmatprep.subr.mxu0 %v2083
    %2141 = vmatpush1.msra.mxu0 %v2082
    %2142 = vmatprep.subr.mxu0 %v2085
    %2143 = vmatpush1.msra.mxu0 %v2084
    %2144 = vmatprep.subr.mxu0 %v2087
    %2145 = vmatpush1.msra.mxu0 %v2086
    %2146 = vmatprep.subr.mxu0 %v2089
    %2147 = vmatpush1.msra.mxu0 %v2088
    %2148 = vmatprep.subr.mxu0 %v2091
    %2149 = vmatpush1.msra.mxu0 %v2090
    %2150 = vmatprep.subr.mxu0 %v2093
    %2151 = vmatpush1.msra.mxu0 %v2092
    %2152 = vmatprep.subr.mxu0 %v2095
    %2153 = vmatpush1.msra.mxu0 %v2094
    %2154 = vmatprep.subr.mxu0 %v2097
    %2155 = vmatpush1.msra.mxu0 %v2096
    %2156 = vmatprep.subr.mxu0 %v2099
    %2157 = vmatpush1.msra.mxu0 %v2098
    %2158 = vmatprep.subr.mxu0 %v2101
    %2159 = vmatpush1.msra.mxu0 %v2100
    %2160 = vmatprep.subr.mxu0 %v2103
    %2161 = vmatpush1.msra.mxu0 %v2102
    %2162 = vmatprep.subr.mxu0 %v2105
    %2163 = vmatpush1.msra.mxu0 %v2104
    %2164 = vmatprep.subr.mxu0 %v2107
    %2165 = vmatpush1.msra.mxu0 %v2106
    %2166 = vmatprep.subr.mxu0 %v2109
    %2167 = vmatpush1.msra.mxu0 %v2108
    %2168 = vmatprep.subr.mxu0 %v2111
    %2169 = vmatpush1.msra.mxu0 %v2110
    %2170 = vmatprep.subr.mxu0 %v2113
    %2171 = vmatpush1.msra.mxu0 %v2112
    %2172 = vmatprep.subr.mxu0 %v2115
    %2173 = vmatpush1.msra.mxu0 %v2114
    %2174 = vmatprep.subr.mxu0 %v2117
    %2175 = vmatpush1.msra.mxu0 %v2116
    %2176 = vmatprep.subr.mxu0 %v2119
    %2177 = vmatpush1.msra.mxu0 %v2118
    %2178 = vmatprep.subr.mxu0 %v2121
    %2179 = vmatpush1.msra.mxu0 %v2120
    %2180 = vmatprep.subr.mxu0 %v2123
    %2181 = vmatpush1.msra.mxu0 %v2122
    %2182 = vmatprep.subr.mxu0 %v2125
    %2183 = vmatpush1.msra.mxu0 %v2124
    %2184 = vmatprep.subr.mxu0 %v2127
    %2185 = vmatpush1.msra.mxu0 %v2126
    %2186 = vmatprep.subr.mxu0 %v2129
    %2187 = vmatpush1.msra.mxu0 %v2128
    %2188 = vmatprep.subr.mxu0 0.0
    %2189 = vmatpush1.msra.mxu0 0.0
    %2190 = vmatprep.subr.mxu0 0.0
    %2191 = vmatpush1.msra.mxu0 0.0
    %2192 = vmatprep.subr.mxu0 0.0
    %2193 = vmatpush1.msra.mxu0 0.0
    %2194 = vmatprep.subr.mxu0 0.0
    %2195 = vmatpush1.msra.mxu0 0.0
    %2196 = vmatprep.subr.mxu0 0.0
    %2197 = vmatpush1.msra.mxu0 0.0
    %2198 = vmatprep.subr.mxu0 0.0
    %2199 = vmatpush1.msra.mxu0 0.0
    %2200 = vmatprep.mubr.f32.mxu0 %v2131
    %2201 = vmatmul.mubr.f32.gmra.mrb[0].mxu0 %v2067
    %v2202 = vpop.f32.mrb[0].mxu0
    %v2203 = vadd.f32 0.0, %v2202
    %v2204 = vpop.f32.mrb[0].mxu0
    %v2205 = vadd.f32 0.0, %v2204
    %2206 = vmatprep.mubr.f32.mxu0 %v2134
    %2207 = vmatmul.mubr.f32.gmra.mrb[0].mxu0 %v2073
    %v2208 = vpop.f32.mrb[0].mxu0
    %v2209 = vadd.f32 0.0, %v2208
    %v2210 = vpop.f32.mrb[0].mxu0
    %v2211 = vadd.f32 0.0, %v2210
    %2212 = vdwg.mxu0
    %v2213 = vadd.f32 %v1987, %v2203
    %v2214 = vadd.f32 %v1988, %v2205
    %v2215 = vadd.f32 %v1989, %v2209
    %v2216 = vadd.f32 %v1990, %v2211
    %s2217 = scalar_lea.vmem %s5, 64
    %v2218 = vld [vmem:[%s2217] sm:$0xff]
    %v2219 = vld [vmem:[%s2217 + $0x8] sm:$0x3]
    %v2221 = vsel %vm1316, %v2218, 0
    %v2224 = vsel %vm1316, %v2219, 0
    %2226 = vmatprep.subr.mxu0 %v1307
    %2227 = vmatpush1.msra.mxu0 %v1306
    %2228 = vmatprep.subr.mxu0 %v1309
    %2229 = vmatpush1.msra.mxu0 %v1308
    %2230 = vmatprep.subr.mxu0 %v1311
    %2231 = vmatpush1.msra.mxu0 %v1310
    %2232 = vmatprep.subr.mxu0 %v1328
    %2233 = vmatpush1.msra.mxu0 %v1325
    %2234 = vmatprep.subr.mxu0 0.0
    %2235 = vmatpush1.msra.mxu0 0.0
    %2236 = vmatprep.subr.mxu0 0.0
    %2237 = vmatpush1.msra.mxu0 0.0
    %2238 = vmatprep.subr.mxu0 0.0
    %2239 = vmatpush1.msra.mxu0 0.0
    %2240 = vmatprep.subr.mxu0 0.0
    %2241 = vmatpush1.msra.mxu0 0.0
    %2242 = vmatprep.subr.mxu0 0.0
    %2243 = vmatpush1.msra.mxu0 0.0
    %2244 = vmatprep.subr.mxu0 0.0
    %2245 = vmatpush1.msra.mxu0 0.0
    %2246 = vmatprep.subr.mxu0 0.0
    %2247 = vmatpush1.msra.mxu0 0.0
    %2248 = vmatprep.subr.mxu0 0.0
    %2249 = vmatpush1.msra.mxu0 0.0
    %2250 = vmatprep.subr.mxu0 0.0
    %2251 = vmatpush1.msra.mxu0 0.0
    %2252 = vmatprep.subr.mxu0 0.0
    %2253 = vmatpush1.msra.mxu0 0.0
    %2254 = vmatprep.subr.mxu0 0.0
    %2255 = vmatpush1.msra.mxu0 0.0
    %2256 = vmatprep.subr.mxu0 0.0
    %2257 = vmatpush1.msra.mxu0 0.0
    %2258 = vmatprep.subr.mxu0 0.0
    %2259 = vmatpush1.msra.mxu0 0.0
    %2260 = vmatprep.subr.mxu0 0.0
    %2261 = vmatpush1.msra.mxu0 0.0
    %2262 = vmatprep.subr.mxu0 0.0
    %2263 = vmatpush1.msra.mxu0 0.0
    %2264 = vmatprep.subr.mxu0 0.0
    %2265 = vmatpush1.msra.mxu0 0.0
    %2266 = vmatprep.subr.mxu0 0.0
    %2267 = vmatpush1.msra.mxu0 0.0
    %2268 = vmatprep.subr.mxu0 0.0
    %2269 = vmatpush1.msra.mxu0 0.0
    %2270 = vmatprep.subr.mxu0 0.0
    %2271 = vmatpush1.msra.mxu0 0.0
    %2272 = vmatprep.subr.mxu0 0.0
    %2273 = vmatpush1.msra.mxu0 0.0
    %2274 = vmatprep.subr.mxu0 0.0
    %2275 = vmatpush1.msra.mxu0 0.0
    %2276 = vmatprep.subr.mxu0 0.0
    %2277 = vmatpush1.msra.mxu0 0.0
    %2278 = vmatprep.subr.mxu0 0.0
    %2279 = vmatpush1.msra.mxu0 0.0
    %2280 = vmatprep.subr.mxu0 0.0
    %2281 = vmatpush1.msra.mxu0 0.0
    %2282 = vmatprep.subr.mxu0 0.0
    %2283 = vmatpush1.msra.mxu0 0.0
    %2284 = vmatprep.subr.mxu0 0.0
    %2285 = vmatpush1.msra.mxu0 0.0
    %2286 = vmatprep.subr.mxu0 0.0
    %2287 = vmatpush1.msra.mxu0 0.0
    %2288 = vmatprep.subr.mxu0 0.0
    %2289 = vmatpush1.msra.mxu0 0.0
    %2290 = vmatprep.mubr.f32.mxu0 0.0
    %2291 = vmatmul.mubr.f32.gmra.mrb[0].mxu0 %v2221
    %v2292 = vpop.f32.mrb[0].mxu0
    %v2293 = vadd.f32 0.0, %v2292
    %v2294 = vpop.f32.mrb[0].mxu0
    %v2295 = vadd.f32 0.0, %v2294
    %2296 = vmatprep.mubr.f32.mxu0 0.0
    %2297 = vmatmul.mubr.f32.gmra.mrb[0].mxu0 %v2224
    %v2298 = vpop.f32.mrb[0].mxu0
    %v2299 = vadd.f32 0.0, %v2298
    %v2300 = vpop.f32.mrb[0].mxu0
    %v2301 = vadd.f32 0.0, %v2300
    %2302 = vdwg.mxu0
    %s2303 = scalar_lea.vmem %s6, 1664
    %v2304 = vld [vmem:[%s2303] sm:$0xff]
    %v2305 = vld [vmem:[%s2303 + $0x8] sm:$0xff]
    %v2306 = vld [vmem:[%s2303 + $0x10] sm:$0xff]
    %v2307 = vld [vmem:[%s2303 + $0x18] sm:$0xff]
    %v2308 = vld [vmem:[%s2303 + $0x20] sm:$0xff]
    %v2309 = vld [vmem:[%s2303 + $0x28] sm:$0xff]
    %v2310 = vld [vmem:[%s2303 + $0x30] sm:$0xff]
    %v2311 = vld [vmem:[%s2303 + $0x38] sm:$0xff]
    %v2312 = vld [vmem:[%s2303 + $0x40] sm:$0xff]
    %v2313 = vld [vmem:[%s2303 + $0x48] sm:$0xff]
    %v2314 = vld [vmem:[%s2303 + $0x50] sm:$0xff]
    %v2315 = vld [vmem:[%s2303 + $0x58] sm:$0xff]
    %v2316 = vld [vmem:[%s2303 + $0x60] sm:$0xff]
    %v2317 = vld [vmem:[%s2303 + $0x68] sm:$0xff]
    %v2318 = vld [vmem:[%s2303 + $0x70] sm:$0xff]
    %v2319 = vld [vmem:[%s2303 + $0x78] sm:$0xff]
    %v2320 = vld [vmem:[%s2303 + $0x80] sm:$0xff]
    %v2321 = vld [vmem:[%s2303 + $0x88] sm:$0xff]
    %v2322 = vld [vmem:[%s2303 + $0x90] sm:$0xff]
    %v2323 = vld [vmem:[%s2303 + $0x98] sm:$0xff]
    %v2324 = vld [vmem:[%s2303 + $0xa0] sm:$0xff]
    %v2325 = vld [vmem:[%s2303 + $0xa8] sm:$0xff]
    %v2326 = vld [vmem:[%s2303 + $0xb0] sm:$0xff]
    %v2327 = vld [vmem:[%s2303 + $0xb8] sm:$0xff]
    %v2328 = vld [vmem:[%s2303 + $0xc0] sm:$0xff]
    %v2329 = vld [vmem:[%s2303 + $0xc8] sm:$0xff]
    %v2330 = vld [vmem:[%s2303 + $0xd0] sm:$0xff]
    %v2331 = vld [vmem:[%s2303 + $0xd8] sm:$0xff]
    %v2332 = vld [vmem:[%s2303 + $0xe0] sm:$0xff]
    %v2333 = vld [vmem:[%s2303 + $0xe8] sm:$0xff]
    %v2334 = vld [vmem:[%s2303 + $0xf0] sm:$0xff]
    %v2335 = vld [vmem:[%s2303 + $0xf8] sm:$0xff]
    %v2336 = vld [vmem:[%s2303 + $0x100] sm:$0xff]
    %v2337 = vld [vmem:[%s2303 + $0x108] sm:$0xff]
    %v2338 = vld [vmem:[%s2303 + $0x110] sm:$0xff]
    %v2339 = vld [vmem:[%s2303 + $0x118] sm:$0xff]
    %v2340 = vld [vmem:[%s2303 + $0x120] sm:$0xff]
    %v2341 = vld [vmem:[%s2303 + $0x128] sm:$0xff]
    %v2342 = vld [vmem:[%s2303 + $0x130] sm:$0xff]
    %v2343 = vld [vmem:[%s2303 + $0x138] sm:$0xff]
    %v2344 = vld [vmem:[%s2303 + $0x140] sm:$0xff]
    %v2345 = vld [vmem:[%s2303 + $0x148] sm:$0xff]
    %v2346 = vld [vmem:[%s2303 + $0x150] sm:$0xff]
    %v2347 = vld [vmem:[%s2303 + $0x158] sm:$0xff]
    %v2348 = vld [vmem:[%s2303 + $0x160] sm:$0xff]
    %v2349 = vld [vmem:[%s2303 + $0x168] sm:$0xff]
    %v2350 = vld [vmem:[%s2303 + $0x170] sm:$0xff]
    %v2351 = vld [vmem:[%s2303 + $0x178] sm:$0xff]
    %v2352 = vld [vmem:[%s2303 + $0x180] sm:$0xff]
    %v2353 = vld [vmem:[%s2303 + $0x188] sm:$0xff]
    %v2354 = vld [vmem:[%s2303 + $0x190] sm:$0xff]
    %v2355 = vld [vmem:[%s2303 + $0x198] sm:$0xff]
    %v2357 = vsel %vm1598, %v2295, 0
    %v2360 = vsel %vm1598, %v2301, 0
    %2362 = vmatprep.subr.mxu0 %v2305
    %2363 = vmatpush1.msra.mxu0 %v2304
    %2364 = vmatprep.subr.mxu0 %v2307
    %2365 = vmatpush1.msra.mxu0 %v2306
    %2366 = vmatprep.subr.mxu0 %v2309
    %2367 = vmatpush1.msra.mxu0 %v2308
    %2368 = vmatprep.subr.mxu0 %v2311
    %2369 = vmatpush1.msra.mxu0 %v2310
    %2370 = vmatprep.subr.mxu0 %v2313
    %2371 = vmatpush1.msra.mxu0 %v2312
    %2372 = vmatprep.subr.mxu0 %v2315
    %2373 = vmatpush1.msra.mxu0 %v2314
    %2374 = vmatprep.subr.mxu0 %v2317
    %2375 = vmatpush1.msra.mxu0 %v2316
    %2376 = vmatprep.subr.mxu0 %v2319
    %2377 = vmatpush1.msra.mxu0 %v2318
    %2378 = vmatprep.subr.mxu0 %v2321
    %2379 = vmatpush1.msra.mxu0 %v2320
    %2380 = vmatprep.subr.mxu0 %v2323
    %2381 = vmatpush1.msra.mxu0 %v2322
    %2382 = vmatprep.subr.mxu0 %v2325
    %2383 = vmatpush1.msra.mxu0 %v2324
    %2384 = vmatprep.subr.mxu0 %v2327
    %2385 = vmatpush1.msra.mxu0 %v2326
    %2386 = vmatprep.subr.mxu0 %v2329
    %2387 = vmatpush1.msra.mxu0 %v2328
    %2388 = vmatprep.subr.mxu0 %v2331
    %2389 = vmatpush1.msra.mxu0 %v2330
    %2390 = vmatprep.subr.mxu0 %v2333
    %2391 = vmatpush1.msra.mxu0 %v2332
    %2392 = vmatprep.subr.mxu0 %v2335
    %2393 = vmatpush1.msra.mxu0 %v2334
    %2394 = vmatprep.subr.mxu0 %v2337
    %2395 = vmatpush1.msra.mxu0 %v2336
    %2396 = vmatprep.subr.mxu0 %v2339
    %2397 = vmatpush1.msra.mxu0 %v2338
    %2398 = vmatprep.subr.mxu0 %v2341
    %2399 = vmatpush1.msra.mxu0 %v2340
    %2400 = vmatprep.subr.mxu0 %v2343
    %2401 = vmatpush1.msra.mxu0 %v2342
    %2402 = vmatprep.subr.mxu0 %v2345
    %2403 = vmatpush1.msra.mxu0 %v2344
    %2404 = vmatprep.subr.mxu0 %v2347
    %2405 = vmatpush1.msra.mxu0 %v2346
    %2406 = vmatprep.subr.mxu0 %v2349
    %2407 = vmatpush1.msra.mxu0 %v2348
    %2408 = vmatprep.subr.mxu0 %v2351
    %2409 = vmatpush1.msra.mxu0 %v2350
    %2410 = vmatprep.subr.mxu0 %v2353
    %2411 = vmatpush1.msra.mxu0 %v2352
    %2412 = vmatprep.subr.mxu0 %v2355
    %2413 = vmatpush1.msra.mxu0 %v2354
    %2414 = vmatprep.subr.mxu0 0.0
    %2415 = vmatpush1.msra.mxu0 0.0
    %2416 = vmatprep.subr.mxu0 0.0
    %2417 = vmatpush1.msra.mxu0 0.0
    %2418 = vmatprep.subr.mxu0 0.0
    %2419 = vmatpush1.msra.mxu0 0.0
    %2420 = vmatprep.subr.mxu0 0.0
    %2421 = vmatpush1.msra.mxu0 0.0
    %2422 = vmatprep.subr.mxu0 0.0
    %2423 = vmatpush1.msra.mxu0 0.0
    %2424 = vmatprep.subr.mxu0 0.0
    %2425 = vmatpush1.msra.mxu0 0.0
    %2426 = vmatprep.mubr.f32.mxu0 %v2357
    %2427 = vmatmul.mubr.f32.gmra.mrb[0].mxu0 %v2293
    %v2428 = vpop.f32.mrb[0].mxu0
    %v2429 = vadd.f32 0.0, %v2428
    %v2430 = vpop.f32.mrb[0].mxu0
    %v2431 = vadd.f32 0.0, %v2430
    %2432 = vmatprep.mubr.f32.mxu0 %v2360
    %2433 = vmatmul.mubr.f32.gmra.mrb[0].mxu0 %v2299
    %v2434 = vpop.f32.mrb[0].mxu0
    %v2435 = vadd.f32 0.0, %v2434
    %v2436 = vpop.f32.mrb[0].mxu0
    %v2437 = vadd.f32 0.0, %v2436
    %2438 = vdwg.mxu0
    %v2439 = vadd.f32 %v2213, %v2429
    %v2440 = vadd.f32 %v2214, %v2431
    %v2441 = vadd.f32 %v2215, %v2435
    %v2442 = vadd.f32 %v2216, %v2437
    %v2443 = vld [vmem:[%s7] sm:$0x3]
    %v2445 = vlaneseq
    %v2446 = vshrl.u32 %v2445, 7
    %v2447 = vsub.s32 0, %v2446
    %v2448 = vrot.slane %v2443, %v2447
    %v2449 = vlaneseq
    %v2450 = vshrl.u32 %v2449, 7
    %v2451 = vsub.s32 1, %v2450
    %v2452 = vrot.slane %v2443, %v2451
    %v2455 = vmul.f32 %v2439, %v2448
    %v2456 = vmul.f32 %v2440, %v2452
    %v2457 = vmul.f32 %v2441, %v2448
    %v2458 = vmul.f32 %v2442, %v2452
    %v2459 = vld [vmem:[%s8] sm:$0x3]
    %v2461 = vlaneseq
    %v2462 = vshrl.u32 %v2461, 7
    %v2463 = vsub.s32 0, %v2462
    %v2464 = vrot.slane %v2459, %v2463
    %v2465 = vlaneseq
    %v2466 = vshrl.u32 %v2465, 7
    %v2467 = vsub.s32 1, %v2466
    %v2468 = vrot.slane %v2459, %v2467
    %v2471 = vadd.f32 %v2455, %v2464
    %v2472 = vadd.f32 %v2456, %v2468
    %v2473 = vadd.f32 %v2457, %v2464
    %v2474 = vadd.f32 %v2458, %v2468
    %v2475 = vmax.f32 %v2471, 0.0
    %v2476 = vmax.f32 %v2472, 0.0
    %v2477 = vmax.f32 %v2473, 0.0
    %v2478 = vmax.f32 %v2474, 0.0
    %v2479 = vld [vmem:[%s9] sm:$0x3]
    %vm2480 = vcmask 80896
    %v2482 = vsel %vm2480, %v2479, 0
    %v2485 = vsel %vm1323, %v2477, 0
    %v2488 = vsel %vm1323, %v2478, 0
    %2490 = vmatprep.subr.mxu0 %v2476
    %2491 = vmatpush1.msra.mxu0 %v2475
    %2492 = vmatprep.subr.mxu0 %v2488
    %2493 = vmatpush1.msra.mxu0 %v2485
    %2494 = vmatprep.subr.mxu0 0.0
    %2495 = vmatpush1.msra.mxu0 0.0
    %2496 = vmatprep.subr.mxu0 0.0
    %2497 = vmatpush1.msra.mxu0 0.0
    %2498 = vmatprep.subr.mxu0 0.0
    %2499 = vmatpush1.msra.mxu0 0.0
    %2500 = vmatprep.subr.mxu0 0.0
    %2501 = vmatpush1.msra.mxu0 0.0
    %2502 = vmatprep.subr.mxu0 0.0
    %2503 = vmatpush1.msra.mxu0 0.0
    %2504 = vmatprep.subr.mxu0 0.0
    %2505 = vmatpush1.msra.mxu0 0.0
    %2506 = vmatprep.subr.mxu0 0.0
    %2507 = vmatpush1.msra.mxu0 0.0
    %2508 = vmatprep.subr.mxu0 0.0
    %2509 = vmatpush1.msra.mxu0 0.0
    %2510 = vmatprep.subr.mxu0 0.0
    %2511 = vmatpush1.msra.mxu0 0.0
    %2512 = vmatprep.subr.mxu0 0.0
    %2513 = vmatpush1.msra.mxu0 0.0
    %2514 = vmatprep.subr.mxu0 0.0
    %2515 = vmatpush1.msra.mxu0 0.0
    %2516 = vmatprep.subr.mxu0 0.0
    %2517 = vmatpush1.msra.mxu0 0.0
    %2518 = vmatprep.subr.mxu0 0.0
    %2519 = vmatpush1.msra.mxu0 0.0
    %2520 = vmatprep.subr.mxu0 0.0
    %2521 = vmatpush1.msra.mxu0 0.0
    %2522 = vmatprep.subr.mxu0 0.0
    %2523 = vmatpush1.msra.mxu0 0.0
    %2524 = vmatprep.subr.mxu0 0.0
    %2525 = vmatpush1.msra.mxu0 0.0
    %2526 = vmatprep.subr.mxu0 0.0
    %2527 = vmatpush1.msra.mxu0 0.0
    %2528 = vmatprep.subr.mxu0 0.0
    %2529 = vmatpush1.msra.mxu0 0.0
    %2530 = vmatprep.subr.mxu0 0.0
    %2531 = vmatpush1.msra.mxu0 0.0
    %2532 = vmatprep.subr.mxu0 0.0
    %2533 = vmatpush1.msra.mxu0 0.0
    %2534 = vmatprep.subr.mxu0 0.0
    %2535 = vmatpush1.msra.mxu0 0.0
    %2536 = vmatprep.subr.mxu0 0.0
    %2537 = vmatpush1.msra.mxu0 0.0
    %2538 = vmatprep.subr.mxu0 0.0
    %2539 = vmatpush1.msra.mxu0 0.0
    %2540 = vmatprep.subr.mxu0 0.0
    %2541 = vmatpush1.msra.mxu0 0.0
    %2542 = vmatprep.subr.mxu0 0.0
    %2543 = vmatpush1.msra.mxu0 0.0
    %2544 = vmatprep.subr.mxu0 0.0
    %2545 = vmatpush1.msra.mxu0 0.0
    %2546 = vmatprep.subr.mxu0 0.0
    %2547 = vmatpush1.msra.mxu0 0.0
    %2548 = vmatprep.subr.mxu0 0.0
    %2549 = vmatpush1.msra.mxu0 0.0
    %2550 = vmatprep.subr.mxu0 0.0
    %2551 = vmatpush1.msra.mxu0 0.0
    %2552 = vmatprep.subr.mxu0 0.0
    %2553 = vmatpush1.msra.mxu0 0.0
    %2554 = vmatprep.mubr.f32.mxu0 0.0
    %2555 = vmatmul.mubr.f32.gmra.mrb[0].mxu0 %v2482
    %v2556 = vpop.f32.mrb[0].mxu0
    %v2557 = vadd.f32 0.0, %v2556
    %v2558 = vpop.f32.mrb[0].mxu0
    %v2559 = vadd.f32 0.0, %v2558
    %2560 = vdwg.mxu0
    %v2561 = vld [vmem:[%s10] sm:$0xff]
    %v2562 = vld [vmem:[%s10 + $0x8] sm:$0xff]
    %v2563 = vld [vmem:[%s10 + $0x10] sm:$0xff]
    %v2564 = vld [vmem:[%s10 + $0x18] sm:$0xff]
    %v2565 = vld [vmem:[%s10 + $0x20] sm:$0xff]
    %v2566 = vld [vmem:[%s10 + $0x28] sm:$0xff]
    %v2567 = vld [vmem:[%s10 + $0x30] sm:$0xff]
    %v2568 = vld [vmem:[%s10 + $0x38] sm:$0xff]
    %v2569 = vld [vmem:[%s10 + $0x40] sm:$0xff]
    %v2570 = vld [vmem:[%s10 + $0x48] sm:$0xff]
    %v2571 = vld [vmem:[%s10 + $0x50] sm:$0xff]
    %v2572 = vld [vmem:[%s10 + $0x58] sm:$0xff]
    %v2573 = vld [vmem:[%s10 + $0x60] sm:$0xff]
    %v2574 = vld [vmem:[%s10 + $0x68] sm:$0xff]
    %v2575 = vld [vmem:[%s10 + $0x70] sm:$0xff]
    %v2576 = vld [vmem:[%s10 + $0x78] sm:$0xff]
    %v2577 = vld [vmem:[%s10 + $0x80] sm:$0xff]
    %v2578 = vld [vmem:[%s10 + $0x88] sm:$0xff]
    %v2579 = vld [vmem:[%s10 + $0x90] sm:$0xff]
    %v2580 = vld [vmem:[%s10 + $0x98] sm:$0xff]
    %s2581 = scalar_lea.vmem %s9, 2
    %v2582 = vld [vmem:[%s2581] sm:$0x3]
    %v2584 = vsel %vm2480, %v2582, 0
    %2586 = vmatprep.subr.mxu0 %v2476
    %2587 = vmatpush1.msra.mxu0 %v2475
    %2588 = vmatprep.subr.mxu0 %v2488
    %2589 = vmatpush1.msra.mxu0 %v2485
    %2590 = vmatprep.subr.mxu0 0.0
    %2591 = vmatpush1.msra.mxu0 0.0
    %2592 = vmatprep.subr.mxu0 0.0
    %2593 = vmatpush1.msra.mxu0 0.0
    %2594 = vmatprep.subr.mxu0 0.0
    %2595 = vmatpush1.msra.mxu0 0.0
    %2596 = vmatprep.subr.mxu0 0.0
    %2597 = vmatpush1.msra.mxu0 0.0
    %2598 = vmatprep.subr.mxu0 0.0
    %2599 = vmatpush1.msra.mxu0 0.0
    %2600 = vmatprep.subr.mxu0 0.0
    %2601 = vmatpush1.msra.mxu0 0.0
    %2602 = vmatprep.subr.mxu0 0.0
    %2603 = vmatpush1.msra.mxu0 0.0
    %2604 = vmatprep.subr.mxu0 0.0
    %2605 = vmatpush1.msra.mxu0 0.0
    %2606 = vmatprep.subr.mxu0 0.0
    %2607 = vmatpush1.msra.mxu0 0.0
    %2608 = vmatprep.subr.mxu0 0.0
    %2609 = vmatpush1.msra.mxu0 0.0
    %2610 = vmatprep.subr.mxu0 0.0
    %2611 = vmatpush1.msra.mxu0 0.0
    %2612 = vmatprep.subr.mxu0 0.0
    %2613 = vmatpush1.msra.mxu0 0.0
    %2614 = vmatprep.subr.mxu0 0.0
    %2615 = vmatpush1.msra.mxu0 0.0
    %2616 = vmatprep.subr.mxu0 0.0
    %2617 = vmatpush1.msra.mxu0 0.0
    %2618 = vmatprep.subr.mxu0 0.0
    %2619 = vmatpush1.msra.mxu0 0.0
    %2620 = vmatprep.subr.mxu0 0.0
    %2621 = vmatpush1.msra.mxu0 0.0
    %2622 = vmatprep.subr.mxu0 0.0
    %2623 = vmatpush1.msra.mxu0 0.0
    %2624 = vmatprep.subr.mxu0 0.0
    %2625 = vmatpush1.msra.mxu0 0.0
    %2626 = vmatprep.subr.mxu0 0.0
    %2627 = vmatpush1.msra.mxu0 0.0
    %2628 = vmatprep.subr.mxu0 0.0
    %2629 = vmatpush1.msra.mxu0 0.0
    %2630 = vmatprep.subr.mxu0 0.0
    %2631 = vmatpush1.msra.mxu0 0.0
    %2632 = vmatprep.subr.mxu0 0.0
    %2633 = vmatpush1.msra.mxu0 0.0
    %2634 = vmatprep.subr.mxu0 0.0
    %2635 = vmatpush1.msra.mxu0 0.0
    %2636 = vmatprep.subr.mxu0 0.0
    %2637 = vmatpush1.msra.mxu0 0.0
    %2638 = vmatprep.subr.mxu0 0.0
    %2639 = vmatpush1.msra.mxu0 0.0
    %2640 = vmatprep.subr.mxu0 0.0
    %2641 = vmatpush1.msra.mxu0 0.0
    %2642 = vmatprep.subr.mxu0 0.0
    %2643 = vmatpush1.msra.mxu0 0.0
    %2644 = vmatprep.subr.mxu0 0.0
    %2645 = vmatpush1.msra.mxu0 0.0
    %2646 = vmatprep.subr.mxu0 0.0
    %2647 = vmatpush1.msra.mxu0 0.0
    %2648 = vmatprep.subr.mxu0 0.0
    %2649 = vmatpush1.msra.mxu0 0.0
    %2650 = vmatprep.mubr.f32.mxu0 0.0
    %2651 = vmatmul.mubr.f32.gmra.mrb[0].mxu0 %v2584
    %v2652 = vpop.f32.mrb[0].mxu0
    %v2653 = vadd.f32 0.0, %v2652
    %v2654 = vpop.f32.mrb[0].mxu0
    %v2655 = vadd.f32 0.0, %v2654
    %2656 = vdwg.mxu0
    %s2657 = scalar_lea.vmem %s10, 160
    %v2658 = vld [vmem:[%s2657] sm:$0xff]
    %v2659 = vld [vmem:[%s2657 + $0x8] sm:$0xff]
    %v2660 = vld [vmem:[%s2657 + $0x10] sm:$0xff]
    %v2661 = vld [vmem:[%s2657 + $0x18] sm:$0xff]
    %v2662 = vld [vmem:[%s2657 + $0x20] sm:$0xff]
    %v2663 = vld [vmem:[%s2657 + $0x28] sm:$0xff]
    %v2664 = vld [vmem:[%s2657 + $0x30] sm:$0xff]
    %v2665 = vld [vmem:[%s2657 + $0x38] sm:$0xff]
    %v2666 = vld [vmem:[%s2657 + $0x40] sm:$0xff]
    %v2667 = vld [vmem:[%s2657 + $0x48] sm:$0xff]
    %v2668 = vld [vmem:[%s2657 + $0x50] sm:$0xff]
    %v2669 = vld [vmem:[%s2657 + $0x58] sm:$0xff]
    %v2670 = vld [vmem:[%s2657 + $0x60] sm:$0xff]
    %v2671 = vld [vmem:[%s2657 + $0x68] sm:$0xff]
    %v2672 = vld [vmem:[%s2657 + $0x70] sm:$0xff]
    %v2673 = vld [vmem:[%s2657 + $0x78] sm:$0xff]
    %v2674 = vld [vmem:[%s2657 + $0x80] sm:$0xff]
    %v2675 = vld [vmem:[%s2657 + $0x88] sm:$0xff]
    %v2676 = vld [vmem:[%s2657 + $0x90] sm:$0xff]
    %v2677 = vld [vmem:[%s2657 + $0x98] sm:$0xff]
    %vm2678 = vcmask 261120
    %v2680 = vsel %vm2678, %v2655, 0
    %2682 = vmatprep.subr.mxu0 0.0
    %2683 = vmatpush1.msra.mxu0 %v2658
    %2684 = vmatprep.subr.mxu0 0.0
    %2685 = vmatpush1.msra.mxu0 %v2659
    %2686 = vmatprep.subr.mxu0 0.0
    %2687 = vmatpush1.msra.mxu0 %v2660
    %2688 = vmatprep.subr.mxu0 0.0
    %2689 = vmatpush1.msra.mxu0 %v2661
    %2690 = vmatprep.subr.mxu0 0.0
    %2691 = vmatpush1.msra.mxu0 %v2662
    %2692 = vmatprep.subr.mxu0 0.0
    %2693 = vmatpush1.msra.mxu0 %v2663
    %2694 = vmatprep.subr.mxu0 0.0
    %2695 = vmatpush1.msra.mxu0 %v2664
    %2696 = vmatprep.subr.mxu0 0.0
    %2697 = vmatpush1.msra.mxu0 %v2665
    %2698 = vmatprep.subr.mxu0 0.0
    %2699 = vmatpush1.msra.mxu0 %v2666
    %2700 = vmatprep.subr.mxu0 0.0
    %2701 = vmatpush1.msra.mxu0 %v2667
    %2702 = vmatprep.subr.mxu0 0.0
    %2703 = vmatpush1.msra.mxu0 %v2668
    %2704 = vmatprep.subr.mxu0 0.0
    %2705 = vmatpush1.msra.mxu0 %v2669
    %2706 = vmatprep.subr.mxu0 0.0
    %2707 = vmatpush1.msra.mxu0 %v2670
    %2708 = vmatprep.subr.mxu0 0.0
    %2709 = vmatpush1.msra.mxu0 %v2671
    %2710 = vmatprep.subr.mxu0 0.0
    %2711 = vmatpush1.msra.mxu0 %v2672
    %2712 = vmatprep.subr.mxu0 0.0
    %2713 = vmatpush1.msra.mxu0 %v2673
    %2714 = vmatprep.subr.mxu0 0.0
    %2715 = vmatpush1.msra.mxu0 %v2674
    %2716 = vmatprep.subr.mxu0 0.0
    %2717 = vmatpush1.msra.mxu0 %v2675
    %2718 = vmatprep.subr.mxu0 0.0
    %2719 = vmatpush1.msra.mxu0 %v2676
    %2720 = vmatprep.subr.mxu0 0.0
    %2721 = vmatpush1.msra.mxu0 %v2677
    %2722 = vmatprep.subr.mxu0 0.0
    %2723 = vmatpush1.msra.mxu0 0.0
    %2724 = vmatprep.subr.mxu0 0.0
    %2725 = vmatpush1.msra.mxu0 0.0
    %2726 = vmatprep.subr.mxu0 0.0
    %2727 = vmatpush1.msra.mxu0 0.0
    %2728 = vmatprep.subr.mxu0 0.0
    %2729 = vmatpush1.msra.mxu0 0.0
    %2730 = vmatprep.subr.mxu0 0.0
    %2731 = vmatpush1.msra.mxu0 0.0
    %2732 = vmatprep.subr.mxu0 0.0
    %2733 = vmatpush1.msra.mxu0 0.0
    %2734 = vmatprep.subr.mxu0 0.0
    %2735 = vmatpush1.msra.mxu0 0.0
    %2736 = vmatprep.subr.mxu0 0.0
    %2737 = vmatpush1.msra.mxu0 0.0
    %2738 = vmatprep.subr.mxu0 0.0
    %2739 = vmatpush1.msra.mxu0 0.0
    %2740 = vmatprep.subr.mxu0 0.0
    %2741 = vmatpush1.msra.mxu0 0.0
    %2742 = vmatprep.subr.mxu0 0.0
    %2743 = vmatpush1.msra.mxu0 0.0
    %2744 = vmatprep.subr.mxu0 0.0
    %2745 = vmatpush1.msra.mxu0 0.0
    %2746 = vmatprep.mubr.f32.mxu0 %v2680
    %2747 = vmatmul.mubr.f32.gmra.mrb[0].mxu0 %v2653
    %v2748 = vpop.f32.mrb[0].mxu0
    %v2749 = vadd.f32 0.0, %v2748
    %v2750 = vpop.f32.mrb[0].mxu0
    %2751 = vdwg.mxu0
    %v2753 = vsel %vm2678, %v2559, 0
    %2755 = vmatprep.subr.mxu0 0.0
    %2756 = vmatpush1.msra.mxu0 %v2561
    %2757 = vmatprep.subr.mxu0 0.0
    %2758 = vmatpush1.msra.mxu0 %v2562
    %2759 = vmatprep.subr.mxu0 0.0
    %2760 = vmatpush1.msra.mxu0 %v2563
    %2761 = vmatprep.subr.mxu0 0.0
    %2762 = vmatpush1.msra.mxu0 %v2564
    %2763 = vmatprep.subr.mxu0 0.0
    %2764 = vmatpush1.msra.mxu0 %v2565
    %2765 = vmatprep.subr.mxu0 0.0
    %2766 = vmatpush1.msra.mxu0 %v2566
    %2767 = vmatprep.subr.mxu0 0.0
    %2768 = vmatpush1.msra.mxu0 %v2567
    %2769 = vmatprep.subr.mxu0 0.0
    %2770 = vmatpush1.msra.mxu0 %v2568
    %2771 = vmatprep.subr.mxu0 0.0
    %2772 = vmatpush1.msra.mxu0 %v2569
    %2773 = vmatprep.subr.mxu0 0.0
    %2774 = vmatpush1.msra.mxu0 %v2570
    %2775 = vmatprep.subr.mxu0 0.0
    %2776 = vmatpush1.msra.mxu0 %v2571
    %2777 = vmatprep.subr.mxu0 0.0
    %2778 = vmatpush1.msra.mxu0 %v2572
    %2779 = vmatprep.subr.mxu0 0.0
    %2780 = vmatpush1.msra.mxu0 %v2573
    %2781 = vmatprep.subr.mxu0 0.0
    %2782 = vmatpush1.msra.mxu0 %v2574
    %2783 = vmatprep.subr.mxu0 0.0
    %2784 = vmatpush1.msra.mxu0 %v2575
    %2785 = vmatprep.subr.mxu0 0.0
    %2786 = vmatpush1.msra.mxu0 %v2576
    %2787 = vmatprep.subr.mxu0 0.0
    %2788 = vmatpush1.msra.mxu0 %v2577
    %2789 = vmatprep.subr.mxu0 0.0
    %2790 = vmatpush1.msra.mxu0 %v2578
    %2791 = vmatprep.subr.mxu0 0.0
    %2792 = vmatpush1.msra.mxu0 %v2579
    %2793 = vmatprep.subr.mxu0 0.0
    %2794 = vmatpush1.msra.mxu0 %v2580
    %2795 = vmatprep.subr.mxu0 0.0
    %2796 = vmatpush1.msra.mxu0 0.0
    %2797 = vmatprep.subr.mxu0 0.0
    %2798 = vmatpush1.msra.mxu0 0.0
    %2799 = vmatprep.subr.mxu0 0.0
    %2800 = vmatpush1.msra.mxu0 0.0
    %2801 = vmatprep.subr.mxu0 0.0
    %2802 = vmatpush1.msra.mxu0 0.0
    %2803 = vmatprep.subr.mxu0 0.0
    %2804 = vmatpush1.msra.mxu0 0.0
    %2805 = vmatprep.subr.mxu0 0.0
    %2806 = vmatpush1.msra.mxu0 0.0
    %2807 = vmatprep.subr.mxu0 0.0
    %2808 = vmatpush1.msra.mxu0 0.0
    %2809 = vmatprep.subr.mxu0 0.0
    %2810 = vmatpush1.msra.mxu0 0.0
    %2811 = vmatprep.subr.mxu0 0.0
    %2812 = vmatpush1.msra.mxu0 0.0
    %2813 = vmatprep.subr.mxu0 0.0
    %2814 = vmatpush1.msra.mxu0 0.0
    %2815 = vmatprep.subr.mxu0 0.0
    %2816 = vmatpush1.msra.mxu0 0.0
    %2817 = vmatprep.subr.mxu0 0.0
    %2818 = vmatpush1.msra.mxu0 0.0
    %2819 = vmatprep.mubr.f32.mxu0 %v2753
    %2820 = vmatmul.mubr.f32.gmra.mrb[0].mxu0 %v2557
    %v2821 = vpop.f32.mrb[0].mxu0
    %v2822 = vadd.f32 %v2749, %v2821
    %v2823 = vpop.f32.mrb[0].mxu0
    %2824 = vdwg.mxu0
    %s2825 = scalar_lea.vmem %s9, 4
    %v2826 = vld [vmem:[%s2825] sm:$0x3]
    %v2828 = vsel %vm2480, %v2826, 0
    %2830 = vmatprep.subr.mxu0 %v2476
    %2831 = vmatpush1.msra.mxu0 %v2475
    %2832 = vmatprep.subr.mxu0 %v2488
    %2833 = vmatpush1.msra.mxu0 %v2485
    %2834 = vmatprep.subr.mxu0 0.0
    %2835 = vmatpush1.msra.mxu0 0.0
    %2836 = vmatprep.subr.mxu0 0.0
    %2837 = vmatpush1.msra.mxu0 0.0
    %2838 = vmatprep.subr.mxu0 0.0
    %2839 = vmatpush1.msra.mxu0 0.0
    %2840 = vmatprep.subr.mxu0 0.0
    %2841 = vmatpush1.msra.mxu0 0.0
    %2842 = vmatprep.subr.mxu0 0.0
    %2843 = vmatpush1.msra.mxu0 0.0
    %2844 = vmatprep.subr.mxu0 0.0
    %2845 = vmatpush1.msra.mxu0 0.0
    %2846 = vmatprep.subr.mxu0 0.0
    %2847 = vmatpush1.msra.mxu0 0.0
    %2848 = vmatprep.subr.mxu0 0.0
    %2849 = vmatpush1.msra.mxu0 0.0
    %2850 = vmatprep.subr.mxu0 0.0
    %2851 = vmatpush1.msra.mxu0 0.0
    %2852 = vmatprep.subr.mxu0 0.0
    %2853 = vmatpush1.msra.mxu0 0.0
    %2854 = vmatprep.subr.mxu0 0.0
    %2855 = vmatpush1.msra.mxu0 0.0
    %2856 = vmatprep.subr.mxu0 0.0
    %2857 = vmatpush1.msra.mxu0 0.0
    %2858 = vmatprep.subr.mxu0 0.0
    %2859 = vmatpush1.msra.mxu0 0.0
    %2860 = vmatprep.subr.mxu0 0.0
    %2861 = vmatpush1.msra.mxu0 0.0
    %2862 = vmatprep.subr.mxu0 0.0
    %2863 = vmatpush1.msra.mxu0 0.0
    %2864 = vmatprep.subr.mxu0 0.0
    %2865 = vmatpush1.msra.mxu0 0.0
    %2866 = vmatprep.subr.mxu0 0.0
    %2867 = vmatpush1.msra.mxu0 0.0
    %2868 = vmatprep.subr.mxu0 0.0
    %2869 = vmatpush1.msra.mxu0 0.0
    %2870 = vmatprep.subr.mxu0 0.0
    %2871 = vmatpush1.msra.mxu0 0.0
    %2872 = vmatprep.subr.mxu0 0.0
    %2873 = vmatpush1.msra.mxu0 0.0
    %2874 = vmatprep.subr.mxu0 0.0
    %2875 = vmatpush1.msra.mxu0 0.0
    %2876 = vmatprep.subr.mxu0 0.0
    %2877 = vmatpush1.msra.mxu0 0.0
    %2878 = vmatprep.subr.mxu0 0.0
    %2879 = vmatpush1.msra.mxu0 0.0
    %2880 = vmatprep.subr.mxu0 0.0
    %2881 = vmatpush1.msra.mxu0 0.0
    %2882 = vmatprep.subr.mxu0 0.0
    %2883 = vmatpush1.msra.mxu0 0.0
    %2884 = vmatprep.subr.mxu0 0.0
    %2885 = vmatpush1.msra.mxu0 0.0
    %2886 = vmatprep.subr.mxu0 0.0
    %2887 = vmatpush1.msra.mxu0 0.0
    %2888 = vmatprep.subr.mxu0 0.0
    %2889 = vmatpush1.msra.mxu0 0.0
    %2890 = vmatprep.subr.mxu0 0.0
    %2891 = vmatpush1.msra.mxu0 0.0
    %2892 = vmatprep.subr.mxu0 0.0
    %2893 = vmatpush1.msra.mxu0 0.0
    %2894 = vmatprep.mubr.f32.mxu0 0.0
    %2895 = vmatmul.mubr.f32.gmra.mrb[0].mxu0 %v2828
    %v2896 = vpop.f32.mrb[0].mxu0
    %v2897 = vadd.f32 0.0, %v2896
    %v2898 = vpop.f32.mrb[0].mxu0
    %v2899 = vadd.f32 0.0, %v2898
    %2900 = vdwg.mxu0
    %s2901 = scalar_lea.vmem %s10, 320
    %v2902 = vld [vmem:[%s2901] sm:$0xff]
    %v2903 = vld [vmem:[%s2901 + $0x8] sm:$0xff]
    %v2904 = vld [vmem:[%s2901 + $0x10] sm:$0xff]
    %v2905 = vld [vmem:[%s2901 + $0x18] sm:$0xff]
    %v2906 = vld [vmem:[%s2901 + $0x20] sm:$0xff]
    %v2907 = vld [vmem:[%s2901 + $0x28] sm:$0xff]
    %v2908 = vld [vmem:[%s2901 + $0x30] sm:$0xff]
    %v2909 = vld [vmem:[%s2901 + $0x38] sm:$0xff]
    %v2910 = vld [vmem:[%s2901 + $0x40] sm:$0xff]
    %v2911 = vld [vmem:[%s2901 + $0x48] sm:$0xff]
    %v2912 = vld [vmem:[%s2901 + $0x50] sm:$0xff]
    %v2913 = vld [vmem:[%s2901 + $0x58] sm:$0xff]
    %v2914 = vld [vmem:[%s2901 + $0x60] sm:$0xff]
    %v2915 = vld [vmem:[%s2901 + $0x68] sm:$0xff]
    %v2916 = vld [vmem:[%s2901 + $0x70] sm:$0xff]
    %v2917 = vld [vmem:[%s2901 + $0x78] sm:$0xff]
    %v2918 = vld [vmem:[%s2901 + $0x80] sm:$0xff]
    %v2919 = vld [vmem:[%s2901 + $0x88] sm:$0xff]
    %v2920 = vld [vmem:[%s2901 + $0x90] sm:$0xff]
    %v2921 = vld [vmem:[%s2901 + $0x98] sm:$0xff]
    %v2923 = vsel %vm2678, %v2899, 0
    %2925 = vmatprep.subr.mxu0 0.0
    %2926 = vmatpush1.msra.mxu0 %v2902
    %2927 = vmatprep.subr.mxu0 0.0
    %2928 = vmatpush1.msra.mxu0 %v2903
    %2929 = vmatprep.subr.mxu0 0.0
    %2930 = vmatpush1.msra.mxu0 %v2904
    %2931 = vmatprep.subr.mxu0 0.0
    %2932 = vmatpush1.msra.mxu0 %v2905
    %2933 = vmatprep.subr.mxu0 0.0
    %2934 = vmatpush1.msra.mxu0 %v2906
    %2935 = vmatprep.subr.mxu0 0.0
    %2936 = vmatpush1.msra.mxu0 %v2907
    %2937 = vmatprep.subr.mxu0 0.0
    %2938 = vmatpush1.msra.mxu0 %v2908
    %2939 = vmatprep.subr.mxu0 0.0
    %2940 = vmatpush1.msra.mxu0 %v2909
    %2941 = vmatprep.subr.mxu0 0.0
    %2942 = vmatpush1.msra.mxu0 %v2910
    %2943 = vmatprep.subr.mxu0 0.0
    %2944 = vmatpush1.msra.mxu0 %v2911
    %2945 = vmatprep.subr.mxu0 0.0
    %2946 = vmatpush1.msra.mxu0 %v2912
    %2947 = vmatprep.subr.mxu0 0.0
    %2948 = vmatpush1.msra.mxu0 %v2913
    %2949 = vmatprep.subr.mxu0 0.0
    %2950 = vmatpush1.msra.mxu0 %v2914
    %2951 = vmatprep.subr.mxu0 0.0
    %2952 = vmatpush1.msra.mxu0 %v2915
    %2953 = vmatprep.subr.mxu0 0.0
    %2954 = vmatpush1.msra.mxu0 %v2916
    %2955 = vmatprep.subr.mxu0 0.0
    %2956 = vmatpush1.msra.mxu0 %v2917
    %2957 = vmatprep.subr.mxu0 0.0
    %2958 = vmatpush1.msra.mxu0 %v2918
    %2959 = vmatprep.subr.mxu0 0.0
    %2960 = vmatpush1.msra.mxu0 %v2919
    %2961 = vmatprep.subr.mxu0 0.0
    %2962 = vmatpush1.msra.mxu0 %v2920
    %2963 = vmatprep.subr.mxu0 0.0
    %2964 = vmatpush1.msra.mxu0 %v2921
    %2965 = vmatprep.subr.mxu0 0.0
    %2966 = vmatpush1.msra.mxu0 0.0
    %2967 = vmatprep.subr.mxu0 0.0
    %2968 = vmatpush1.msra.mxu0 0.0
    %2969 = vmatprep.subr.mxu0 0.0
    %2970 = vmatpush1.msra.mxu0 0.0
    %2971 = vmatprep.subr.mxu0 0.0
    %2972 = vmatpush1.msra.mxu0 0.0
    %2973 = vmatprep.subr.mxu0 0.0
    %2974 = vmatpush1.msra.mxu0 0.0
    %2975 = vmatprep.subr.mxu0 0.0
    %2976 = vmatpush1.msra.mxu0 0.0
    %2977 = vmatprep.subr.mxu0 0.0
    %2978 = vmatpush1.msra.mxu0 0.0
    %2979 = vmatprep.subr.mxu0 0.0
    %2980 = vmatpush1.msra.mxu0 0.0
    %2981 = vmatprep.subr.mxu0 0.0
    %2982 = vmatpush1.msra.mxu0 0.0
    %2983 = vmatprep.subr.mxu0 0.0
    %2984 = vmatpush1.msra.mxu0 0.0
    %2985 = vmatprep.subr.mxu0 0.0
    %2986 = vmatpush1.msra.mxu0 0.0
    %2987 = vmatprep.subr.mxu0 0.0
    %2988 = vmatpush1.msra.mxu0 0.0
    %2989 = vmatprep.mubr.f32.mxu0 %v2923
    %2990 = vmatmul.mubr.f32.gmra.mrb[0].mxu0 %v2897
    %v2991 = vpop.f32.mrb[0].mxu0
    %v2992 = vadd.f32 0.0, %v2991
    %v2993 = vpop.f32.mrb[0].mxu0
    %2994 = vdwg.mxu0
    %v2995 = vadd.f32 %v2822, %v2992
    %s2996 = scalar_lea.vmem %s9, 6
    %v2997 = vld [vmem:[%s2996] sm:$0x3]
    %v2999 = vsel %vm2480, %v2997, 0
    %3001 = vmatprep.subr.mxu0 %v2476
    %3002 = vmatpush1.msra.mxu0 %v2475
    %3003 = vmatprep.subr.mxu0 %v2488
    %3004 = vmatpush1.msra.mxu0 %v2485
    %3005 = vmatprep.subr.mxu0 0.0
    %3006 = vmatpush1.msra.mxu0 0.0
    %3007 = vmatprep.subr.mxu0 0.0
    %3008 = vmatpush1.msra.mxu0 0.0
    %3009 = vmatprep.subr.mxu0 0.0
    %3010 = vmatpush1.msra.mxu0 0.0
    %3011 = vmatprep.subr.mxu0 0.0
    %3012 = vmatpush1.msra.mxu0 0.0
    %3013 = vmatprep.subr.mxu0 0.0
    %3014 = vmatpush1.msra.mxu0 0.0
    %3015 = vmatprep.subr.mxu0 0.0
    %3016 = vmatpush1.msra.mxu0 0.0
    %3017 = vmatprep.subr.mxu0 0.0
    %3018 = vmatpush1.msra.mxu0 0.0
    %3019 = vmatprep.subr.mxu0 0.0
    %3020 = vmatpush1.msra.mxu0 0.0
    %3021 = vmatprep.subr.mxu0 0.0
    %3022 = vmatpush1.msra.mxu0 0.0
    %3023 = vmatprep.subr.mxu0 0.0
    %3024 = vmatpush1.msra.mxu0 0.0
    %3025 = vmatprep.subr.mxu0 0.0
    %3026 = vmatpush1.msra.mxu0 0.0
    %3027 = vmatprep.subr.mxu0 0.0
    %3028 = vmatpush1.msra.mxu0 0.0
    %3029 = vmatprep.subr.mxu0 0.0
    %3030 = vmatpush1.msra.mxu0 0.0
    %3031 = vmatprep.subr.mxu0 0.0
    %3032 = vmatpush1.msra.mxu0 0.0
    %3033 = vmatprep.subr.mxu0 0.0
    %3034 = vmatpush1.msra.mxu0 0.0
    %3035 = vmatprep.subr.mxu0 0.0
    %3036 = vmatpush1.msra.mxu0 0.0
    %3037 = vmatprep.subr.mxu0 0.0
    %3038 = vmatpush1.msra.mxu0 0.0
    %3039 = vmatprep.subr.mxu0 0.0
    %3040 = vmatpush1.msra.mxu0 0.0
    %3041 = vmatprep.subr.mxu0 0.0
    %3042 = vmatpush1.msra.mxu0 0.0
    %3043 = vmatprep.subr.mxu0 0.0
    %3044 = vmatpush1.msra.mxu0 0.0
    %3045 = vmatprep.subr.mxu0 0.0
    %3046 = vmatpush1.msra.mxu0 0.0
    %3047 = vmatprep.subr.mxu0 0.0
    %3048 = vmatpush1.msra.mxu0 0.0
    %3049 = vmatprep.subr.mxu0 0.0
    %3050 = vmatpush1.msra.mxu0 0.0
    %3051 = vmatprep.subr.mxu0 0.0
    %3052 = vmatpush1.msra.mxu0 0.0
    %3053 = vmatprep.subr.mxu0 0.0
    %3054 = vmatpush1.msra.mxu0 0.0
    %3055 = vmatprep.subr.mxu0 0.0
    %3056 = vmatpush1.msra.mxu0 0.0
    %3057 = vmatprep.subr.mxu0 0.0
    %3058 = vmatpush1.msra.mxu0 0.0
    %3059 = vmatprep.subr.mxu0 0.0
    %3060 = vmatpush1.msra.mxu0 0.0
    %3061 = vmatprep.subr.mxu0 0.0
    %3062 = vmatpush1.msra.mxu0 0.0
    %3063 = vmatprep.subr.mxu0 0.0
    %3064 = vmatpush1.msra.mxu0 0.0
    %3065 = vmatprep.mubr.f32.mxu0 0.0
    %3066 = vmatmul.mubr.f32.gmra.mrb[0].mxu0 %v2999
    %v3067 = vpop.f32.mrb[0].mxu0
    %v3068 = vadd.f32 0.0, %v3067
    %v3069 = vpop.f32.mrb[0].mxu0
    %v3070 = vadd.f32 0.0, %v3069
    %3071 = vdwg.mxu0
    %s3072 = scalar_lea.vmem %s10, 480
    %v3073 = vld [vmem:[%s3072] sm:$0xff]
    %v3074 = vld [vmem:[%s3072 + $0x8] sm:$0xff]
    %v3075 = vld [vmem:[%s3072 + $0x10] sm:$0xff]
    %v3076 = vld [vmem:[%s3072 + $0x18] sm:$0xff]
    %v3077 = vld [vmem:[%s3072 + $0x20] sm:$0xff]
    %v3078 = vld [vmem:[%s3072 + $0x28] sm:$0xff]
    %v3079 = vld [vmem:[%s3072 + $0x30] sm:$0xff]
    %v3080 = vld [vmem:[%s3072 + $0x38] sm:$0xff]
    %v3081 = vld [vmem:[%s3072 + $0x40] sm:$0xff]
    %v3082 = vld [vmem:[%s3072 + $0x48] sm:$0xff]
    %v3083 = vld [vmem:[%s3072 + $0x50] sm:$0xff]
    %v3084 = vld [vmem:[%s3072 + $0x58] sm:$0xff]
    %v3085 = vld [vmem:[%s3072 + $0x60] sm:$0xff]
    %v3086 = vld [vmem:[%s3072 + $0x68] sm:$0xff]
    %v3087 = vld [vmem:[%s3072 + $0x70] sm:$0xff]
    %v3088 = vld [vmem:[%s3072 + $0x78] sm:$0xff]
    %v3089 = vld [vmem:[%s3072 + $0x80] sm:$0xff]
    %v3090 = vld [vmem:[%s3072 + $0x88] sm:$0xff]
    %v3091 = vld [vmem:[%s3072 + $0x90] sm:$0xff]
    %v3092 = vld [vmem:[%s3072 + $0x98] sm:$0xff]
    %v3094 = vsel %vm2678, %v3070, 0
    %3096 = vmatprep.subr.mxu0 0.0
    %3097 = vmatpush1.msra.mxu0 %v3073
    %3098 = vmatprep.subr.mxu0 0.0
    %3099 = vmatpush1.msra.mxu0 %v3074
    %3100 = vmatprep.subr.mxu0 0.0
    %3101 = vmatpush1.msra.mxu0 %v3075
    %3102 = vmatprep.subr.mxu0 0.0
    %3103 = vmatpush1.msra.mxu0 %v3076
    %3104 = vmatprep.subr.mxu0 0.0
    %3105 = vmatpush1.msra.mxu0 %v3077
    %3106 = vmatprep.subr.mxu0 0.0
    %3107 = vmatpush1.msra.mxu0 %v3078
    %3108 = vmatprep.subr.mxu0 0.0
    %3109 = vmatpush1.msra.mxu0 %v3079
    %3110 = vmatprep.subr.mxu0 0.0
    %3111 = vmatpush1.msra.mxu0 %v3080
    %3112 = vmatprep.subr.mxu0 0.0
    %3113 = vmatpush1.msra.mxu0 %v3081
    %3114 = vmatprep.subr.mxu0 0.0
    %3115 = vmatpush1.msra.mxu0 %v3082
    %3116 = vmatprep.subr.mxu0 0.0
    %3117 = vmatpush1.msra.mxu0 %v3083
    %3118 = vmatprep.subr.mxu0 0.0
    %3119 = vmatpush1.msra.mxu0 %v3084
    %3120 = vmatprep.subr.mxu0 0.0
    %3121 = vmatpush1.msra.mxu0 %v3085
    %3122 = vmatprep.subr.mxu0 0.0
    %3123 = vmatpush1.msra.mxu0 %v3086
    %3124 = vmatprep.subr.mxu0 0.0
    %3125 = vmatpush1.msra.mxu0 %v3087
    %3126 = vmatprep.subr.mxu0 0.0
    %3127 = vmatpush1.msra.mxu0 %v3088
    %3128 = vmatprep.subr.mxu0 0.0
    %3129 = vmatpush1.msra.mxu0 %v3089
    %3130 = vmatprep.subr.mxu0 0.0
    %3131 = vmatpush1.msra.mxu0 %v3090
    %3132 = vmatprep.subr.mxu0 0.0
    %3133 = vmatpush1.msra.mxu0 %v3091
    %3134 = vmatprep.subr.mxu0 0.0
    %3135 = vmatpush1.msra.mxu0 %v3092
    %3136 = vmatprep.subr.mxu0 0.0
    %3137 = vmatpush1.msra.mxu0 0.0
    %3138 = vmatprep.subr.mxu0 0.0
    %3139 = vmatpush1.msra.mxu0 0.0
    %3140 = vmatprep.subr.mxu0 0.0
    %3141 = vmatpush1.msra.mxu0 0.0
    %3142 = vmatprep.subr.mxu0 0.0
    %3143 = vmatpush1.msra.mxu0 0.0
    %3144 = vmatprep.subr.mxu0 0.0
    %3145 = vmatpush1.msra.mxu0 0.0
    %3146 = vmatprep.subr.mxu0 0.0
    %3147 = vmatpush1.msra.mxu0 0.0
    %3148 = vmatprep.subr.mxu0 0.0
    %3149 = vmatpush1.msra.mxu0 0.0
    %3150 = vmatprep.subr.mxu0 0.0
    %3151 = vmatpush1.msra.mxu0 0.0
    %3152 = vmatprep.subr.mxu0 0.0
    %3153 = vmatpush1.msra.mxu0 0.0
    %3154 = vmatprep.subr.mxu0 0.0
    %3155 = vmatpush1.msra.mxu0 0.0
    %3156 = vmatprep.subr.mxu0 0.0
    %3157 = vmatpush1.msra.mxu0 0.0
    %3158 = vmatprep.subr.mxu0 0.0
    %3159 = vmatpush1.msra.mxu0 0.0
    %3160 = vmatprep.mubr.f32.mxu0 %v3094
    %3161 = vmatmul.mubr.f32.gmra.mrb[0].mxu0 %v3068
    %v3162 = vpop.f32.mrb[0].mxu0
    %v3163 = vadd.f32 0.0, %v3162
    %v3164 = vpop.f32.mrb[0].mxu0
    %3165 = vdwg.mxu0
    %v3166 = vadd.f32 %v2995, %v3163
    %s3167 = scalar_lea.vmem %s9, 8
    %v3168 = vld [vmem:[%s3167] sm:$0x3]
    %v3170 = vsel %vm2480, %v3168, 0
    %3172 = vmatprep.subr.mxu0 %v2476
    %3173 = vmatpush1.msra.mxu0 %v2475
    %3174 = vmatprep.subr.mxu0 %v2488
    %3175 = vmatpush1.msra.mxu0 %v2485
    %3176 = vmatprep.subr.mxu0 0.0
    %3177 = vmatpush1.msra.mxu0 0.0
    %3178 = vmatprep.subr.mxu0 0.0
    %3179 = vmatpush1.msra.mxu0 0.0
    %3180 = vmatprep.subr.mxu0 0.0
    %3181 = vmatpush1.msra.mxu0 0.0
    %3182 = vmatprep.subr.mxu0 0.0
    %3183 = vmatpush1.msra.mxu0 0.0
    %3184 = vmatprep.subr.mxu0 0.0
    %3185 = vmatpush1.msra.mxu0 0.0
    %3186 = vmatprep.subr.mxu0 0.0
    %3187 = vmatpush1.msra.mxu0 0.0
    %3188 = vmatprep.subr.mxu0 0.0
    %3189 = vmatpush1.msra.mxu0 0.0
    %3190 = vmatprep.subr.mxu0 0.0
    %3191 = vmatpush1.msra.mxu0 0.0
    %3192 = vmatprep.subr.mxu0 0.0
    %3193 = vmatpush1.msra.mxu0 0.0
    %3194 = vmatprep.subr.mxu0 0.0
    %3195 = vmatpush1.msra.mxu0 0.0
    %3196 = vmatprep.subr.mxu0 0.0
    %3197 = vmatpush1.msra.mxu0 0.0
    %3198 = vmatprep.subr.mxu0 0.0
    %3199 = vmatpush1.msra.mxu0 0.0
    %3200 = vmatprep.subr.mxu0 0.0
    %3201 = vmatpush1.msra.mxu0 0.0
    %3202 = vmatprep.subr.mxu0 0.0
    %3203 = vmatpush1.msra.mxu0 0.0
    %3204 = vmatprep.subr.mxu0 0.0
    %3205 = vmatpush1.msra.mxu0 0.0
    %3206 = vmatprep.subr.mxu0 0.0
    %3207 = vmatpush1.msra.mxu0 0.0
    %3208 = vmatprep.subr.mxu0 0.0
    %3209 = vmatpush1.msra.mxu0 0.0
    %3210 = vmatprep.subr.mxu0 0.0
    %3211 = vmatpush1.msra.mxu0 0.0
    %3212 = vmatprep.subr.mxu0 0.0
    %3213 = vmatpush1.msra.mxu0 0.0
    %3214 = vmatprep.subr.mxu0 0.0
    %3215 = vmatpush1.msra.mxu0 0.0
    %3216 = vmatprep.subr.mxu0 0.0
    %3217 = vmatpush1.msra.mxu0 0.0
    %3218 = vmatprep.subr.mxu0 0.0
    %3219 = vmatpush1.msra.mxu0 0.0
    %3220 = vmatprep.subr.mxu0 0.0
    %3221 = vmatpush1.msra.mxu0 0.0
    %3222 = vmatprep.subr.mxu0 0.0
    %3223 = vmatpush1.msra.mxu0 0.0
    %3224 = vmatprep.subr.mxu0 0.0
    %3225 = vmatpush1.msra.mxu0 0.0
    %3226 = vmatprep.subr.mxu0 0.0
    %3227 = vmatpush1.msra.mxu0 0.0
    %3228 = vmatprep.subr.mxu0 0.0
    %3229 = vmatpush1.msra.mxu0 0.0
    %3230 = vmatprep.subr.mxu0 0.0
    %3231 = vmatpush1.msra.mxu0 0.0
    %3232 = vmatprep.subr.mxu0 0.0
    %3233 = vmatpush1.msra.mxu0 0.0
    %3234 = vmatprep.subr.mxu0 0.0
    %3235 = vmatpush1.msra.mxu0 0.0
    %3236 = vmatprep.mubr.f32.mxu0 0.0
    %3237 = vmatmul.mubr.f32.gmra.mrb[0].mxu0 %v3170
    %v3238 = vpop.f32.mrb[0].mxu0
    %v3239 = vadd.f32 0.0, %v3238
    %v3240 = vpop.f32.mrb[0].mxu0
    %v3241 = vadd.f32 0.0, %v3240
    %3242 = vdwg.mxu0
    %s3243 = scalar_lea.vmem %s10, 640
    %v3244 = vld [vmem:[%s3243] sm:$0xff]
    %v3245 = vld [vmem:[%s3243 + $0x8] sm:$0xff]
    %v3246 = vld [vmem:[%s3243 + $0x10] sm:$0xff]
    %v3247 = vld [vmem:[%s3243 + $0x18] sm:$0xff]
    %v3248 = vld [vmem:[%s3243 + $0x20] sm:$0xff]
    %v3249 = vld [vmem:[%s3243 + $0x28] sm:$0xff]
    %v3250 = vld [vmem:[%s3243 + $0x30] sm:$0xff]
    %v3251 = vld [vmem:[%s3243 + $0x38] sm:$0xff]
    %v3252 = vld [vmem:[%s3243 + $0x40] sm:$0xff]
    %v3253 = vld [vmem:[%s3243 + $0x48] sm:$0xff]
    %v3254 = vld [vmem:[%s3243 + $0x50] sm:$0xff]
    %v3255 = vld [vmem:[%s3243 + $0x58] sm:$0xff]
    %v3256 = vld [vmem:[%s3243 + $0x60] sm:$0xff]
    %v3257 = vld [vmem:[%s3243 + $0x68] sm:$0xff]
    %v3258 = vld [vmem:[%s3243 + $0x70] sm:$0xff]
    %v3259 = vld [vmem:[%s3243 + $0x78] sm:$0xff]
    %v3260 = vld [vmem:[%s3243 + $0x80] sm:$0xff]
    %v3261 = vld [vmem:[%s3243 + $0x88] sm:$0xff]
    %v3262 = vld [vmem:[%s3243 + $0x90] sm:$0xff]
    %v3263 = vld [vmem:[%s3243 + $0x98] sm:$0xff]
    %v3265 = vsel %vm2678, %v3241, 0
    %3267 = vmatprep.subr.mxu0 0.0
    %3268 = vmatpush1.msra.mxu0 %v3244
    %3269 = vmatprep.subr.mxu0 0.0
    %3270 = vmatpush1.msra.mxu0 %v3245
    %3271 = vmatprep.subr.mxu0 0.0
    %3272 = vmatpush1.msra.mxu0 %v3246
    %3273 = vmatprep.subr.mxu0 0.0
    %3274 = vmatpush1.msra.mxu0 %v3247
    %3275 = vmatprep.subr.mxu0 0.0
    %3276 = vmatpush1.msra.mxu0 %v3248
    %3277 = vmatprep.subr.mxu0 0.0
    %3278 = vmatpush1.msra.mxu0 %v3249
    %3279 = vmatprep.subr.mxu0 0.0
    %3280 = vmatpush1.msra.mxu0 %v3250
    %3281 = vmatprep.subr.mxu0 0.0
    %3282 = vmatpush1.msra.mxu0 %v3251
    %3283 = vmatprep.subr.mxu0 0.0
    %3284 = vmatpush1.msra.mxu0 %v3252
    %3285 = vmatprep.subr.mxu0 0.0
    %3286 = vmatpush1.msra.mxu0 %v3253
    %3287 = vmatprep.subr.mxu0 0.0
    %3288 = vmatpush1.msra.mxu0 %v3254
    %3289 = vmatprep.subr.mxu0 0.0
    %3290 = vmatpush1.msra.mxu0 %v3255
    %3291 = vmatprep.subr.mxu0 0.0
    %3292 = vmatpush1.msra.mxu0 %v3256
    %3293 = vmatprep.subr.mxu0 0.0
    %3294 = vmatpush1.msra.mxu0 %v3257
    %3295 = vmatprep.subr.mxu0 0.0
    %3296 = vmatpush1.msra.mxu0 %v3258
    %3297 = vmatprep.subr.mxu0 0.0
    %3298 = vmatpush1.msra.mxu0 %v3259
    %3299 = vmatprep.subr.mxu0 0.0
    %3300 = vmatpush1.msra.mxu0 %v3260
    %3301 = vmatprep.subr.mxu0 0.0
    %3302 = vmatpush1.msra.mxu0 %v3261
    %3303 = vmatprep.subr.mxu0 0.0
    %3304 = vmatpush1.msra.mxu0 %v3262
    %3305 = vmatprep.subr.mxu0 0.0
    %3306 = vmatpush1.msra.mxu0 %v3263
    %3307 = vmatprep.subr.mxu0 0.0
    %3308 = vmatpush1.msra.mxu0 0.0
    %3309 = vmatprep.subr.mxu0 0.0
    %3310 = vmatpush1.msra.mxu0 0.0
    %3311 = vmatprep.subr.mxu0 0.0
    %3312 = vmatpush1.msra.mxu0 0.0
    %3313 = vmatprep.subr.mxu0 0.0
    %3314 = vmatpush1.msra.mxu0 0.0
    %3315 = vmatprep.subr.mxu0 0.0
    %3316 = vmatpush1.msra.mxu0 0.0
    %3317 = vmatprep.subr.mxu0 0.0
    %3318 = vmatpush1.msra.mxu0 0.0
    %3319 = vmatprep.subr.mxu0 0.0
    %3320 = vmatpush1.msra.mxu0 0.0
    %3321 = vmatprep.subr.mxu0 0.0
    %3322 = vmatpush1.msra.mxu0 0.0
    %3323 = vmatprep.subr.mxu0 0.0
    %3324 = vmatpush1.msra.mxu0 0.0
    %3325 = vmatprep.subr.mxu0 0.0
    %3326 = vmatpush1.msra.mxu0 0.0
    %3327 = vmatprep.subr.mxu0 0.0
    %3328 = vmatpush1.msra.mxu0 0.0
    %3329 = vmatprep.subr.mxu0 0.0
    %3330 = vmatpush1.msra.mxu0 0.0
    %3331 = vmatprep.mubr.f32.mxu0 %v3265
    %3332 = vmatmul.mubr.f32.gmra.mrb[0].mxu0 %v3239
    %v3333 = vpop.f32.mrb[0].mxu0
    %v3334 = vadd.f32 0.0, %v3333
    %v3335 = vpop.f32.mrb[0].mxu0
    %3336 = vdwg.mxu0
    %v3337 = vadd.f32 %v3166, %v3334
    %v3338 = vld [vmem:[%s11] sm:$0x1]
    %v3340 = vlaneseq
    %v3341 = vshrl.u32 %v3340, 7
    %v3342 = vsub.s32 0, %v3341
    %v3343 = vrot.slane %v3338, %v3342
    %v3345 = vmul.f32 %v3337, %v3343
    %v3346 = vld [vmem:[%s12] sm:$0x1]
    %v3348 = vlaneseq
    %v3349 = vshrl.u32 %v3348, 7
    %v3350 = vsub.s32 0, %v3349
    %v3351 = vrot.slane %v3346, %v3350
    %v3353 = vadd.f32 %v3345, %v3351
    %v3354 = vmax.f32 %v3353, 0.0
    %v3355 = vld [vmem:[%s13] sm:$0x3]
    %vm3356 = vcmask 15360
    %v3358 = vsel %vm3356, %v3355, 0
    %v3361 = vsel %vm1323, %v3354, 0
    %3363 = vmatprep.subr.mxu0 0.0
    %3364 = vmatpush1.msra.mxu0 %v3361
    %3365 = vmatprep.subr.mxu0 0.0
    %3366 = vmatpush1.msra.mxu0 0.0
    %3367 = vmatprep.subr.mxu0 0.0
    %3368 = vmatpush1.msra.mxu0 0.0
    %3369 = vmatprep.subr.mxu0 0.0
    %3370 = vmatpush1.msra.mxu0 0.0
    %3371 = vmatprep.subr.mxu0 0.0
    %3372 = vmatpush1.msra.mxu0 0.0
    %3373 = vmatprep.subr.mxu0 0.0
    %3374 = vmatpush1.msra.mxu0 0.0
    %3375 = vmatprep.subr.mxu0 0.0
    %3376 = vmatpush1.msra.mxu0 0.0
    %3377 = vmatprep.subr.mxu0 0.0
    %3378 = vmatpush1.msra.mxu0 0.0
    %3379 = vmatprep.subr.mxu0 0.0
    %3380 = vmatpush1.msra.mxu0 0.0
    %3381 = vmatprep.subr.mxu0 0.0
    %3382 = vmatpush1.msra.mxu0 0.0
    %3383 = vmatprep.subr.mxu0 0.0
    %3384 = vmatpush1.msra.mxu0 0.0
    %3385 = vmatprep.subr.mxu0 0.0
    %3386 = vmatpush1.msra.mxu0 0.0
    %3387 = vmatprep.subr.mxu0 0.0
    %3388 = vmatpush1.msra.mxu0 0.0
    %3389 = vmatprep.subr.mxu0 0.0
    %3390 = vmatpush1.msra.mxu0 0.0
    %3391 = vmatprep.subr.mxu0 0.0
    %3392 = vmatpush1.msra.mxu0 0.0
    %3393 = vmatprep.subr.mxu0 0.0
    %3394 = vmatpush1.msra.mxu0 0.0
    %3395 = vmatprep.subr.mxu0 0.0
    %3396 = vmatpush1.msra.mxu0 0.0
    %3397 = vmatprep.subr.mxu0 0.0
    %3398 = vmatpush1.msra.mxu0 0.0
    %3399 = vmatprep.subr.mxu0 0.0
    %3400 = vmatpush1.msra.mxu0 0.0
    %3401 = vmatprep.subr.mxu0 0.0
    %3402 = vmatpush1.msra.mxu0 0.0
    %3403 = vmatprep.subr.mxu0 0.0
    %3404 = vmatpush1.msra.mxu0 0.0
    %3405 = vmatprep.subr.mxu0 0.0
    %3406 = vmatpush1.msra.mxu0 0.0
    %3407 = vmatprep.subr.mxu0 0.0
    %3408 = vmatpush1.msra.mxu0 0.0
    %3409 = vmatprep.subr.mxu0 0.0
    %3410 = vmatpush1.msra.mxu0 0.0
    %3411 = vmatprep.subr.mxu0 0.0
    %3412 = vmatpush1.msra.mxu0 0.0
    %3413 = vmatprep.subr.mxu0 0.0
    %3414 = vmatpush1.msra.mxu0 0.0
    %3415 = vmatprep.subr.mxu0 0.0
    %3416 = vmatpush1.msra.mxu0 0.0
    %3417 = vmatprep.subr.mxu0 0.0
    %3418 = vmatpush1.msra.mxu0 0.0
    %3419 = vmatprep.subr.mxu0 0.0
    %3420 = vmatpush1.msra.mxu0 0.0
    %3421 = vmatprep.subr.mxu0 0.0
    %3422 = vmatpush1.msra.mxu0 0.0
    %3423 = vmatprep.subr.mxu0 0.0
    %3424 = vmatpush1.msra.mxu0 0.0
    %3425 = vmatprep.subr.mxu0 0.0
    %3426 = vmatpush1.msra.mxu0 0.0
    %3427 = vmatprep.mubr.f32.mxu0 0.0
    %3428 = vmatmul.mubr.f32.gmra.mrb[0].mxu0 %v3358
    %v3429 = vpop.f32.mrb[0].mxu0
    %v3430 = vadd.f32 0.0, %v3429
    %v3431 = vpop.f32.mrb[0].mxu0
    %3432 = vdwg.mxu0
    %v3433 = vld [vmem:[%s14] sm:$0xff]
    %v3434 = vld [vmem:[%s14 + $0x8] sm:$0xff]
    %v3435 = vld [vmem:[%s14 + $0x10] sm:$0xff]
    %v3436 = vld [vmem:[%s14 + $0x18] sm:$0xff]
    %v3437 = vld [vmem:[%s14 + $0x20] sm:$0xff]
    %v3438 = vld [vmem:[%s14 + $0x28] sm:$0xff]
    %v3439 = vld [vmem:[%s14 + $0x30] sm:$0xff]
    %v3440 = vld [vmem:[%s14 + $0x38] sm:$0xff]
    %v3441 = vld [vmem:[%s14 + $0x40] sm:$0xff]
    %v3442 = vld [vmem:[%s14 + $0x48] sm:$0xff]
    %v3443 = vld [vmem:[%s14 + $0x50] sm:$0xff]
    %v3444 = vld [vmem:[%s14 + $0x58] sm:$0xff]
    %v3445 = vld [vmem:[%s14 + $0x60] sm:$0xff]
    %v3446 = vld [vmem:[%s14 + $0x68] sm:$0xff]
    %v3447 = vld [vmem:[%s14 + $0x70] sm:$0xff]
    %v3448 = vld [vmem:[%s14 + $0x78] sm:$0xff]
    %v3449 = vld [vmem:[%s15] sm:$0xf]
    %v3451 = vlaneseq
    %v3452 = vshrl.u32 %v3451, 7
    %v3453 = vsub.s32 0, %v3452
    %v3454 = vrot.slane %v3449, %v3453
    %v3455 = vlaneseq
    %v3456 = vshrl.u32 %v3455, 7
    %v3457 = vsub.s32 1, %v3456
    %v3458 = vrot.slane %v3449, %v3457
    %v3459 = vlaneseq
    %v3460 = vshrl.u32 %v3459, 7
    %v3461 = vsub.s32 2, %v3460
    %v3462 = vrot.slane %v3449, %v3461
    %v3463 = vlaneseq
    %v3464 = vshrl.u32 %v3463, 7
    %v3465 = vsub.s32 3, %v3464
    %v3466 = vrot.slane %v3449, %v3465
    %v3472 = vsel %vm2678, %v3430, 0
    %3474 = vmatprep.subr.mxu0 %v3434
    %3475 = vmatpush1.msra.mxu0 %v3433
    %3476 = vmatprep.subr.mxu0 %v3438
    %3477 = vmatpush1.msra.mxu0 %v3437
    %3478 = vmatprep.subr.mxu0 %v3442
    %3479 = vmatpush1.msra.mxu0 %v3441
    %3480 = vmatprep.subr.mxu0 %v3446
    %3481 = vmatpush1.msra.mxu0 %v3445
    %3482 = vmatprep.subr.mxu0 0.0
    %3483 = vmatpush1.msra.mxu0 0.0
    %3484 = vmatprep.subr.mxu0 0.0
    %3485 = vmatpush1.msra.mxu0 0.0
    %3486 = vmatprep.subr.mxu0 0.0
    %3487 = vmatpush1.msra.mxu0 0.0
    %3488 = vmatprep.subr.mxu0 0.0
    %3489 = vmatpush1.msra.mxu0 0.0
    %3490 = vmatprep.subr.mxu0 0.0
    %3491 = vmatpush1.msra.mxu0 0.0
    %3492 = vmatprep.subr.mxu0 0.0
    %3493 = vmatpush1.msra.mxu0 0.0
    %3494 = vmatprep.subr.mxu0 0.0
    %3495 = vmatpush1.msra.mxu0 0.0
    %3496 = vmatprep.subr.mxu0 0.0
    %3497 = vmatpush1.msra.mxu0 0.0
    %3498 = vmatprep.subr.mxu0 0.0
    %3499 = vmatpush1.msra.mxu0 0.0
    %3500 = vmatprep.subr.mxu0 0.0
    %3501 = vmatpush1.msra.mxu0 0.0
    %3502 = vmatprep.subr.mxu0 0.0
    %3503 = vmatpush1.msra.mxu0 0.0
    %3504 = vmatprep.subr.mxu0 0.0
    %3505 = vmatpush1.msra.mxu0 0.0
    %3506 = vmatprep.subr.mxu0 0.0
    %3507 = vmatpush1.msra.mxu0 0.0
    %3508 = vmatprep.subr.mxu0 0.0
    %3509 = vmatpush1.msra.mxu0 0.0
    %3510 = vmatprep.subr.mxu0 0.0
    %3511 = vmatpush1.msra.mxu0 0.0
    %3512 = vmatprep.subr.mxu0 0.0
    %3513 = vmatpush1.msra.mxu0 0.0
    %3514 = vmatprep.subr.mxu0 0.0
    %3515 = vmatpush1.msra.mxu0 0.0
    %3516 = vmatprep.subr.mxu0 0.0
    %3517 = vmatpush1.msra.mxu0 0.0
    %3518 = vmatprep.subr.mxu0 0.0
    %3519 = vmatpush1.msra.mxu0 0.0
    %3520 = vmatprep.subr.mxu0 0.0
    %3521 = vmatpush1.msra.mxu0 0.0
    %3522 = vmatprep.subr.mxu0 0.0
    %3523 = vmatpush1.msra.mxu0 0.0
    %3524 = vmatprep.subr.mxu0 0.0
    %3525 = vmatpush1.msra.mxu0 0.0
    %3526 = vmatprep.subr.mxu0 0.0
    %3527 = vmatpush1.msra.mxu0 0.0
    %3528 = vmatprep.subr.mxu0 0.0
    %3529 = vmatpush1.msra.mxu0 0.0
    %3530 = vmatprep.subr.mxu0 0.0
    %3531 = vmatpush1.msra.mxu0 0.0
    %3532 = vmatprep.subr.mxu0 0.0
    %3533 = vmatpush1.msra.mxu0 0.0
    %3534 = vmatprep.subr.mxu0 0.0
    %3535 = vmatpush1.msra.mxu0 0.0
    %3536 = vmatprep.subr.mxu0 0.0
    %3537 = vmatpush1.msra.mxu0 0.0
    %3538 = vmatprep.mubr.f32.mxu0 0.0
    %3539 = vmatmul.mubr.f32.gmra.mrb[0].mxu0 %v3472
    %v3540 = vpop.f32.mrb[0].mxu0
    %v3541 = vadd.f32 %v3454, %v3540
    %v3542 = vpop.f32.mrb[0].mxu0
    %v3543 = vadd.f32 %v3458, %v3542
    %3544 = vdwg.mxu0
    %3545 = vmatprep.subr.mxu0 %v3436
    %3546 = vmatpush1.msra.mxu0 %v3435
    %3547 = vmatprep.subr.mxu0 %v3440
    %3548 = vmatpush1.msra.mxu0 %v3439
    %3549 = vmatprep.subr.mxu0 %v3444
    %3550 = vmatpush1.msra.mxu0 %v3443
    %3551 = vmatprep.subr.mxu0 %v3448
    %3552 = vmatpush1.msra.mxu0 %v3447
    %3553 = vmatprep.subr.mxu0 0.0
    %3554 = vmatpush1.msra.mxu0 0.0
    %3555 = vmatprep.subr.mxu0 0.0
    %3556 = vmatpush1.msra.mxu0 0.0
    %3557 = vmatprep.subr.mxu0 0.0
    %3558 = vmatpush1.msra.mxu0 0.0
    %3559 = vmatprep.subr.mxu0 0.0
    %3560 = vmatpush1.msra.mxu0 0.0
    %3561 = vmatprep.subr.mxu0 0.0
    %3562 = vmatpush1.msra.mxu0 0.0
    %3563 = vmatprep.subr.mxu0 0.0
    %3564 = vmatpush1.msra.mxu0 0.0
    %3565 = vmatprep.subr.mxu0 0.0
    %3566 = vmatpush1.msra.mxu0 0.0
    %3567 = vmatprep.subr.mxu0 0.0
    %3568 = vmatpush1.msra.mxu0 0.0
    %3569 = vmatprep.subr.mxu0 0.0
    %3570 = vmatpush1.msra.mxu0 0.0
    %3571 = vmatprep.subr.mxu0 0.0
    %3572 = vmatpush1.msra.mxu0 0.0
    %3573 = vmatprep.subr.mxu0 0.0
    %3574 = vmatpush1.msra.mxu0 0.0
    %3575 = vmatprep.subr.mxu0 0.0
    %3576 = vmatpush1.msra.mxu0 0.0
    %3577 = vmatprep.subr.mxu0 0.0
    %3578 = vmatpush1.msra.mxu0 0.0
    %3579 = vmatprep.subr.mxu0 0.0
    %3580 = vmatpush1.msra.mxu0 0.0
    %3581 = vmatprep.subr.mxu0 0.0
    %3582 = vmatpush1.msra.mxu0 0.0
    %3583 = vmatprep.subr.mxu0 0.0
    %3584 = vmatpush1.msra.mxu0 0.0
    %3585 = vmatprep.subr.mxu0 0.0
    %3586 = vmatpush1.msra.mxu0 0.0
    %3587 = vmatprep.subr.mxu0 0.0
    %3588 = vmatpush1.msra.mxu0 0.0
    %3589 = vmatprep.subr.mxu0 0.0
    %3590 = vmatpush1.msra.mxu0 0.0
    %3591 = vmatprep.subr.mxu0 0.0
    %3592 = vmatpush1.msra.mxu0 0.0
    %3593 = vmatprep.subr.mxu0 0.0
    %3594 = vmatpush1.msra.mxu0 0.0
    %3595 = vmatprep.subr.mxu0 0.0
    %3596 = vmatpush1.msra.mxu0 0.0
    %3597 = vmatprep.subr.mxu0 0.0
    %3598 = vmatpush1.msra.mxu0 0.0
    %3599 = vmatprep.subr.mxu0 0.0
    %3600 = vmatpush1.msra.mxu0 0.0
    %3601 = vmatprep.subr.mxu0 0.0
    %3602 = vmatpush1.msra.mxu0 0.0
    %3603 = vmatprep.subr.mxu0 0.0
    %3604 = vmatpush1.msra.mxu0 0.0
    %3605 = vmatprep.subr.mxu0 0.0
    %3606 = vmatpush1.msra.mxu0 0.0
    %3607 = vmatprep.subr.mxu0 0.0
    %3608 = vmatpush1.msra.mxu0 0.0
    %3609 = vmatprep.mubr.f32.mxu0 0.0
    %3610 = vmatmul.mubr.f32.gmra.mrb[0].mxu0 %v3472
    %v3611 = vpop.f32.mrb[0].mxu0
    %v3612 = vadd.f32 %v3462, %v3611
    %v3613 = vpop.f32.mrb[0].mxu0
    %v3614 = vadd.f32 %v3466, %v3613
    %3615 = vdwg.mxu0
    %v3616 = vld [vmem:[%s16] sm:$0xff]
    %v3617 = vld [vmem:[%s16 + $0x8] sm:$0xff]
    %v3618 = vld [vmem:[%s16 + $0x10] sm:$0xff]
    %v3619 = vld [vmem:[%s16 + $0x18] sm:$0xff]
    %v3620 = vld [vmem:[%s16 + $0x20] sm:$0xff]
    %v3621 = vld [vmem:[%s16 + $0x28] sm:$0xff]
    %v3622 = vld [vmem:[%s16 + $0x30] sm:$0xff]
    %v3623 = vld [vmem:[%s16 + $0x38] sm:$0xff]
    %v3624 = vld [vmem:[%s16 + $0x40] sm:$0xff]
    %v3625 = vld [vmem:[%s16 + $0x48] sm:$0xff]
    %v3626 = vld [vmem:[%s16 + $0x50] sm:$0xff]
    %v3627 = vld [vmem:[%s16 + $0x58] sm:$0xff]
    %v3628 = vld [vmem:[%s16 + $0x60] sm:$0xff]
    %v3629 = vld [vmem:[%s16 + $0x68] sm:$0xff]
    %v3630 = vld [vmem:[%s16 + $0x70] sm:$0xff]
    %v3631 = vld [vmem:[%s16 + $0x78] sm:$0xff]
    %v3632 = vld [vmem:[%s16 + $0x80] sm:$0xff]
    %v3633 = vld [vmem:[%s16 + $0x88] sm:$0xff]
    %v3634 = vld [vmem:[%s16 + $0x90] sm:$0xff]
    %v3635 = vld [vmem:[%s16 + $0x98] sm:$0xff]
    %v3636 = vld [vmem:[%s16 + $0xa0] sm:$0xff]
    %v3637 = vld [vmem:[%s16 + $0xa8] sm:$0xff]
    %v3638 = vld [vmem:[%s16 + $0xb0] sm:$0xff]
    %v3639 = vld [vmem:[%s16 + $0xb8] sm:$0xff]
    %v3640 = vld [vmem:[%s16 + $0xc0] sm:$0xff]
    %v3641 = vld [vmem:[%s16 + $0xc8] sm:$0xff]
    %v3642 = vld [vmem:[%s16 + $0xd0] sm:$0xff]
    %v3643 = vld [vmem:[%s16 + $0xd8] sm:$0xff]
    %v3644 = vld [vmem:[%s16 + $0xe0] sm:$0xff]
    %v3645 = vld [vmem:[%s16 + $0xe8] sm:$0xff]
    %v3646 = vld [vmem:[%s16 + $0xf0] sm:$0xff]
    %v3647 = vld [vmem:[%s16 + $0xf8] sm:$0xff]
    %v3648 = vld [vmem:[%s16 + $0x100] sm:$0xff]
    %v3649 = vld [vmem:[%s16 + $0x108] sm:$0xff]
    %v3650 = vld [vmem:[%s16 + $0x110] sm:$0xff]
    %v3651 = vld [vmem:[%s16 + $0x118] sm:$0xff]
    %v3652 = vld [vmem:[%s16 + $0x120] sm:$0xff]
    %v3653 = vld [vmem:[%s16 + $0x128] sm:$0xff]
    %v3654 = vld [vmem:[%s16 + $0x130] sm:$0xff]
    %v3655 = vld [vmem:[%s16 + $0x138] sm:$0xff]
    %v3656 = vld [vmem:[%s16 + $0x140] sm:$0xff]
    %v3657 = vld [vmem:[%s16 + $0x148] sm:$0xff]
    %v3658 = vld [vmem:[%s16 + $0x150] sm:$0xff]
    %v3659 = vld [vmem:[%s16 + $0x158] sm:$0xff]
    %v3660 = vld [vmem:[%s16 + $0x160] sm:$0xff]
    %v3661 = vld [vmem:[%s16 + $0x168] sm:$0xff]
    %v3662 = vld [vmem:[%s16 + $0x170] sm:$0xff]
    %v3663 = vld [vmem:[%s16 + $0x178] sm:$0xff]
    %v3664 = vld [vmem:[%s16 + $0x180] sm:$0xff]
    %v3665 = vld [vmem:[%s16 + $0x188] sm:$0xff]
    %v3666 = vld [vmem:[%s16 + $0x190] sm:$0xff]
    %v3667 = vld [vmem:[%s16 + $0x198] sm:$0xff]
    %v3668 = vld [vmem:[%s16 + $0x1a0] sm:$0xff]
    %v3669 = vld [vmem:[%s16 + $0x1a8] sm:$0xff]
    %v3670 = vld [vmem:[%s16 + $0x1b0] sm:$0xff]
    %v3671 = vld [vmem:[%s16 + $0x1b8] sm:$0xff]
    %v3672 = vld [vmem:[%s16 + $0x1c0] sm:$0xff]
    %v3673 = vld [vmem:[%s16 + $0x1c8] sm:$0xff]
    %v3674 = vld [vmem:[%s16 + $0x1d0] sm:$0xff]
    %v3675 = vld [vmem:[%s16 + $0x1d8] sm:$0xff]
    %v3676 = vld [vmem:[%s16 + $0x1e0] sm:$0xff]
    %v3677 = vld [vmem:[%s16 + $0x1e8] sm:$0xff]
    %v3678 = vld [vmem:[%s16 + $0x1f0] sm:$0xff]
    %v3679 = vld [vmem:[%s16 + $0x1f8] sm:$0xff]
    %v3680 = vld [vmem:[%s17] sm:$0x1]
    %v3682 = vlaneseq
    %v3683 = vshrl.u32 %v3682, 7
    %v3684 = vsub.s32 0, %v3683
    %v3685 = vrot.slane %v3680, %v3684
    %3687 = vmatprep.subr.mxu0 0.0
    %3688 = vmatpush1.msra.mxu0 %v3616
    %3689 = vmatprep.subr.mxu0 0.0
    %3690 = vmatpush1.msra.mxu0 %v3617
    %3691 = vmatprep.subr.mxu0 0.0
    %3692 = vmatpush1.msra.mxu0 %v3618
    %3693 = vmatprep.subr.mxu0 0.0
    %3694 = vmatpush1.msra.mxu0 %v3619
    %3695 = vmatprep.subr.mxu0 0.0
    %3696 = vmatpush1.msra.mxu0 %v3620
    %3697 = vmatprep.subr.mxu0 0.0
    %3698 = vmatpush1.msra.mxu0 %v3621
    %3699 = vmatprep.subr.mxu0 0.0
    %3700 = vmatpush1.msra.mxu0 %v3622
    %3701 = vmatprep.subr.mxu0 0.0
    %3702 = vmatpush1.msra.mxu0 %v3623
    %3703 = vmatprep.subr.mxu0 0.0
    %3704 = vmatpush1.msra.mxu0 %v3624
    %3705 = vmatprep.subr.mxu0 0.0
    %3706 = vmatpush1.msra.mxu0 %v3625
    %3707 = vmatprep.subr.mxu0 0.0
    %3708 = vmatpush1.msra.mxu0 %v3626
    %3709 = vmatprep.subr.mxu0 0.0
    %3710 = vmatpush1.msra.mxu0 %v3627
    %3711 = vmatprep.subr.mxu0 0.0
    %3712 = vmatpush1.msra.mxu0 %v3628
    %3713 = vmatprep.subr.mxu0 0.0
    %3714 = vmatpush1.msra.mxu0 %v3629
    %3715 = vmatprep.subr.mxu0 0.0
    %3716 = vmatpush1.msra.mxu0 %v3630
    %3717 = vmatprep.subr.mxu0 0.0
    %3718 = vmatpush1.msra.mxu0 %v3631
    %3719 = vmatprep.subr.mxu0 0.0
    %3720 = vmatpush1.msra.mxu0 %v3632
    %3721 = vmatprep.subr.mxu0 0.0
    %3722 = vmatpush1.msra.mxu0 %v3633
    %3723 = vmatprep.subr.mxu0 0.0
    %3724 = vmatpush1.msra.mxu0 %v3634
    %3725 = vmatprep.subr.mxu0 0.0
    %3726 = vmatpush1.msra.mxu0 %v3635
    %3727 = vmatprep.subr.mxu0 0.0
    %3728 = vmatpush1.msra.mxu0 %v3636
    %3729 = vmatprep.subr.mxu0 0.0
    %3730 = vmatpush1.msra.mxu0 %v3637
    %3731 = vmatprep.subr.mxu0 0.0
    %3732 = vmatpush1.msra.mxu0 %v3638
    %3733 = vmatprep.subr.mxu0 0.0
    %3734 = vmatpush1.msra.mxu0 %v3639
    %3735 = vmatprep.subr.mxu0 0.0
    %3736 = vmatpush1.msra.mxu0 %v3640
    %3737 = vmatprep.subr.mxu0 0.0
    %3738 = vmatpush1.msra.mxu0 %v3641
    %3739 = vmatprep.subr.mxu0 0.0
    %3740 = vmatpush1.msra.mxu0 %v3642
    %3741 = vmatprep.subr.mxu0 0.0
    %3742 = vmatpush1.msra.mxu0 %v3643
    %3743 = vmatprep.subr.mxu0 0.0
    %3744 = vmatpush1.msra.mxu0 %v3644
    %3745 = vmatprep.subr.mxu0 0.0
    %3746 = vmatpush1.msra.mxu0 %v3645
    %3747 = vmatprep.subr.mxu0 0.0
    %3748 = vmatpush1.msra.mxu0 %v3646
    %3749 = vmatprep.subr.mxu0 0.0
    %3750 = vmatpush1.msra.mxu0 %v3647
    %3751 = vmatprep.mubr.f32.mxu0 %v3543
    %3752 = vmatmul.mubr.f32.gmra.mrb[0].mxu0 %v3541
    %v3753 = vpop.f32.mrb[0].mxu0
    %v3754 = vadd.f32 %v3685, %v3753
    %v3755 = vpop.f32.mrb[0].mxu0
    %3756 = vdwg.mxu0
    %3757 = vmatprep.subr.mxu0 0.0
    %3758 = vmatpush1.msra.mxu0 %v3648
    %3759 = vmatprep.subr.mxu0 0.0
    %3760 = vmatpush1.msra.mxu0 %v3649
    %3761 = vmatprep.subr.mxu0 0.0
    %3762 = vmatpush1.msra.mxu0 %v3650
    %3763 = vmatprep.subr.mxu0 0.0
    %3764 = vmatpush1.msra.mxu0 %v3651
    %3765 = vmatprep.subr.mxu0 0.0
    %3766 = vmatpush1.msra.mxu0 %v3652
    %3767 = vmatprep.subr.mxu0 0.0
    %3768 = vmatpush1.msra.mxu0 %v3653
    %3769 = vmatprep.subr.mxu0 0.0
    %3770 = vmatpush1.msra.mxu0 %v3654
    %3771 = vmatprep.subr.mxu0 0.0
    %3772 = vmatpush1.msra.mxu0 %v3655
    %3773 = vmatprep.subr.mxu0 0.0
    %3774 = vmatpush1.msra.mxu0 %v3656
    %3775 = vmatprep.subr.mxu0 0.0
    %3776 = vmatpush1.msra.mxu0 %v3657
    %3777 = vmatprep.subr.mxu0 0.0
    %3778 = vmatpush1.msra.mxu0 %v3658
    %3779 = vmatprep.subr.mxu0 0.0
    %3780 = vmatpush1.msra.mxu0 %v3659
    %3781 = vmatprep.subr.mxu0 0.0
    %3782 = vmatpush1.msra.mxu0 %v3660
    %3783 = vmatprep.subr.mxu0 0.0
    %3784 = vmatpush1.msra.mxu0 %v3661
    %3785 = vmatprep.subr.mxu0 0.0
    %3786 = vmatpush1.msra.mxu0 %v3662
    %3787 = vmatprep.subr.mxu0 0.0
    %3788 = vmatpush1.msra.mxu0 %v3663
    %3789 = vmatprep.subr.mxu0 0.0
    %3790 = vmatpush1.msra.mxu0 %v3664
    %3791 = vmatprep.subr.mxu0 0.0
    %3792 = vmatpush1.msra.mxu0 %v3665
    %3793 = vmatprep.subr.mxu0 0.0
    %3794 = vmatpush1.msra.mxu0 %v3666
    %3795 = vmatprep.subr.mxu0 0.0
    %3796 = vmatpush1.msra.mxu0 %v3667
    %3797 = vmatprep.subr.mxu0 0.0
    %3798 = vmatpush1.msra.mxu0 %v3668
    %3799 = vmatprep.subr.mxu0 0.0
    %3800 = vmatpush1.msra.mxu0 %v3669
    %3801 = vmatprep.subr.mxu0 0.0
    %3802 = vmatpush1.msra.mxu0 %v3670
    %3803 = vmatprep.subr.mxu0 0.0
    %3804 = vmatpush1.msra.mxu0 %v3671
    %3805 = vmatprep.subr.mxu0 0.0
    %3806 = vmatpush1.msra.mxu0 %v3672
    %3807 = vmatprep.subr.mxu0 0.0
    %3808 = vmatpush1.msra.mxu0 %v3673
    %3809 = vmatprep.subr.mxu0 0.0
    %3810 = vmatpush1.msra.mxu0 %v3674
    %3811 = vmatprep.subr.mxu0 0.0
    %3812 = vmatpush1.msra.mxu0 %v3675
    %3813 = vmatprep.subr.mxu0 0.0
    %3814 = vmatpush1.msra.mxu0 %v3676
    %3815 = vmatprep.subr.mxu0 0.0
    %3816 = vmatpush1.msra.mxu0 %v3677
    %3817 = vmatprep.subr.mxu0 0.0
    %3818 = vmatpush1.msra.mxu0 %v3678
    %3819 = vmatprep.subr.mxu0 0.0
    %3820 = vmatpush1.msra.mxu0 %v3679
    %3821 = vmatprep.mubr.f32.mxu0 %v3614
    %3822 = vmatmul.mubr.f32.gmra.mrb[0].mxu0 %v3612
    %v3823 = vpop.f32.mrb[0].mxu0
    %v3824 = vadd.f32 %v3754, %v3823
    %v3825 = vpop.f32.mrb[0].mxu0
    %3826 = vdwg.mxu0
    %vm3827 = vcmask 41984
    %3828 = vst.msk [vmem:[#allocation2] sm:$0x3] %vm3827, %v3824
    // Predicated region
    $region74: #{tpu_custom_call.1} parent=1 // pred_check
      _
    $region75: #{tpu_custom_call.1} parent=1 // pred_check_branch
      %3830 = sbr.rel (0) target = $region77
    $region76: #{tpu_custom_call.1} parent=1 // pred_region
      %s3832 = ssub.s32 32, 32
      %3833 = vsyncadd [#allocation3], %s3832
      %s3835 = sshll.u32 [#allocation2], 4
      %s3836 = int_to_ptr.vmem [resolvable:$true] %s3835
      %3838 = dma.vmem_to_hbm [thread:$0]  %s3836, 32, %s18, [#allocation3]
    $region77: #{tpu_custom_call.1} parent=1 // pred_fallthru
      _
    // Predicated region
    $region78: #{tpu_custom_call.1} parent=1 // pred_check
      _
    $region79: #{tpu_custom_call.1} parent=1 // pred_check_branch
      %3840 = sbr.rel (0) target = $region81
    $region80: #{tpu_custom_call.1} parent=1 // pred_region
      %3841 = dma.done [#allocation3], 32
    $region81: #{tpu_custom_call.1} parent=1 // pred_fallthru
      _
    %3842 = vsyncpa [#allocation3], 1

</llo_original>
